<compile_context>
chip_gen: v7x
topology: tpu7x:2x2x1
jax: 0.10.0
libtpu: 0.0.40
codegen_flags: <defaults>
</compile_context>

<pallas_src>
import functools

import jax
import jax.numpy as jnp
from jax import lax
from jax.experimental import pallas as pl
from jax.experimental.pallas import tpu as pltpu


# ----------------------------- Pallas kernels ------------------------------ #

def conv3x3_relu_pool_kernel(xt_ref, w_ref, b_ref, o_ref):
    # xt_ref: (1, 4, K, Tpo)  -- 4 pool-window corners, K = 9*Cin folded taps,
    #                            Tpo pooled output positions (lane dim).
    # w_ref : (Cout, K)        b_ref: (Cout, 1)        o_ref: (1, Cout, Tpo)
    w = w_ref[...]
    m = jnp.dot(w, xt_ref[0, 0], preferred_element_type=jnp.float32)
    for c in range(1, 4):                                   # unrolled corners
        m = jnp.maximum(
            m, jnp.dot(w, xt_ref[0, c], preferred_element_type=jnp.float32))
    # max-pool commutes with (+bias, ReLU) since bias is per-channel.
    o_ref[0] = jnp.maximum(m + b_ref[...], 0.0)


def mlp_head_kernel(x_ref, w1_ref, b1_ref, w2_ref, b2_ref, o_ref, acc_ref):
    # Grid axis 0 tiles fc1's contraction dim (K=8192).
    # x_ref: (B, tk) f32   w1_ref: (tk, 128) bf16   acc_ref: (B, 128) f32
    k = pl.program_id(0)

    @pl.when(k == 0)
    def _():
        acc_ref[...] = jnp.zeros_like(acc_ref)

    acc_ref[...] += jnp.dot(x_ref[...].astype(jnp.bfloat16), w1_ref[...],
                            preferred_element_type=jnp.float32)

    @pl.when(k == pl.num_programs(0) - 1)
    def _():
        h = jnp.maximum(acc_ref[...] + b1_ref[...], 0.0)
        o_ref[...] = (jnp.dot(h, w2_ref[...],
                              preferred_element_type=jnp.float32)
                      + b2_ref[...])


# ------------------------------ wrappers ----------------------------------- #

def _build_pool_taps(x_nchw):
    """im2col glue for (3x3, pad=1) conv fused with 2x2 pooling.

    x_nchw: (B, Cin, H, W)  ->  (B, 4, 9*Cin, (H//2)*(W//2))
    dim 1 = pool-window corner (dy*2+dx); last dim = pooled position (row-major).
    """
    B, Cin, H, W = x_nchw.shape
    Hp, Wp = H // 2, W // 2
    xp = jnp.pad(x_nchw, ((0, 0), (0, 0), (1, 1), (1, 1)))
    corners = []
    for dy in range(2):
        for dx in range(2):
            taps = [xp[:, :, dy + ky: dy + ky + H: 2, dx + kx: dx + kx + W: 2]
                    for ky in range(3) for kx in range(3)]
            t = jnp.stack(taps, axis=1)               # (B, 9, Cin, Hp, Wp)
            corners.append(t.reshape(B, 9 * Cin, Hp * Wp))
    return jnp.stack(corners, axis=1)                 # (B, 4, 9*Cin, Hp*Wp)


def conv3x3_relu_pool(x_nchw, w_kmat, bias_col, *, tile_cols):
    """Fused conv3x3(pad=1) + bias + ReLU + maxpool2x2.

    x_nchw: (B, Cin, H, W); w_kmat: (Cout, 9*Cin); bias_col: (Cout, 1).
    Returns (B, Cout, (H//2)*(W//2)) -- NCHW-flat pooled output.
    """
    B, Cin, H, W = x_nchw.shape
    Cout, K = w_kmat.shape
    Pout = (H // 2) * (W // 2)
    assert Pout % tile_cols == 0 and tile_cols % 128 == 0
    xt = _build_pool_taps(x_nchw)                     # (B, 4, K, Pout)
    n_t = Pout // tile_cols

    return pl.pallas_call(
        conv3x3_relu_pool_kernel,
        out_shape=jax.ShapeDtypeStruct((B, Cout, Pout), jnp.float32),
        grid_spec=pltpu.PrefetchScalarGridSpec(
            num_scalar_prefetch=0,
            grid=(B, n_t),
            in_specs=[
                pl.BlockSpec((1, 4, K, tile_cols), lambda b, t: (b, 0, 0, t)),
                pl.BlockSpec((Cout, K), lambda b, t: (0, 0)),
                pl.BlockSpec((Cout, 1), lambda b, t: (0, 0)),
            ],
            out_specs=pl.BlockSpec((1, Cout, tile_cols),
                                   lambda b, t: (b, 0, t)),
        ),
        compiler_params=pltpu.CompilerParams(
            dimension_semantics=("parallel", "parallel")),
    )(xt, w_kmat, bias_col)


def mlp_head(x, w1_bf16, b1, w2, b2, *, tk=2048):
    """fc1 (bf16 weights, f32 acc) + ReLU + fc2, K-tiled grid."""
    B, D = x.shape
    Dh = w1_bf16.shape[1]
    Do = w2.shape[1]
    assert D % tk == 0
    return pl.pallas_call(
        mlp_head_kernel,
        out_shape=jax.ShapeDtypeStruct((B, Do), jnp.float32),
        grid_spec=pltpu.PrefetchScalarGridSpec(
            num_scalar_prefetch=0,
            grid=(D // tk,),
            in_specs=[
                pl.BlockSpec((B, tk), lambda k: (0, k)),
                pl.BlockSpec((tk, Dh), lambda k: (k, 0)),
                pl.BlockSpec((1, Dh), lambda k: (0, 0)),
                pl.BlockSpec((Dh, Do), lambda k: (0, 0)),
                pl.BlockSpec((1, Do), lambda k: (0, 0)),
            ],
            out_specs=pl.BlockSpec((B, Do), lambda k: (0, 0)),
            scratch_shapes=[pltpu.VMEM((B, Dh), jnp.float32)],
        ),
        compiler_params=pltpu.CompilerParams(
            dimension_semantics=("arbitrary",)),
    )(x, w1_bf16, b1, w2, b2)


def model_forward(x_nchw, p):
    B = x_nchw.shape[0]
    # conv1 + ReLU + pool1 : (B,3,64,64) -> (B,16,1024)  [== (B,16,32,32) NCHW]
    y = conv3x3_relu_pool(x_nchw, p["w1_t"], p["b1_col"], tile_cols=256)
    y = y.reshape(B, 16, 32, 32)
    # conv2 + ReLU + pool2 : -> (B,32,256)  [== (B,32,16,16) NCHW]
    y = conv3x3_relu_pool(y, p["w2_t"], p["b2_col"], tile_cols=128)
    # Output is already NCHW-flat, so this matches torch's view(-1, 32*16*16).
    feat = y.reshape(B, 32 * 16 * 16)
    return mlp_head(feat, p["fc1_w_bf16"], p["fc1_b"], p["fc2_w"], p["fc2_b"])


# ------------------------- params & pure-JAX reference --------------------- #

def init_params(key):
    ks = jax.random.split(key, 8)
    conv1_w = jax.random.normal(ks[0], (16, 3, 3, 3), jnp.float32) * 0.10  # OIHW
    conv1_b = jax.random.normal(ks[1], (16,), jnp.float32) * 0.10
    conv2_w = jax.random.normal(ks[2], (32, 16, 3, 3), jnp.float32) * 0.05
    conv2_b = jax.random.normal(ks[3], (32,), jnp.float32) * 0.05
    fc1_w = jax.random.normal(ks[4], (32 * 16 * 16, 128), jnp.float32) * 0.02
    fc1_b = jax.random.normal(ks[5], (128,), jnp.float32) * 0.02
    fc2_w = jax.random.normal(ks[6], (128, 2), jnp.float32) * 0.05
    fc2_b = jax.random.normal(ks[7], (2,), jnp.float32) * 0.05

    def to_kmat(w_oihw):  # (O,I,3,3) -> (O, 9*I) with K index = (ky*3+kx)*I + i
        o, i = w_oihw.shape[0], w_oihw.shape[1]
        return jnp.transpose(w_oihw, (0, 2, 3, 1)).reshape(o, 9 * i)

    fc1_w_bf16 = fc1_w.astype(jnp.bfloat16)

    return {
        # reference-side (PyTorch layouts); fc1 uses the bf16-rounded weights
        # so the kernel/reference delta only measures accumulation error.
        "conv1_w": conv1_w, "conv1_b": conv1_b,
        "conv2_w": conv2_w, "conv2_b": conv2_b,
        "fc1_w": fc1_w_bf16.astype(jnp.float32), "fc1_b": fc1_b.reshape(1, -1),
        "fc2_w": fc2_w, "fc2_b": fc2_b.reshape(1, -1),
        # kernel-side layouts
        "w1_t": to_kmat(conv1_w), "b1_col": conv1_b.reshape(-1, 1),
        "w2_t": to_kmat(conv2_w), "b2_col": conv2_b.reshape(-1, 1),
        "fc1_w_bf16": fc1_w_bf16,
    }


def reference_forward(x_nchw, p):
    hp = lax.Precision.HIGHEST

    def conv(x, w, b):
        y = lax.conv_general_dilated(
            x, w, window_strides=(1, 1), padding="SAME",
            dimension_numbers=("NCHW", "OIHW", "NCHW"), precision=hp)
        return jnp.maximum(y + b[None, :, None, None], 0.0)

    def pool(x):
        return lax.reduce_window(x, -jnp.inf, lax.max,
                                 (1, 1, 2, 2), (1, 1, 2, 2), "VALID")

    x = pool(conv(x_nchw, p["conv1_w"], p["conv1_b"]))
    x = pool(conv(x, p["conv2_w"], p["conv2_b"]))
    x = x.reshape(x.shape[0], -1)
    h = jnp.maximum(jnp.dot(x, p["fc1_w"], precision=hp) + p["fc1_b"], 0.0)
    return jnp.dot(h, p["fc2_w"], precision=hp) + p["fc2_b"]


# ----------------------------------- main ----------------------------------- #

if __name__ == "__main__":
    key = jax.random.PRNGKey(0)
    pkey, xkey = jax.random.split(key)
    params = init_params(pkey)
    # fc1 expects 32*16*16 features -> input spatial must be 64x64 (two 2x pools).
    x = jax.random.normal(xkey, (2, 3, 64, 64), jnp.float32)

    fwd = jax.jit(functools.partial(model_forward, p=params))
    out = jax.block_until_ready(fwd(x))
    ref = jax.block_until_ready(reference_forward(x, params))

    assert out.shape == (2, 2), out.shape
    assert jnp.allclose(out, ref, rtol=5e-2, atol=5e-2), (out, ref)
    print("KERNEL_OK")
</pallas_src>

<mosaic_0001>
module attributes {stable_mosaic.version = 11 : i64} {
  func.func @conv3x3_relu_pool_kernel(%arg0: i32, %arg1: i32, %arg2: memref<1x4x27x256xf32, #tpu.memory_space<vmem>>, %arg3: memref<16x27xf32, #tpu.memory_space<vmem>>, %arg4: memref<16x1xf32, #tpu.memory_space<vmem>>, %arg5: memref<1x16x256xf32, #tpu.memory_space<vmem>>) attributes {dimension_semantics = [#tpu.dimension_semantics<parallel>, #tpu.dimension_semantics<parallel>], iteration_bounds = array<i64: 2, 4>, scalar_prefetch = 0 : i64, scratch_operands = 0 : i64, tpu.core_type = #tpu.core_type<tc>, window_params = [{transform_indices = @transform_0, window_bounds = array<i64: 1, 4, 27, 256>}, {pipeline_mode = #tpu.pipeline_mode<synchronous>, transform_indices = @transform_1, window_bounds = array<i64: 16, 27>}, {pipeline_mode = #tpu.pipeline_mode<synchronous>, transform_indices = @transform_2, window_bounds = array<i64: 16, 1>}, {transform_indices = @transform_3, window_bounds = array<i64: 1, 16, 256>}]} {
    %c0 = arith.constant 0 : index
    %c0_0 = arith.constant 0 : index
    %0 = vector.load %arg3[%c0, %c0_0] : memref<16x27xf32, #tpu.memory_space<vmem>>, vector<16x27xf32>
    %c0_1 = arith.constant 0 : index
    %c0_2 = arith.constant 0 : index
    %c0_3 = arith.constant 0 : index
    %c0_4 = arith.constant 0 : index
    %1 = vector.load %arg2[%c0_1, %c0_2, %c0_3, %c0_4] : memref<1x4x27x256xf32, #tpu.memory_space<vmem>>, vector<1x1x27x256xf32>
    %2 = vector.shape_cast %1 : vector<1x1x27x256xf32> to vector<27x256xf32>
    %cst = arith.constant dense<0.000000e+00> : vector<16x256xf32>
    %3 = tpu.matmul %0, %2, %cst {dimension_numbers = #tpu.dot_dimension_numbers<[1], [0], [0], [1], [0, 0, 1, 1], [], []>} : vector<16x27xf32>, vector<27x256xf32>, vector<16x256xf32> -> vector<16x256xf32>
    %c0_5 = arith.constant 0 : index
    %c1 = arith.constant 1 : index
    %c0_6 = arith.constant 0 : index
    %c0_7 = arith.constant 0 : index
    %4 = vector.load %arg2[%c0_5, %c1, %c0_6, %c0_7] : memref<1x4x27x256xf32, #tpu.memory_space<vmem>>, vector<1x1x27x256xf32>
    %5 = vector.shape_cast %4 : vector<1x1x27x256xf32> to vector<27x256xf32>
    %cst_8 = arith.constant dense<0.000000e+00> : vector<16x256xf32>
    %6 = tpu.matmul %0, %5, %cst_8 {dimension_numbers = #tpu.dot_dimension_numbers<[1], [0], [0], [1], [0, 0, 1, 1], [], []>} : vector<16x27xf32>, vector<27x256xf32>, vector<16x256xf32> -> vector<16x256xf32>
    %7 = arith.maximumf %3, %6 : vector<16x256xf32>
    %c0_9 = arith.constant 0 : index
    %c2 = arith.constant 2 : index
    %c0_10 = arith.constant 0 : index
    %c0_11 = arith.constant 0 : index
    %8 = vector.load %arg2[%c0_9, %c2, %c0_10, %c0_11] : memref<1x4x27x256xf32, #tpu.memory_space<vmem>>, vector<1x1x27x256xf32>
    %9 = vector.shape_cast %8 : vector<1x1x27x256xf32> to vector<27x256xf32>
    %cst_12 = arith.constant dense<0.000000e+00> : vector<16x256xf32>
    %10 = tpu.matmul %0, %9, %cst_12 {dimension_numbers = #tpu.dot_dimension_numbers<[1], [0], [0], [1], [0, 0, 1, 1], [], []>} : vector<16x27xf32>, vector<27x256xf32>, vector<16x256xf32> -> vector<16x256xf32>
    %11 = arith.maximumf %7, %10 : vector<16x256xf32>
    %c0_13 = arith.constant 0 : index
    %c3 = arith.constant 3 : index
    %c0_14 = arith.constant 0 : index
    %c0_15 = arith.constant 0 : index
    %12 = vector.load %arg2[%c0_13, %c3, %c0_14, %c0_15] : memref<1x4x27x256xf32, #tpu.memory_space<vmem>>, vector<1x1x27x256xf32>
    %13 = vector.shape_cast %12 : vector<1x1x27x256xf32> to vector<27x256xf32>
    %cst_16 = arith.constant dense<0.000000e+00> : vector<16x256xf32>
    %14 = tpu.matmul %0, %13, %cst_16 {dimension_numbers = #tpu.dot_dimension_numbers<[1], [0], [0], [1], [0, 0, 1, 1], [], []>} : vector<16x27xf32>, vector<27x256xf32>, vector<16x256xf32> -> vector<16x256xf32>
    %15 = arith.maximumf %11, %14 : vector<16x256xf32>
    %c0_17 = arith.constant 0 : index
    %c0_18 = arith.constant 0 : index
    %16 = vector.load %arg4[%c0_17, %c0_18] : memref<16x1xf32, #tpu.memory_space<vmem>>, vector<16x1xf32>
    %17 = vector.broadcast %16 : vector<16x1xf32> to vector<16x256xf32>
    %18 = arith.addf %15, %17 : vector<16x256xf32>
    %cst_19 = arith.constant 0.000000e+00 : f32
    %19 = vector.broadcast %cst_19 : f32 to vector<16x256xf32>
    %20 = arith.maximumf %18, %19 : vector<16x256xf32>
    %c0_20 = arith.constant 0 : index
    %c0_21 = arith.constant 0 : index
    %c0_22 = arith.constant 0 : index
    %21 = vector.load %arg5[%c0_20, %c0_21, %c0_22] : memref<1x16x256xf32, #tpu.memory_space<vmem>>, vector<1x16x256xf32>
    %22 = vector.shape_cast %21 : vector<1x16x256xf32> to vector<16x256xf32>
    %23 = vector.shape_cast %20 : vector<16x256xf32> to vector<1x16x256xf32>
    tpu.vector_store %arg5[%c0_20, %c0_21, %c0_22], %23 {strides = array<i32>} : memref<1x16x256xf32, #tpu.memory_space<vmem>>, vector<1x16x256xf32>,
    return
  }
  func.func @transform_0(%arg0: i32, %arg1: i32) -> (i32, i32, i32, i32) {
    %c0_i32 = arith.constant 0 : i32
    %c0_i32_0 = arith.constant 0 : i32
    %c0_i32_1 = arith.constant 0 : i32
    return %arg0, %c0_i32, %c0_i32_0, %arg1 : i32, i32, i32, i32
  }
  func.func @transform_1(%arg0: i32, %arg1: i32) -> (i32, i32) {
    %c0_i32 = arith.constant 0 : i32
    %c0_i32_0 = arith.constant 0 : i32
    %c0_i32_1 = arith.constant 0 : i32
    return %c0_i32, %c0_i32_0 : i32, i32
  }
  func.func @transform_2(%arg0: i32, %arg1: i32) -> (i32, i32) {
    %c0_i32 = arith.constant 0 : i32
    %c0_i32_0 = arith.constant 0 : i32
    %c0_i32_1 = arith.constant 0 : i32
    return %c0_i32, %c0_i32_0 : i32, i32
  }
  func.func @transform_3(%arg0: i32, %arg1: i32) -> (i32, i32, i32) {
    %c0_i32 = arith.constant 0 : i32
    %c0_i32_0 = arith.constant 0 : i32
    return %arg0, %c0_i32, %arg1 : i32, i32, i32
  }
}

module attributes {stable_mosaic.version = 11 : i64} {
  func.func @conv3x3_relu_pool_kernel(%arg0: i32, %arg1: i32, %arg2: memref<1x4x144x128xf32, #tpu.memory_space<vmem>>, %arg3: memref<32x144xf32, #tpu.memory_space<vmem>>, %arg4: memref<32x1xf32, #tpu.memory_space<vmem>>, %arg5: memref<1x32x128xf32, #tpu.memory_space<vmem>>) attributes {dimension_semantics = [#tpu.dimension_semantics<parallel>, #tpu.dimension_semantics<parallel>], iteration_bounds = array<i64: 2, 2>, scalar_prefetch = 0 : i64, scratch_operands = 0 : i64, tpu.core_type = #tpu.core_type<tc>, window_params = [{transform_indices = @transform_0, window_bounds = array<i64: 1, 4, 144, 128>}, {pipeline_mode = #tpu.pipeline_mode<synchronous>, transform_indices = @transform_1, window_bounds = array<i64: 32, 144>}, {pipeline_mode = #tpu.pipeline_mode<synchronous>, transform_indices = @transform_2, window_bounds = array<i64: 32, 1>}, {transform_indices = @transform_3, window_bounds = array<i64: 1, 32, 128>}]} {
    %c0 = arith.constant 0 : index
    %c0_0 = arith.constant 0 : index
    %0 = vector.load %arg3[%c0, %c0_0] : memref<32x144xf32, #tpu.memory_space<vmem>>, vector<32x144xf32>
    %c0_1 = arith.constant 0 : index
    %c0_2 = arith.constant 0 : index
    %c0_3 = arith.constant 0 : index
    %c0_4 = arith.constant 0 : index
    %1 = vector.load %arg2[%c0_1, %c0_2, %c0_3, %c0_4] : memref<1x4x144x128xf32, #tpu.memory_space<vmem>>, vector<1x1x144x128xf32>
    %2 = vector.shape_cast %1 : vector<1x1x144x128xf32> to vector<144x128xf32>
    %cst = arith.constant dense<0.000000e+00> : vector<32x128xf32>
    %3 = tpu.matmul %0, %2, %cst {dimension_numbers = #tpu.dot_dimension_numbers<[1], [0], [0], [1], [0, 0, 1, 1], [], []>} : vector<32x144xf32>, vector<144x128xf32>, vector<32x128xf32> -> vector<32x128xf32>
    %c0_5 = arith.constant 0 : index
    %c1 = arith.constant 1 : index
    %c0_6 = arith.constant 0 : index
    %c0_7 = arith.constant 0 : index
    %4 = vector.load %arg2[%c0_5, %c1, %c0_6, %c0_7] : memref<1x4x144x128xf32, #tpu.memory_space<vmem>>, vector<1x1x144x128xf32>
    %5 = vector.shape_cast %4 : vector<1x1x144x128xf32> to vector<144x128xf32>
    %cst_8 = arith.constant dense<0.000000e+00> : vector<32x128xf32>
    %6 = tpu.matmul %0, %5, %cst_8 {dimension_numbers = #tpu.dot_dimension_numbers<[1], [0], [0], [1], [0, 0, 1, 1], [], []>} : vector<32x144xf32>, vector<144x128xf32>, vector<32x128xf32> -> vector<32x128xf32>
    %7 = arith.maximumf %3, %6 : vector<32x128xf32>
    %c0_9 = arith.constant 0 : index
    %c2 = arith.constant 2 : index
    %c0_10 = arith.constant 0 : index
    %c0_11 = arith.constant 0 : index
    %8 = vector.load %arg2[%c0_9, %c2, %c0_10, %c0_11] : memref<1x4x144x128xf32, #tpu.memory_space<vmem>>, vector<1x1x144x128xf32>
    %9 = vector.shape_cast %8 : vector<1x1x144x128xf32> to vector<144x128xf32>
    %cst_12 = arith.constant dense<0.000000e+00> : vector<32x128xf32>
    %10 = tpu.matmul %0, %9, %cst_12 {dimension_numbers = #tpu.dot_dimension_numbers<[1], [0], [0], [1], [0, 0, 1, 1], [], []>} : vector<32x144xf32>, vector<144x128xf32>, vector<32x128xf32> -> vector<32x128xf32>
    %11 = arith.maximumf %7, %10 : vector<32x128xf32>
    %c0_13 = arith.constant 0 : index
    %c3 = arith.constant 3 : index
    %c0_14 = arith.constant 0 : index
    %c0_15 = arith.constant 0 : index
    %12 = vector.load %arg2[%c0_13, %c3, %c0_14, %c0_15] : memref<1x4x144x128xf32, #tpu.memory_space<vmem>>, vector<1x1x144x128xf32>
    %13 = vector.shape_cast %12 : vector<1x1x144x128xf32> to vector<144x128xf32>
    %cst_16 = arith.constant dense<0.000000e+00> : vector<32x128xf32>
    %14 = tpu.matmul %0, %13, %cst_16 {dimension_numbers = #tpu.dot_dimension_numbers<[1], [0], [0], [1], [0, 0, 1, 1], [], []>} : vector<32x144xf32>, vector<144x128xf32>, vector<32x128xf32> -> vector<32x128xf32>
    %15 = arith.maximumf %11, %14 : vector<32x128xf32>
    %c0_17 = arith.constant 0 : index
    %c0_18 = arith.constant 0 : index
    %16 = vector.load %arg4[%c0_17, %c0_18] : memref<32x1xf32, #tpu.memory_space<vmem>>, vector<32x1xf32>
    %17 = vector.broadcast %16 : vector<32x1xf32> to vector<32x128xf32>
    %18 = arith.addf %15, %17 : vector<32x128xf32>
    %cst_19 = arith.constant 0.000000e+00 : f32
    %19 = vector.broadcast %cst_19 : f32 to vector<32x128xf32>
    %20 = arith.maximumf %18, %19 : vector<32x128xf32>
    %c0_20 = arith.constant 0 : index
    %c0_21 = arith.constant 0 : index
    %c0_22 = arith.constant 0 : index
    %21 = vector.load %arg5[%c0_20, %c0_21, %c0_22] : memref<1x32x128xf32, #tpu.memory_space<vmem>>, vector<1x32x128xf32>
    %22 = vector.shape_cast %21 : vector<1x32x128xf32> to vector<32x128xf32>
    %23 = vector.shape_cast %20 : vector<32x128xf32> to vector<1x32x128xf32>
    tpu.vector_store %arg5[%c0_20, %c0_21, %c0_22], %23 {strides = array<i32>} : memref<1x32x128xf32, #tpu.memory_space<vmem>>, vector<1x32x128xf32>,
    return
  }
  func.func @transform_0(%arg0: i32, %arg1: i32) -> (i32, i32, i32, i32) {
    %c0_i32 = arith.constant 0 : i32
    %c0_i32_0 = arith.constant 0 : i32
    %c0_i32_1 = arith.constant 0 : i32
    return %arg0, %c0_i32, %c0_i32_0, %arg1 : i32, i32, i32, i32
  }
  func.func @transform_1(%arg0: i32, %arg1: i32) -> (i32, i32) {
    %c0_i32 = arith.constant 0 : i32
    %c0_i32_0 = arith.constant 0 : i32
    %c0_i32_1 = arith.constant 0 : i32
    return %c0_i32, %c0_i32_0 : i32, i32
  }
  func.func @transform_2(%arg0: i32, %arg1: i32) -> (i32, i32) {
    %c0_i32 = arith.constant 0 : i32
    %c0_i32_0 = arith.constant 0 : i32
    %c0_i32_1 = arith.constant 0 : i32
    return %c0_i32, %c0_i32_0 : i32, i32
  }
  func.func @transform_3(%arg0: i32, %arg1: i32) -> (i32, i32, i32) {
    %c0_i32 = arith.constant 0 : i32
    %c0_i32_0 = arith.constant 0 : i32
    return %arg0, %c0_i32, %arg1 : i32, i32, i32
  }
}

module attributes {stable_mosaic.version = 11 : i64} {
  func.func @mlp_head_kernel(%arg0: i32, %arg1: memref<2x2048xf32, #tpu.memory_space<vmem>>, %arg2: memref<2048x128xbf16, #tpu.memory_space<vmem>>, %arg3: memref<1x128xf32, #tpu.memory_space<vmem>>, %arg4: memref<128x2xf32, #tpu.memory_space<vmem>>, %arg5: memref<1x2xf32, #tpu.memory_space<vmem>>, %arg6: memref<2x2xf32, #tpu.memory_space<vmem>>, %arg7: memref<2x128xf32, #tpu.memory_space<vmem>>) attributes {dimension_semantics = [#tpu.dimension_semantics<arbitrary>], iteration_bounds = array<i64: 4>, scalar_prefetch = 0 : i64, scratch_operands = 1 : i64, tpu.core_type = #tpu.core_type<tc>, window_params = [{transform_indices = @transform_0, window_bounds = array<i64: 2, 2048>}, {transform_indices = @transform_1, window_bounds = array<i64: 2048, 128>}, {pipeline_mode = #tpu.pipeline_mode<synchronous>, transform_indices = @transform_2, window_bounds = array<i64: 1, 128>}, {pipeline_mode = #tpu.pipeline_mode<synchronous>, transform_indices = @transform_3, window_bounds = array<i64: 128, 2>}, {pipeline_mode = #tpu.pipeline_mode<synchronous>, transform_indices = @transform_4, window_bounds = array<i64: 1, 2>}, {pipeline_mode = #tpu.pipeline_mode<synchronous>, transform_indices = @transform_5, window_bounds = array<i64: 2, 2>}]} {
    %c0_i32 = arith.constant 0 : i32
    %0 = arith.cmpi eq, %arg0, %c0_i32 : i32
    %1 = arith.extui %0 : i1 to i32
    %c0_i32_0 = arith.constant 0 : i32
    %2 = arith.cmpi ne, %1, %c0_i32_0 : i32
    scf.if %2 {
      %cst_9 = arith.constant 0.000000e+00 : f32
      %13 = vector.broadcast %cst_9 : f32 to vector<2x128xf32>
      %c0_10 = arith.constant 0 : index
      %c0_11 = arith.constant 0 : index
      %14 = vector.load %arg7[%c0_10, %c0_11] : memref<2x128xf32, #tpu.memory_space<vmem>>, vector<2x128xf32>
      tpu.vector_store %arg7[%c0_10, %c0_11], %13 {strides = array<i32>} : memref<2x128xf32, #tpu.memory_space<vmem>>, vector<2x128xf32>,
    } else {
    }
    %c0 = arith.constant 0 : index
    %c0_1 = arith.constant 0 : index
    %3 = vector.load %arg7[%c0, %c0_1] : memref<2x128xf32, #tpu.memory_space<vmem>>, vector<2x128xf32>
    %c0_2 = arith.constant 0 : index
    %c0_3 = arith.constant 0 : index
    %4 = vector.load %arg1[%c0_2, %c0_3] : memref<2x2048xf32, #tpu.memory_space<vmem>>, vector<2x2048xf32>
    %5 = arith.truncf %4 : vector<2x2048xf32> to vector<2x2048xbf16>
    %c0_4 = arith.constant 0 : index
    %c0_5 = arith.constant 0 : index
    %6 = vector.load %arg2[%c0_4, %c0_5] : memref<2048x128xbf16, #tpu.memory_space<vmem>>, vector<2048x128xbf16>
    %cst = arith.constant dense<0.000000e+00> : vector<2x128xf32>
    %7 = tpu.matmul %5, %6, %cst {dimension_numbers = #tpu.dot_dimension_numbers<[1], [0], [0], [1], [0, 0, 1, 1], [], []>} : vector<2x2048xbf16>, vector<2048x128xbf16>, vector<2x128xf32> -> vector<2x128xf32>
    %8 = arith.addf %3, %7 : vector<2x128xf32>
    %c0_6 = arith.constant 0 : index
    %c0_7 = arith.constant 0 : index
    %9 = vector.load %arg7[%c0_6, %c0_7] : memref<2x128xf32, #tpu.memory_space<vmem>>, vector<2x128xf32>
    tpu.vector_store %arg7[%c0_6, %c0_7], %8 {strides = array<i32>} : memref<2x128xf32, #tpu.memory_space<vmem>>, vector<2x128xf32>,
    %c3_i32 = arith.constant 3 : i32
    %10 = arith.cmpi eq, %arg0, %c3_i32 : i32
    %11 = arith.extui %10 : i1 to i32
    %c0_i32_8 = arith.constant 0 : i32
    %12 = arith.cmpi ne, %11, %c0_i32_8 : i32
    scf.if %12 {
      %c0_9 = arith.constant 0 : index
      %c0_10 = arith.constant 0 : index
      %13 = vector.load %arg7[%c0_9, %c0_10] : memref<2x128xf32, #tpu.memory_space<vmem>>, vector<2x128xf32>
      %c0_11 = arith.constant 0 : index
      %c0_12 = arith.constant 0 : index
      %14 = vector.load %arg3[%c0_11, %c0_12] : memref<1x128xf32, #tpu.memory_space<vmem>>, vector<1x128xf32>
      %15 = vector.broadcast %14 : vector<1x128xf32> to vector<2x128xf32>
      %16 = arith.addf %13, %15 : vector<2x128xf32>
      %cst_13 = arith.constant 0.000000e+00 : f32
      %17 = vector.broadcast %cst_13 : f32 to vector<2x128xf32>
      %18 = arith.maximumf %16, %17 : vector<2x128xf32>
      %c0_14 = arith.constant 0 : index
      %c0_15 = arith.constant 0 : index
      %19 = vector.load %arg4[%c0_14, %c0_15] : memref<128x2xf32, #tpu.memory_space<vmem>>, vector<128x2xf32>
      %cst_16 = arith.constant dense<0.000000e+00> : vector<2x2xf32>
      %20 = tpu.matmul %18, %19, %cst_16 {dimension_numbers = #tpu.dot_dimension_numbers<[1], [0], [0], [1], [0, 0, 1, 1], [], []>} : vector<2x128xf32>, vector<128x2xf32>, vector<2x2xf32> -> vector<2x2xf32>
      %c0_17 = arith.constant 0 : index
      %c0_18 = arith.constant 0 : index
      %21 = vector.load %arg5[%c0_17, %c0_18] : memref<1x2xf32, #tpu.memory_space<vmem>>, vector<1x2xf32>
      %22 = vector.broadcast %21 : vector<1x2xf32> to vector<2x2xf32>
      %23 = arith.addf %20, %22 : vector<2x2xf32>
      %c0_19 = arith.constant 0 : index
      %c0_20 = arith.constant 0 : index
      %24 = vector.load %arg6[%c0_19, %c0_20] : memref<2x2xf32, #tpu.memory_space<vmem>>, vector<2x2xf32>
      tpu.vector_store %arg6[%c0_19, %c0_20], %23 {strides = array<i32>} : memref<2x2xf32, #tpu.memory_space<vmem>>, vector<2x2xf32>,
    } else {
    }
    return
  }
  func.func @transform_0(%arg0: i32) -> (i32, i32) {
    %c0_i32 = arith.constant 0 : i32
    %c0_i32_0 = arith.constant 0 : i32
    return %c0_i32, %arg0 : i32, i32
  }
  func.func @transform_1(%arg0: i32) -> (i32, i32) {
    %c0_i32 = arith.constant 0 : i32
    %c0_i32_0 = arith.constant 0 : i32
    return %arg0, %c0_i32 : i32, i32
  }
  func.func @transform_2(%arg0: i32) -> (i32, i32) {
    %c0_i32 = arith.constant 0 : i32
    %c0_i32_0 = arith.constant 0 : i32
    %c0_i32_1 = arith.constant 0 : i32
    return %c0_i32, %c0_i32_0 : i32, i32
  }
  func.func @transform_3(%arg0: i32) -> (i32, i32) {
    %c0_i32 = arith.constant 0 : i32
    %c0_i32_0 = arith.constant 0 : i32
    %c0_i32_1 = arith.constant 0 : i32
    return %c0_i32, %c0_i32_0 : i32, i32
  }
  func.func @transform_4(%arg0: i32) -> (i32, i32) {
    %c0_i32 = arith.constant 0 : i32
    %c0_i32_0 = arith.constant 0 : i32
    %c0_i32_1 = arith.constant 0 : i32
    return %c0_i32, %c0_i32_0 : i32, i32
  }
  func.func @transform_5(%arg0: i32) -> (i32, i32) {
    %c0_i32 = arith.constant 0 : i32
    %c0_i32_0 = arith.constant 0 : i32
    %c0_i32_1 = arith.constant 0 : i32
    return %c0_i32, %c0_i32_0 : i32, i32
  }
}

</mosaic_0001>

<llo_original>
// kernel: model_forward.3
$region0: #{model_forward.3}
  #allocation0 [shape = 'u32[]', space=smem, size = 0x4, offset = 0x4, fixed_abs, tag = 'smem constant byte address 0x4 - core index']
  #allocation1 [shape = 'u32[144,128]{1,0:T(1,128)}', space=vmem, size = 0x12000, scoped, tag = 'internal scratch']
  %s0 = inlined_call_operand.vmem [shape: f32[2,4,27,1024], index: 0, kind: input, shape index: {}]
  %s1 = inlined_call_operand.vmem [shape: f32[16,27], index: 1, kind: input, shape index: {}]
  %s2 = inlined_call_operand.vmem [shape: f32[16,1], index: 2, kind: input, shape index: {}]
  %s3 = inlined_call_operand.vmem [shape: f32[2,16,1024], index: 3, kind: output, shape index: {}]
  %s4 = sld [smem:[#allocation0]]
  $region87: #{model_forward.3} parent=0
    _
  %s6 = ssub.s32 1, %s4
  %s7 = scalar_select 0, %s6, %s4
  $region1: #{model_forward.3} parent=0
    #allocation2 [shape = 'u8[262144]{0}', space=vmem, size = 0x40000, scoped, tag = 'input window, operand 0']
    #allocation3 [shape = 'u8[32768]{0}', space=vmem, size = 0x8000, scoped, tag = 'output window, operand 0']
    loop: start=0, step=1, limit=10
    $region2: #{model_forward.3} parent=1 // loop_pre_header
      _
    $region3: #{model_forward.3} parent=1 // loop_header
      %s9 = sphi 0, %s13
      %p10 = scmp.ge.s32.totalorder %s9, 10
      %s16 = sphi 0, %s28
      %s17 = sphi 0, %s24
      %s18 = sphi 0, %s16
      %s19 = sphi 0, %s17
      %s20 = sphi 0, %s18
      %s21 = sphi 0, %s19
      %s33 = sphi 0, %s35
      %s36 = sphi 0, %s33
      %s37 = sphi 0, %s36
      %s53 = sphi 0, %s37
      %s57 = sphi 0, %s57
      %s59 = sphi 0, %s57
      %s60 = sphi 0, %s59
      %s74 = sphi 0, %s60
      %s78 = sphi 0, %s78
      %s80 = sphi 0, %s78
      %s81 = sphi 0, %s80
      %s95 = sphi 0, %s81
      %s103 = sphi 0, %s105
      %s106 = sphi 0, %s103
      %s107 = sphi 0, %s106
      %s123 = sphi 0, %s107
    $region4: #{model_forward.3} parent=1 // loop_header_branch
      %12 = sbr.rel (%p10) target = $region8
    $region5: #{model_forward.3} parent=1 // loop_body
      %s14 = ssub.s32 %s9, 1
      %s15 = ssub.s32 %s9, 2
      %s22 = sadd.s32 1, %s17
      %p23 = scmp.ge.s32.totalorder %s22, 4
      %s24 = scalar_select %p23, 0, %s22
      %s25 = sadd.s32 1, %s16
      %s26 = scalar_select %p23, %s25, %s16
      %p27 = scmp.ge.s32.totalorder %s26, 2
      %s28 = scalar_select %p27, 0, %s26
      %s29 = ssub.s32 %s16, %s28
      %s30 = ssub.s32 %s17, %s24
      %s31 = sor.u32 %s29, %s30
      %p32 = scmp.eq.s32.totalorder %s31, 0
      %s34 = sadd.s32 %s33, 1
      %s35 = scalar_select %p32, %s33, %s34
      %p38 = pneg %p32
      %p39 = scmp.eq.s32.totalorder %s9, 7
      %p40 = por %p38, %p39
      %p41 = scmp.ne.s32.totalorder %s33, %s36
      %p42 = scmp.eq.s32.totalorder %s9, 0
      %p43 = por %p41, %p42
      %p44 = scmp.ne.s32.totalorder %s33, %s36
      %p45 = scmp.eq.s32.totalorder %s14, 7
      %p46 = por %p44, %p45
      %p47 = scmp.ne.s32.totalorder %s36, %s37
      %p48 = scmp.eq.s32.totalorder %s14, 0
      %p49 = por %p47, %p48
      %p50 = scmp.ne.s32.totalorder %s36, %s37
      %p51 = scmp.eq.s32.totalorder %s15, 7
      %p52 = por %p50, %p51
      %p54 = scmp.ne.s32.totalorder %s37, %s53
      %p55 = scmp.eq.s32.totalorder %s15, 0
      %p56 = por %p54, %p55
      %s58 = sadd.s32 %s57, 1
      %p61 = scmp.eq.s32.totalorder %s9, 7
      %p62 = scmp.ne.s32.totalorder %s57, %s59
      %p63 = scmp.eq.s32.totalorder %s9, 0
      %p64 = por %p62, %p63
      %p65 = scmp.ne.s32.totalorder %s57, %s59
      %p66 = scmp.eq.s32.totalorder %s14, 7
      %p67 = por %p65, %p66
      %p68 = scmp.ne.s32.totalorder %s59, %s60
      %p69 = scmp.eq.s32.totalorder %s14, 0
      %p70 = por %p68, %p69
      %p71 = scmp.ne.s32.totalorder %s59, %s60
      %p72 = scmp.eq.s32.totalorder %s15, 7
      %p73 = por %p71, %p72
      %p75 = scmp.ne.s32.totalorder %s60, %s74
      %p76 = scmp.eq.s32.totalorder %s15, 0
      %p77 = por %p75, %p76
      %s79 = sadd.s32 %s78, 1
      %p82 = scmp.eq.s32.totalorder %s9, 7
      %p83 = scmp.ne.s32.totalorder %s78, %s80
      %p84 = scmp.eq.s32.totalorder %s9, 0
      %p85 = por %p83, %p84
      %p86 = scmp.ne.s32.totalorder %s78, %s80
      %p87 = scmp.eq.s32.totalorder %s14, 7
      %p88 = por %p86, %p87
      %p89 = scmp.ne.s32.totalorder %s80, %s81
      %p90 = scmp.eq.s32.totalorder %s14, 0
      %p91 = por %p89, %p90
      %p92 = scmp.ne.s32.totalorder %s80, %s81
      %p93 = scmp.eq.s32.totalorder %s15, 7
      %p94 = por %p92, %p93
      %p96 = scmp.ne.s32.totalorder %s81, %s95
      %p97 = scmp.eq.s32.totalorder %s15, 0
      %p98 = por %p96, %p97
      %s99 = ssub.s32 %s16, %s28
      %s100 = ssub.s32 %s17, %s24
      %s101 = sor.u32 %s99, %s100
      %p102 = scmp.eq.s32.totalorder %s101, 0
      %s104 = sadd.s32 %s103, 1
      %s105 = scalar_select %p102, %s103, %s104
      %p108 = pneg %p102
      %p109 = scmp.eq.s32.totalorder %s9, 7
      %p110 = por %p108, %p109
      %p111 = scmp.ne.s32.totalorder %s103, %s106
      %p112 = scmp.eq.s32.totalorder %s9, 0
      %p113 = por %p111, %p112
      %p114 = scmp.ne.s32.totalorder %s103, %s106
      %p115 = scmp.eq.s32.totalorder %s14, 7
      %p116 = por %p114, %p115
      %p117 = scmp.ne.s32.totalorder %s106, %s107
      %p118 = scmp.eq.s32.totalorder %s14, 0
      %p119 = por %p117, %p118
      %p120 = scmp.ne.s32.totalorder %s106, %s107
      %p121 = scmp.eq.s32.totalorder %s15, 7
      %p122 = por %p120, %p121
      %p124 = scmp.ne.s32.totalorder %s107, %s123
      %p125 = scmp.eq.s32.totalorder %s15, 0
      %p126 = por %p124, %p125
      %p127 = scmp.le.s32.totalorder 1, %s9
      %p128 = scmp.lt.s32.totalorder %s9, 9
      %p129 = pnand %p127, %p128
      %p130 = pneg %p129
      // Predicated region
      $region9: #{model_forward.3} parent=5 // pred_check
        _
      $region10: #{model_forward.3} parent=5 // pred_check_branch
        %132 = sbr.rel (%p129) target = $region12
      $region11: #{model_forward.3} parent=5 // pred_region
        %s133 = ssub.s32 %s9, 1
        // Predicated region
        $region13: #{model_forward.3} parent=11 // pred_check
          %p134 = pneg %p70
        $region14: #{model_forward.3} parent=11 // pred_check_branch
          %136 = sbr.rel (%p134) target = $region16
        $region15: #{model_forward.3} parent=11 // pred_region
          _
        $region16: #{model_forward.3} parent=11 // pred_fallthru
          _
        // Predicated region
        $region17: #{model_forward.3} parent=11 // pred_check
          %p137 = pneg %p91
        $region18: #{model_forward.3} parent=11 // pred_check_branch
          %139 = sbr.rel (%p137) target = $region20
        $region19: #{model_forward.3} parent=11 // pred_region
          _
        $region20: #{model_forward.3} parent=11 // pred_fallthru
          _
      $region12: #{model_forward.3} parent=5 // pred_fallthru
        _
      %p140 = scmp.lt.s32.totalorder %s9, 8
      // Predicated region
      $region21: #{model_forward.3} parent=5 // pred_check
        %p141 = pneg %p140
      $region22: #{model_forward.3} parent=5 // pred_check_branch
        %143 = sbr.rel (%p141) target = $region24
      $region23: #{model_forward.3} parent=5 // pred_region
        // Predicated region
        $region25: #{model_forward.3} parent=23 // pred_check
          %p144 = pneg %p43
        $region26: #{model_forward.3} parent=23 // pred_check_branch
          %146 = sbr.rel (%p144) target = $region28
        $region27: #{model_forward.3} parent=23 // pred_region
          %s147 = sand.u32 %s33, 1
          %s148 = sand.u32 %s33, 1
          %s149 = smul.addr %s148, 256
          %s150 = scalar_lea.vmem [#allocation2], %s149
          %s151 = smul.u32 2, %s17
          %s152 = smul.addr %s16, 128
          %s153 = sadd.s32 %s151, %s152
          %s154 = smul.addr %s153, 8
          %s155 = scalar_lea.vmem %s0, %s154
          // Predicated region
          $region29: #{model_forward.3} parent=27 // pred_check
            _
          $region30: #{model_forward.3} parent=27 // pred_check_branch
            %157 = sbr.rel (0) target = $region32
          $region31: #{model_forward.3} parent=27 // pred_region
            // Predicated region
            $region33: #{model_forward.3} parent=31 // pred_check
              _
            $region34: #{model_forward.3} parent=31 // pred_check_branch
              %159 = sbr.rel (0) target = $region36
            $region35: #{model_forward.3} parent=31 // pred_region
              loop: start=0, step=1, limit=1
              $region37: #{model_forward.3} parent=35 // loop_pre_header
                _
              $region38: #{model_forward.3} parent=35 // loop_header
                %s161 = sphi 0, %s165
                %p162 = scmp.ge.s32.totalorder %s161, 1
                %s166 = sphi %s155, %s155
                %s167 = sphi %s150, %s150
              $region39: #{model_forward.3} parent=35 // loop_header_branch
                %164 = sbr.rel (%p162) target = $region43
              $region40: #{model_forward.3} parent=35 // loop_body
                %v168 = vld [vmem:[%s166] sm:$0xff]
                %169 = vst [vmem:[%s167] sm:$0xff] %v168
                %v170 = vld [vmem:[%s166 + $0x8] sm:$0xff]
                %171 = vst [vmem:[%s167 + $0x8] sm:$0xff] %v170
                %v172 = vld [vmem:[%s166 + $0x40] sm:$0xff]
                %173 = vst [vmem:[%s167 + $0x10] sm:$0xff] %v172
                %v174 = vld [vmem:[%s166 + $0x48] sm:$0xff]
                %175 = vst [vmem:[%s167 + $0x18] sm:$0xff] %v174
                %v176 = vld [vmem:[%s166 + $0x80] sm:$0xff]
                %177 = vst [vmem:[%s167 + $0x20] sm:$0xff] %v176
                %v178 = vld [vmem:[%s166 + $0x88] sm:$0xff]
                %179 = vst [vmem:[%s167 + $0x28] sm:$0xff] %v178
                %v180 = vld [vmem:[%s166 + $0xc0] sm:$0xff]
                %181 = vst [vmem:[%s167 + $0x30] sm:$0xff] %v180
                %v182 = vld [vmem:[%s166 + $0xc8] sm:$0xff]
                %183 = vst [vmem:[%s167 + $0x38] sm:$0xff] %v182
                %v184 = vld [vmem:[%s166 + $0x100] sm:$0xff]
                %185 = vst [vmem:[%s167 + $0x40] sm:$0xff] %v184
                %v186 = vld [vmem:[%s166 + $0x108] sm:$0xff]
                %187 = vst [vmem:[%s167 + $0x48] sm:$0xff] %v186
                %v188 = vld [vmem:[%s166 + $0x140] sm:$0xff]
                %189 = vst [vmem:[%s167 + $0x50] sm:$0xff] %v188
                %v190 = vld [vmem:[%s166 + $0x148] sm:$0xff]
                %191 = vst [vmem:[%s167 + $0x58] sm:$0xff] %v190
                %v192 = vld [vmem:[%s166 + $0x180] sm:$0xff]
                %193 = vst [vmem:[%s167 + $0x60] sm:$0xff] %v192
                %v194 = vld [vmem:[%s166 + $0x188] sm:$0xff]
                %195 = vst [vmem:[%s167 + $0x68] sm:$0xff] %v194
                %v196 = vld [vmem:[%s166 + $0x1c0] sm:$0xff]
                %197 = vst [vmem:[%s167 + $0x70] sm:$0xff] %v196
                %v198 = vld [vmem:[%s166 + $0x1c8] sm:$0xff]
                %199 = vst [vmem:[%s167 + $0x78] sm:$0xff] %v198
                %v200 = vld [vmem:[%s166 + $0x200] sm:$0xff]
                %201 = vst [vmem:[%s167 + $0x80] sm:$0xff] %v200
                %v202 = vld [vmem:[%s166 + $0x208] sm:$0xff]
                %203 = vst [vmem:[%s167 + $0x88] sm:$0xff] %v202
                %v204 = vld [vmem:[%s166 + $0x240] sm:$0xff]
                %205 = vst [vmem:[%s167 + $0x90] sm:$0xff] %v204
                %v206 = vld [vmem:[%s166 + $0x248] sm:$0xff]
                %207 = vst [vmem:[%s167 + $0x98] sm:$0xff] %v206
                %v208 = vld [vmem:[%s166 + $0x280] sm:$0xff]
                %209 = vst [vmem:[%s167 + $0xa0] sm:$0xff] %v208
                %v210 = vld [vmem:[%s166 + $0x288] sm:$0xff]
                %211 = vst [vmem:[%s167 + $0xa8] sm:$0xff] %v210
                %v212 = vld [vmem:[%s166 + $0x2c0] sm:$0xff]
                %213 = vst [vmem:[%s167 + $0xb0] sm:$0xff] %v212
                %v214 = vld [vmem:[%s166 + $0x2c8] sm:$0xff]
                %215 = vst [vmem:[%s167 + $0xb8] sm:$0xff] %v214
                %v216 = vld [vmem:[%s166 + $0x300] sm:$0xff]
                %217 = vst [vmem:[%s167 + $0xc0] sm:$0xff] %v216
                %v218 = vld [vmem:[%s166 + $0x308] sm:$0xff]
                %219 = vst [vmem:[%s167 + $0xc8] sm:$0xff] %v218
                %v220 = vld [vmem:[%s166 + $0x340] sm:$0xff]
                %221 = vst [vmem:[%s167 + $0xd0] sm:$0xff] %v220
                %v222 = vld [vmem:[%s166 + $0x348] sm:$0xff]
                %223 = vst [vmem:[%s167 + $0xd8] sm:$0xff] %v222
                %v224 = vld [vmem:[%s166 + $0x380] sm:$0xff]
                %225 = vst [vmem:[%s167 + $0xe0] sm:$0xff] %v224
                %v226 = vld [vmem:[%s166 + $0x388] sm:$0xff]
                %227 = vst [vmem:[%s167 + $0xe8] sm:$0xff] %v226
                %v228 = vld [vmem:[%s166 + $0x3c0] sm:$0xff]
                %229 = vst [vmem:[%s167 + $0xf0] sm:$0xff] %v228
                %v230 = vld [vmem:[%s166 + $0x3c8] sm:$0xff]
                %231 = vst [vmem:[%s167 + $0xf8] sm:$0xff] %v230
              $region41: #{model_forward.3} parent=35 // loop_footer
                %s165 = sadd.s32 1, %s161
              $region42: #{model_forward.3} parent=35 // loop_footer_branch
                %160 = sbr.rel target = $region38
              $region43: #{model_forward.3} parent=35 // loop_exit
                _
            $region36: #{model_forward.3} parent=31 // pred_fallthru
              _
            // Predicated region
            $region44: #{model_forward.3} parent=31 // pred_check
              _
            $region45: #{model_forward.3} parent=31 // pred_check_branch
              %233 = sbr.rel target = $region47
            $region46: #{model_forward.3} parent=31 // pred_region
              _
            $region47: #{model_forward.3} parent=31 // pred_fallthru
              _
          $region32: #{model_forward.3} parent=27 // pred_fallthru
            _
          %234 = vnop
        $region28: #{model_forward.3} parent=23 // pred_fallthru
          _
      $region24: #{model_forward.3} parent=5 // pred_fallthru
        _
      %p235 = scmp.le.s32.totalorder 1, %s9
      %p236 = scmp.lt.s32.totalorder %s9, 9
      %p237 = pnand %p235, %p236
      %p238 = pneg %p237
      // Predicated region
      $region48: #{model_forward.3} parent=5 // pred_check
        _
      $region49: #{model_forward.3} parent=5 // pred_check_branch
        %240 = sbr.rel (%p237) target = $region51
      $region50: #{model_forward.3} parent=5 // pred_region
        %s241 = ssub.s32 %s9, 1
        %s242 = sand.u32 %s36, 1
        %s243 = sand.u32 %s36, 1
        %s244 = smul.addr %s243, 256
        %s245 = scalar_lea.vmem [#allocation2], %s244
        // Predicated region
        $region52: #{model_forward.3} parent=50 // pred_check
          %p246 = pneg %p49
        $region53: #{model_forward.3} parent=50 // pred_check_branch
          %248 = sbr.rel (%p246) target = $region55
        $region54: #{model_forward.3} parent=50 // pred_region
          _
        $region55: #{model_forward.3} parent=50 // pred_fallthru
          _
        %s249 = sand.u32 %s36, 1
        %s250 = sand.u32 %s36, 1
        %s251 = smul.addr %s250, 256
        %s252 = scalar_lea.vmem [#allocation2], %s251
        %p253 = pneg %p49
        %p254 = pneg %p46
        %p255 = pneg %p70
        %p256 = pneg %p67
        %p257 = pneg %p91
        %p258 = pneg %p88
        %p259 = pneg %p119
        %p260 = pneg %p116
        %s261 = sand.u32 %s106, 1
        %s262 = sand.u32 %s106, 1
        %s263 = smul.addr %s262, 32
        %s264 = scalar_lea.vmem [#allocation3], %s263
        %s265 = smul.u32 2, %s19
        %s266 = smul.u32 2, %s19
        %v267 = vld [vmem:[%s1] sm:$0xff]
        %v268 = vld [vmem:[%s1 + $0x8] sm:$0xff]
        %v269 = vld [vmem:[%s245] sm:$0xff]
        %v270 = vld [vmem:[%s245 + $0x8] sm:$0xff]
        %v271 = vld [vmem:[%s245 + $0x10] sm:$0xff]
        %v272 = vld [vmem:[%s245 + $0x18] sm:$0xff]
        %v273 = vld [vmem:[%s245 + $0x20] sm:$0xff]
        %v274 = vld [vmem:[%s245 + $0x28] sm:$0xff]
        %v275 = vld [vmem:[%s245 + $0x30] sm:$0x7]
        %v276 = vld [vmem:[%s245 + $0x38] sm:$0x7]
        %vm277 = vcmask 220160
        %v279 = vsel %vm277, %v267, 0
        %v282 = vsel %vm277, %v268, 0
        %vm284 = vcmask 1042432
        %v286 = vsel %vm284, %v275, 0
        %v289 = vsel %vm284, %v276, 0
        %291 = vmatprep.subr.mxu0 %v270
        %292 = vmatpush1.msra.mxu0 %v269
        %293 = vmatprep.subr.mxu0 %v272
        %294 = vmatpush1.msra.mxu0 %v271
        %295 = vmatprep.subr.mxu0 %v274
        %296 = vmatpush1.msra.mxu0 %v273
        %297 = vmatprep.subr.mxu0 %v289
        %298 = vmatpush1.msra.mxu0 %v286
        %299 = vmatprep.subr.mxu0 0.0
        %300 = vmatpush1.msra.mxu0 0.0
        %301 = vmatprep.subr.mxu0 0.0
        %302 = vmatpush1.msra.mxu0 0.0
        %303 = vmatprep.subr.mxu0 0.0
        %304 = vmatpush1.msra.mxu0 0.0
        %305 = vmatprep.subr.mxu0 0.0
        %306 = vmatpush1.msra.mxu0 0.0
        %307 = vmatprep.subr.mxu0 0.0
        %308 = vmatpush1.msra.mxu0 0.0
        %309 = vmatprep.subr.mxu0 0.0
        %310 = vmatpush1.msra.mxu0 0.0
        %311 = vmatprep.subr.mxu0 0.0
        %312 = vmatpush1.msra.mxu0 0.0
        %313 = vmatprep.subr.mxu0 0.0
        %314 = vmatpush1.msra.mxu0 0.0
        %315 = vmatprep.subr.mxu0 0.0
        %316 = vmatpush1.msra.mxu0 0.0
        %317 = vmatprep.subr.mxu0 0.0
        %318 = vmatpush1.msra.mxu0 0.0
        %319 = vmatprep.subr.mxu0 0.0
        %320 = vmatpush1.msra.mxu0 0.0
        %321 = vmatprep.subr.mxu0 0.0
        %322 = vmatpush1.msra.mxu0 0.0
        %323 = vmatprep.subr.mxu0 0.0
        %324 = vmatpush1.msra.mxu0 0.0
        %325 = vmatprep.subr.mxu0 0.0
        %326 = vmatpush1.msra.mxu0 0.0
        %327 = vmatprep.subr.mxu0 0.0
        %328 = vmatpush1.msra.mxu0 0.0
        %329 = vmatprep.subr.mxu0 0.0
        %330 = vmatpush1.msra.mxu0 0.0
        %331 = vmatprep.subr.mxu0 0.0
        %332 = vmatpush1.msra.mxu0 0.0
        %333 = vmatprep.subr.mxu0 0.0
        %334 = vmatpush1.msra.mxu0 0.0
        %335 = vmatprep.subr.mxu0 0.0
        %336 = vmatpush1.msra.mxu0 0.0
        %337 = vmatprep.subr.mxu0 0.0
        %338 = vmatpush1.msra.mxu0 0.0
        %339 = vmatprep.subr.mxu0 0.0
        %340 = vmatpush1.msra.mxu0 0.0
        %341 = vmatprep.subr.mxu0 0.0
        %342 = vmatpush1.msra.mxu0 0.0
        %343 = vmatprep.subr.mxu0 0.0
        %344 = vmatpush1.msra.mxu0 0.0
        %345 = vmatprep.subr.mxu0 0.0
        %346 = vmatpush1.msra.mxu0 0.0
        %347 = vmatprep.subr.mxu0 0.0
        %348 = vmatpush1.msra.mxu0 0.0
        %349 = vmatprep.subr.mxu0 0.0
        %350 = vmatpush1.msra.mxu0 0.0
        %351 = vmatprep.subr.mxu0 0.0
        %352 = vmatpush1.msra.mxu0 0.0
        %353 = vmatprep.subr.mxu0 0.0
        %354 = vmatpush1.msra.mxu0 0.0
        %355 = vmatprep.mubr.f32.mxu0 0.0
        %356 = vmatmul.mubr.f32.gmra.mrb[0].mxu0 %v279
        %v357 = vpop.f32.mrb[0].mxu0
        %v358 = vadd.f32 0.0, %v357
        %v359 = vpop.f32.mrb[0].mxu0
        %v360 = vadd.f32 0.0, %v359
        %361 = vmatprep.mubr.f32.mxu0 0.0
        %362 = vmatmul.mubr.f32.gmra.mrb[0].mxu0 %v282
        %v363 = vpop.f32.mrb[0].mxu0
        %v364 = vadd.f32 0.0, %v363
        %v365 = vpop.f32.mrb[0].mxu0
        %v366 = vadd.f32 0.0, %v365
        %367 = vdwg.mxu0
        %s368 = scalar_lea.vmem %s245, 64 [#allocation2]
        %v369 = vld [vmem:[%s368] sm:$0xff]
        %v370 = vld [vmem:[%s368 + $0x8] sm:$0xff]
        %v371 = vld [vmem:[%s368 + $0x10] sm:$0xff]
        %v372 = vld [vmem:[%s368 + $0x18] sm:$0xff]
        %v373 = vld [vmem:[%s368 + $0x20] sm:$0xff]
        %v374 = vld [vmem:[%s368 + $0x28] sm:$0xff]
        %v375 = vld [vmem:[%s368 + $0x30] sm:$0x7]
        %v376 = vld [vmem:[%s368 + $0x38] sm:$0x7]
        %v378 = vsel %vm284, %v375, 0
        %v381 = vsel %vm284, %v376, 0
        %383 = vmatprep.subr.mxu0 %v370
        %384 = vmatpush1.msra.mxu0 %v369
        %385 = vmatprep.subr.mxu0 %v372
        %386 = vmatpush1.msra.mxu0 %v371
        %387 = vmatprep.subr.mxu0 %v374
        %388 = vmatpush1.msra.mxu0 %v373
        %389 = vmatprep.subr.mxu0 %v381
        %390 = vmatpush1.msra.mxu0 %v378
        %391 = vmatprep.subr.mxu0 0.0
        %392 = vmatpush1.msra.mxu0 0.0
        %393 = vmatprep.subr.mxu0 0.0
        %394 = vmatpush1.msra.mxu0 0.0
        %395 = vmatprep.subr.mxu0 0.0
        %396 = vmatpush1.msra.mxu0 0.0
        %397 = vmatprep.subr.mxu0 0.0
        %398 = vmatpush1.msra.mxu0 0.0
        %399 = vmatprep.subr.mxu0 0.0
        %400 = vmatpush1.msra.mxu0 0.0
        %401 = vmatprep.subr.mxu0 0.0
        %402 = vmatpush1.msra.mxu0 0.0
        %403 = vmatprep.subr.mxu0 0.0
        %404 = vmatpush1.msra.mxu0 0.0
        %405 = vmatprep.subr.mxu0 0.0
        %406 = vmatpush1.msra.mxu0 0.0
        %407 = vmatprep.subr.mxu0 0.0
        %408 = vmatpush1.msra.mxu0 0.0
        %409 = vmatprep.subr.mxu0 0.0
        %410 = vmatpush1.msra.mxu0 0.0
        %411 = vmatprep.subr.mxu0 0.0
        %412 = vmatpush1.msra.mxu0 0.0
        %413 = vmatprep.subr.mxu0 0.0
        %414 = vmatpush1.msra.mxu0 0.0
        %415 = vmatprep.subr.mxu0 0.0
        %416 = vmatpush1.msra.mxu0 0.0
        %417 = vmatprep.subr.mxu0 0.0
        %418 = vmatpush1.msra.mxu0 0.0
        %419 = vmatprep.subr.mxu0 0.0
        %420 = vmatpush1.msra.mxu0 0.0
        %421 = vmatprep.subr.mxu0 0.0
        %422 = vmatpush1.msra.mxu0 0.0
        %423 = vmatprep.subr.mxu0 0.0
        %424 = vmatpush1.msra.mxu0 0.0
        %425 = vmatprep.subr.mxu0 0.0
        %426 = vmatpush1.msra.mxu0 0.0
        %427 = vmatprep.subr.mxu0 0.0
        %428 = vmatpush1.msra.mxu0 0.0
        %429 = vmatprep.subr.mxu0 0.0
        %430 = vmatpush1.msra.mxu0 0.0
        %431 = vmatprep.subr.mxu0 0.0
        %432 = vmatpush1.msra.mxu0 0.0
        %433 = vmatprep.subr.mxu0 0.0
        %434 = vmatpush1.msra.mxu0 0.0
        %435 = vmatprep.subr.mxu0 0.0
        %436 = vmatpush1.msra.mxu0 0.0
        %437 = vmatprep.subr.mxu0 0.0
        %438 = vmatpush1.msra.mxu0 0.0
        %439 = vmatprep.subr.mxu0 0.0
        %440 = vmatpush1.msra.mxu0 0.0
        %441 = vmatprep.subr.mxu0 0.0
        %442 = vmatpush1.msra.mxu0 0.0
        %443 = vmatprep.subr.mxu0 0.0
        %444 = vmatpush1.msra.mxu0 0.0
        %445 = vmatprep.subr.mxu0 0.0
        %446 = vmatpush1.msra.mxu0 0.0
        %447 = vmatprep.mubr.f32.mxu0 0.0
        %448 = vmatmul.mubr.f32.gmra.mrb[0].mxu0 %v279
        %v449 = vpop.f32.mrb[0].mxu0
        %v450 = vadd.f32 0.0, %v449
        %v451 = vpop.f32.mrb[0].mxu0
        %v452 = vadd.f32 0.0, %v451
        %453 = vmatprep.mubr.f32.mxu0 0.0
        %454 = vmatmul.mubr.f32.gmra.mrb[0].mxu0 %v282
        %v455 = vpop.f32.mrb[0].mxu0
        %v456 = vadd.f32 0.0, %v455
        %v457 = vpop.f32.mrb[0].mxu0
        %v458 = vadd.f32 0.0, %v457
        %459 = vdwg.mxu0
        %v460 = vmax.f32 %v358, %v450
        %v461 = vmax.f32 %v360, %v452
        %v462 = vmax.f32 %v364, %v456
        %v463 = vmax.f32 %v366, %v458
        %s464 = scalar_lea.vmem %s245, 128 [#allocation2]
        %v465 = vld [vmem:[%s464] sm:$0xff]
        %v466 = vld [vmem:[%s464 + $0x8] sm:$0xff]
        %v467 = vld [vmem:[%s464 + $0x10] sm:$0xff]
        %v468 = vld [vmem:[%s464 + $0x18] sm:$0xff]
        %v469 = vld [vmem:[%s464 + $0x20] sm:$0xff]
        %v470 = vld [vmem:[%s464 + $0x28] sm:$0xff]
        %v471 = vld [vmem:[%s464 + $0x30] sm:$0x7]
        %v472 = vld [vmem:[%s464 + $0x38] sm:$0x7]
        %v474 = vsel %vm284, %v471, 0
        %v477 = vsel %vm284, %v472, 0
        %479 = vmatprep.subr.mxu0 %v466
        %480 = vmatpush1.msra.mxu0 %v465
        %481 = vmatprep.subr.mxu0 %v468
        %482 = vmatpush1.msra.mxu0 %v467
        %483 = vmatprep.subr.mxu0 %v470
        %484 = vmatpush1.msra.mxu0 %v469
        %485 = vmatprep.subr.mxu0 %v477
        %486 = vmatpush1.msra.mxu0 %v474
        %487 = vmatprep.subr.mxu0 0.0
        %488 = vmatpush1.msra.mxu0 0.0
        %489 = vmatprep.subr.mxu0 0.0
        %490 = vmatpush1.msra.mxu0 0.0
        %491 = vmatprep.subr.mxu0 0.0
        %492 = vmatpush1.msra.mxu0 0.0
        %493 = vmatprep.subr.mxu0 0.0
        %494 = vmatpush1.msra.mxu0 0.0
        %495 = vmatprep.subr.mxu0 0.0
        %496 = vmatpush1.msra.mxu0 0.0
        %497 = vmatprep.subr.mxu0 0.0
        %498 = vmatpush1.msra.mxu0 0.0
        %499 = vmatprep.subr.mxu0 0.0
        %500 = vmatpush1.msra.mxu0 0.0
        %501 = vmatprep.subr.mxu0 0.0
        %502 = vmatpush1.msra.mxu0 0.0
        %503 = vmatprep.subr.mxu0 0.0
        %504 = vmatpush1.msra.mxu0 0.0
        %505 = vmatprep.subr.mxu0 0.0
        %506 = vmatpush1.msra.mxu0 0.0
        %507 = vmatprep.subr.mxu0 0.0
        %508 = vmatpush1.msra.mxu0 0.0
        %509 = vmatprep.subr.mxu0 0.0
        %510 = vmatpush1.msra.mxu0 0.0
        %511 = vmatprep.subr.mxu0 0.0
        %512 = vmatpush1.msra.mxu0 0.0
        %513 = vmatprep.subr.mxu0 0.0
        %514 = vmatpush1.msra.mxu0 0.0
        %515 = vmatprep.subr.mxu0 0.0
        %516 = vmatpush1.msra.mxu0 0.0
        %517 = vmatprep.subr.mxu0 0.0
        %518 = vmatpush1.msra.mxu0 0.0
        %519 = vmatprep.subr.mxu0 0.0
        %520 = vmatpush1.msra.mxu0 0.0
        %521 = vmatprep.subr.mxu0 0.0
        %522 = vmatpush1.msra.mxu0 0.0
        %523 = vmatprep.subr.mxu0 0.0
        %524 = vmatpush1.msra.mxu0 0.0
        %525 = vmatprep.subr.mxu0 0.0
        %526 = vmatpush1.msra.mxu0 0.0
        %527 = vmatprep.subr.mxu0 0.0
        %528 = vmatpush1.msra.mxu0 0.0
        %529 = vmatprep.subr.mxu0 0.0
        %530 = vmatpush1.msra.mxu0 0.0
        %531 = vmatprep.subr.mxu0 0.0
        %532 = vmatpush1.msra.mxu0 0.0
        %533 = vmatprep.subr.mxu0 0.0
        %534 = vmatpush1.msra.mxu0 0.0
        %535 = vmatprep.subr.mxu0 0.0
        %536 = vmatpush1.msra.mxu0 0.0
        %537 = vmatprep.subr.mxu0 0.0
        %538 = vmatpush1.msra.mxu0 0.0
        %539 = vmatprep.subr.mxu0 0.0
        %540 = vmatpush1.msra.mxu0 0.0
        %541 = vmatprep.subr.mxu0 0.0
        %542 = vmatpush1.msra.mxu0 0.0
        %543 = vmatprep.mubr.f32.mxu0 0.0
        %544 = vmatmul.mubr.f32.gmra.mrb[0].mxu0 %v279
        %v545 = vpop.f32.mrb[0].mxu0
        %v546 = vadd.f32 0.0, %v545
        %v547 = vpop.f32.mrb[0].mxu0
        %v548 = vadd.f32 0.0, %v547
        %549 = vmatprep.mubr.f32.mxu0 0.0
        %550 = vmatmul.mubr.f32.gmra.mrb[0].mxu0 %v282
        %v551 = vpop.f32.mrb[0].mxu0
        %v552 = vadd.f32 0.0, %v551
        %v553 = vpop.f32.mrb[0].mxu0
        %v554 = vadd.f32 0.0, %v553
        %555 = vdwg.mxu0
        %v556 = vmax.f32 %v460, %v546
        %v557 = vmax.f32 %v461, %v548
        %v558 = vmax.f32 %v462, %v552
        %v559 = vmax.f32 %v463, %v554
        %s560 = scalar_lea.vmem %s245, 192 [#allocation2]
        %v561 = vld [vmem:[%s560] sm:$0xff]
        %v562 = vld [vmem:[%s560 + $0x8] sm:$0xff]
        %v563 = vld [vmem:[%s560 + $0x10] sm:$0xff]
        %v564 = vld [vmem:[%s560 + $0x18] sm:$0xff]
        %v565 = vld [vmem:[%s560 + $0x20] sm:$0xff]
        %v566 = vld [vmem:[%s560 + $0x28] sm:$0xff]
        %v567 = vld [vmem:[%s560 + $0x30] sm:$0x7]
        %v568 = vld [vmem:[%s560 + $0x38] sm:$0x7]
        %v570 = vsel %vm284, %v567, 0
        %v573 = vsel %vm284, %v568, 0
        %575 = vmatprep.subr.mxu0 %v562
        %576 = vmatpush1.msra.mxu0 %v561
        %577 = vmatprep.subr.mxu0 %v564
        %578 = vmatpush1.msra.mxu0 %v563
        %579 = vmatprep.subr.mxu0 %v566
        %580 = vmatpush1.msra.mxu0 %v565
        %581 = vmatprep.subr.mxu0 %v573
        %582 = vmatpush1.msra.mxu0 %v570
        %583 = vmatprep.subr.mxu0 0.0
        %584 = vmatpush1.msra.mxu0 0.0
        %585 = vmatprep.subr.mxu0 0.0
        %586 = vmatpush1.msra.mxu0 0.0
        %587 = vmatprep.subr.mxu0 0.0
        %588 = vmatpush1.msra.mxu0 0.0
        %589 = vmatprep.subr.mxu0 0.0
        %590 = vmatpush1.msra.mxu0 0.0
        %591 = vmatprep.subr.mxu0 0.0
        %592 = vmatpush1.msra.mxu0 0.0
        %593 = vmatprep.subr.mxu0 0.0
        %594 = vmatpush1.msra.mxu0 0.0
        %595 = vmatprep.subr.mxu0 0.0
        %596 = vmatpush1.msra.mxu0 0.0
        %597 = vmatprep.subr.mxu0 0.0
        %598 = vmatpush1.msra.mxu0 0.0
        %599 = vmatprep.subr.mxu0 0.0
        %600 = vmatpush1.msra.mxu0 0.0
        %601 = vmatprep.subr.mxu0 0.0
        %602 = vmatpush1.msra.mxu0 0.0
        %603 = vmatprep.subr.mxu0 0.0
        %604 = vmatpush1.msra.mxu0 0.0
        %605 = vmatprep.subr.mxu0 0.0
        %606 = vmatpush1.msra.mxu0 0.0
        %607 = vmatprep.subr.mxu0 0.0
        %608 = vmatpush1.msra.mxu0 0.0
        %609 = vmatprep.subr.mxu0 0.0
        %610 = vmatpush1.msra.mxu0 0.0
        %611 = vmatprep.subr.mxu0 0.0
        %612 = vmatpush1.msra.mxu0 0.0
        %613 = vmatprep.subr.mxu0 0.0
        %614 = vmatpush1.msra.mxu0 0.0
        %615 = vmatprep.subr.mxu0 0.0
        %616 = vmatpush1.msra.mxu0 0.0
        %617 = vmatprep.subr.mxu0 0.0
        %618 = vmatpush1.msra.mxu0 0.0
        %619 = vmatprep.subr.mxu0 0.0
        %620 = vmatpush1.msra.mxu0 0.0
        %621 = vmatprep.subr.mxu0 0.0
        %622 = vmatpush1.msra.mxu0 0.0
        %623 = vmatprep.subr.mxu0 0.0
        %624 = vmatpush1.msra.mxu0 0.0
        %625 = vmatprep.subr.mxu0 0.0
        %626 = vmatpush1.msra.mxu0 0.0
        %627 = vmatprep.subr.mxu0 0.0
        %628 = vmatpush1.msra.mxu0 0.0
        %629 = vmatprep.subr.mxu0 0.0
        %630 = vmatpush1.msra.mxu0 0.0
        %631 = vmatprep.subr.mxu0 0.0
        %632 = vmatpush1.msra.mxu0 0.0
        %633 = vmatprep.subr.mxu0 0.0
        %634 = vmatpush1.msra.mxu0 0.0
        %635 = vmatprep.subr.mxu0 0.0
        %636 = vmatpush1.msra.mxu0 0.0
        %637 = vmatprep.subr.mxu0 0.0
        %638 = vmatpush1.msra.mxu0 0.0
        %639 = vmatprep.mubr.f32.mxu0 0.0
        %640 = vmatmul.mubr.f32.gmra.mrb[0].mxu0 %v279
        %v641 = vpop.f32.mrb[0].mxu0
        %v642 = vadd.f32 0.0, %v641
        %v643 = vpop.f32.mrb[0].mxu0
        %v644 = vadd.f32 0.0, %v643
        %645 = vmatprep.mubr.f32.mxu0 0.0
        %646 = vmatmul.mubr.f32.gmra.mrb[0].mxu0 %v282
        %v647 = vpop.f32.mrb[0].mxu0
        %v648 = vadd.f32 0.0, %v647
        %v649 = vpop.f32.mrb[0].mxu0
        %v650 = vadd.f32 0.0, %v649
        %651 = vdwg.mxu0
        %v652 = vmax.f32 %v556, %v642
        %v653 = vmax.f32 %v557, %v644
        %v654 = vmax.f32 %v558, %v648
        %v655 = vmax.f32 %v559, %v650
        %v656 = vld [vmem:[%s2] sm:$0xff]
        %v657 = vld [vmem:[%s2 + $0x8] sm:$0xff]
        %659 = vset.pattern.permute.xlu0 0
        %660 = vperm.xlu0 %659, %v656
        %v661 = vpop.permute.xlu0 %660
        %664 = vset.pattern.permute.xlu0 0
        %665 = vperm.xlu0 %664, %v657
        %v666 = vpop.permute.xlu0 %665
        %v668 = vadd.f32 %v652, %v661
        %v669 = vadd.f32 %v653, %v661
        %v670 = vadd.f32 %v654, %v666
        %v671 = vadd.f32 %v655, %v666
        %v672 = vmax.f32 %v668, 0.0
        %v673 = vmax.f32 %v669, 0.0
        %v674 = vmax.f32 %v670, 0.0
        %v675 = vmax.f32 %v671, 0.0
        %676 = vst [vmem:[%s264] sm:$0xff] %v672
        %677 = vst [vmem:[%s264 + $0x8] sm:$0xff] %v673
        %678 = vst [vmem:[%s264 + $0x10] sm:$0xff] %v674
        %679 = vst [vmem:[%s264 + $0x18] sm:$0xff] %v675
        %s680 = sand.u32 %s106, 1
        %s681 = sand.u32 %s106, 1
        %s682 = smul.addr %s681, 32
        %s683 = scalar_lea.vmem [#allocation3], %s682
        // Predicated region
        $region56: #{model_forward.3} parent=50 // pred_check
          %p684 = pneg %p116
        $region57: #{model_forward.3} parent=50 // pred_check_branch
          %686 = sbr.rel (%p684) target = $region59
        $region58: #{model_forward.3} parent=50 // pred_region
          %s687 = smul.u32 2, %s19
          %s688 = smul.addr %s18, 16
          %s689 = sadd.s32 %s687, %s688
          %s690 = smul.addr %s689, 8
          %s691 = scalar_lea.vmem %s3, %s690
          // Predicated region
          $region60: #{model_forward.3} parent=58 // pred_check
            _
          $region61: #{model_forward.3} parent=58 // pred_check_branch
            %693 = sbr.rel (0) target = $region63
          $region62: #{model_forward.3} parent=58 // pred_region
            // Predicated region
            $region64: #{model_forward.3} parent=62 // pred_check
              _
            $region65: #{model_forward.3} parent=62 // pred_check_branch
              %695 = sbr.rel (0) target = $region67
            $region66: #{model_forward.3} parent=62 // pred_region
              loop: start=0, step=1, limit=1
              $region68: #{model_forward.3} parent=66 // loop_pre_header
                _
              $region69: #{model_forward.3} parent=66 // loop_header
                %s697 = sphi 0, %s701
                %p698 = scmp.ge.s32.totalorder %s697, 1
                %s702 = sphi %s683, %s683
                %s703 = sphi %s691, %s691
              $region70: #{model_forward.3} parent=66 // loop_header_branch
                %700 = sbr.rel (%p698) target = $region74
              $region71: #{model_forward.3} parent=66 // loop_body
                %v704 = vld [vmem:[%s702] sm:$0xff]
                %705 = vst [vmem:[%s703] sm:$0xff] %v704
                %v706 = vld [vmem:[%s702 + $0x8] sm:$0xff]
                %707 = vst [vmem:[%s703 + $0x8] sm:$0xff] %v706
                %v708 = vld [vmem:[%s702 + $0x10] sm:$0xff]
                %709 = vst [vmem:[%s703 + $0x40] sm:$0xff] %v708
                %v710 = vld [vmem:[%s702 + $0x18] sm:$0xff]
                %711 = vst [vmem:[%s703 + $0x48] sm:$0xff] %v710
              $region72: #{model_forward.3} parent=66 // loop_footer
                %s701 = sadd.s32 1, %s697
              $region73: #{model_forward.3} parent=66 // loop_footer_branch
                %696 = sbr.rel target = $region69
              $region74: #{model_forward.3} parent=66 // loop_exit
                _
            $region67: #{model_forward.3} parent=62 // pred_fallthru
              _
            // Predicated region
            $region75: #{model_forward.3} parent=62 // pred_check
              _
            $region76: #{model_forward.3} parent=62 // pred_check_branch
              %713 = sbr.rel target = $region78
            $region77: #{model_forward.3} parent=62 // pred_region
              _
            $region78: #{model_forward.3} parent=62 // pred_fallthru
              _
          $region63: #{model_forward.3} parent=58 // pred_fallthru
            _
          %714 = vnop
        $region59: #{model_forward.3} parent=50 // pred_fallthru
          _
      $region51: #{model_forward.3} parent=5 // pred_fallthru
        _
      %p715 = scmp.le.s32.totalorder 2, %s9
      // Predicated region
      $region79: #{model_forward.3} parent=5 // pred_check
        %p716 = pneg %p715
      $region80: #{model_forward.3} parent=5 // pred_check_branch
        %718 = sbr.rel (%p716) target = $region82
      $region81: #{model_forward.3} parent=5 // pred_region
        %s719 = ssub.s32 %s9, 2
        // Predicated region
        $region83: #{model_forward.3} parent=81 // pred_check
          %p720 = pneg %p122
        $region84: #{model_forward.3} parent=81 // pred_check_branch
          %722 = sbr.rel (%p720) target = $region86
        $region85: #{model_forward.3} parent=81 // pred_region
          %s723 = sand.u32 %s107, 1
          %s724 = sand.u32 %s107, 1
          %s725 = smul.addr %s724, 32
          %s726 = scalar_lea.vmem [#allocation3], %s725
        $region86: #{model_forward.3} parent=81 // pred_fallthru
          _
      $region82: #{model_forward.3} parent=5 // pred_fallthru
        _
    $region6: #{model_forward.3} parent=1 // loop_footer
      %s13 = sadd.s32 1, %s9
    $region7: #{model_forward.3} parent=1 // loop_footer_branch
      %8 = sbr.rel target = $region3
    $region8: #{model_forward.3} parent=1 // loop_exit
      _

// kernel: model_forward.4
$region0: #{model_forward.4}
  #allocation0 [shape = 'u32[]', space=smem, size = 0x4, offset = 0x4, fixed_abs, tag = 'smem constant byte address 0x4 - core index']
  #allocation1 [shape = 'u32[144,128]{1,0:T(1,128)}', space=vmem, size = 0x12000, scoped, tag = 'internal scratch']
  %s0 = inlined_call_operand.vmem [shape: f32[2,4,144,256], index: 0, kind: input, shape index: {}]
  %s1 = inlined_call_operand.vmem [shape: f32[32,144], index: 1, kind: input, shape index: {}]
  %s2 = inlined_call_operand.vmem [shape: f32[32,1], index: 2, kind: input, shape index: {}]
  %s3 = inlined_call_operand.vmem [shape: f32[2,32,256], index: 3, kind: output, shape index: {}]
  %s4 = sld [smem:[#allocation0]]
  $region117: #{model_forward.4} parent=0
    _
  %s6 = ssub.s32 1, %s4
  %s7 = scalar_select 0, %s6, %s4
  $region1: #{model_forward.4} parent=0
    #allocation2 [shape = 'u8[589824]{0}', space=vmem, size = 0x90000, scoped, tag = 'input window, operand 0']
    #allocation3 [shape = 'u8[32768]{0}', space=vmem, size = 0x8000, scoped, tag = 'output window, operand 0']
    loop: start=0, step=1, limit=6
    $region2: #{model_forward.4} parent=1 // loop_pre_header
      _
    $region3: #{model_forward.4} parent=1 // loop_header
      %s9 = sphi 0, %s13
      %p10 = scmp.ge.s32.totalorder %s9, 6
      %s16 = sphi 0, %s28
      %s17 = sphi 0, %s24
      %s18 = sphi 0, %s16
      %s19 = sphi 0, %s17
      %s20 = sphi 0, %s18
      %s21 = sphi 0, %s19
      %s33 = sphi 0, %s35
      %s36 = sphi 0, %s33
      %s37 = sphi 0, %s36
      %s53 = sphi 0, %s37
      %s57 = sphi 0, %s57
      %s59 = sphi 0, %s57
      %s60 = sphi 0, %s59
      %s74 = sphi 0, %s60
      %s78 = sphi 0, %s78
      %s80 = sphi 0, %s78
      %s81 = sphi 0, %s80
      %s95 = sphi 0, %s81
      %s103 = sphi 0, %s105
      %s106 = sphi 0, %s103
      %s107 = sphi 0, %s106
      %s123 = sphi 0, %s107
    $region4: #{model_forward.4} parent=1 // loop_header_branch
      %12 = sbr.rel (%p10) target = $region8
    $region5: #{model_forward.4} parent=1 // loop_body
      %s14 = ssub.s32 %s9, 1
      %s15 = ssub.s32 %s9, 2
      %s22 = sadd.s32 1, %s17
      %p23 = scmp.ge.s32.totalorder %s22, 2
      %s24 = scalar_select %p23, 0, %s22
      %s25 = sadd.s32 1, %s16
      %s26 = scalar_select %p23, %s25, %s16
      %p27 = scmp.ge.s32.totalorder %s26, 2
      %s28 = scalar_select %p27, 0, %s26
      %s29 = ssub.s32 %s16, %s28
      %s30 = ssub.s32 %s17, %s24
      %s31 = sor.u32 %s29, %s30
      %p32 = scmp.eq.s32.totalorder %s31, 0
      %s34 = sadd.s32 %s33, 1
      %s35 = scalar_select %p32, %s33, %s34
      %p38 = pneg %p32
      %p39 = scmp.eq.s32.totalorder %s9, 3
      %p40 = por %p38, %p39
      %p41 = scmp.ne.s32.totalorder %s33, %s36
      %p42 = scmp.eq.s32.totalorder %s9, 0
      %p43 = por %p41, %p42
      %p44 = scmp.ne.s32.totalorder %s33, %s36
      %p45 = scmp.eq.s32.totalorder %s14, 3
      %p46 = por %p44, %p45
      %p47 = scmp.ne.s32.totalorder %s36, %s37
      %p48 = scmp.eq.s32.totalorder %s14, 0
      %p49 = por %p47, %p48
      %p50 = scmp.ne.s32.totalorder %s36, %s37
      %p51 = scmp.eq.s32.totalorder %s15, 3
      %p52 = por %p50, %p51
      %p54 = scmp.ne.s32.totalorder %s37, %s53
      %p55 = scmp.eq.s32.totalorder %s15, 0
      %p56 = por %p54, %p55
      %s58 = sadd.s32 %s57, 1
      %p61 = scmp.eq.s32.totalorder %s9, 3
      %p62 = scmp.ne.s32.totalorder %s57, %s59
      %p63 = scmp.eq.s32.totalorder %s9, 0
      %p64 = por %p62, %p63
      %p65 = scmp.ne.s32.totalorder %s57, %s59
      %p66 = scmp.eq.s32.totalorder %s14, 3
      %p67 = por %p65, %p66
      %p68 = scmp.ne.s32.totalorder %s59, %s60
      %p69 = scmp.eq.s32.totalorder %s14, 0
      %p70 = por %p68, %p69
      %p71 = scmp.ne.s32.totalorder %s59, %s60
      %p72 = scmp.eq.s32.totalorder %s15, 3
      %p73 = por %p71, %p72
      %p75 = scmp.ne.s32.totalorder %s60, %s74
      %p76 = scmp.eq.s32.totalorder %s15, 0
      %p77 = por %p75, %p76
      %s79 = sadd.s32 %s78, 1
      %p82 = scmp.eq.s32.totalorder %s9, 3
      %p83 = scmp.ne.s32.totalorder %s78, %s80
      %p84 = scmp.eq.s32.totalorder %s9, 0
      %p85 = por %p83, %p84
      %p86 = scmp.ne.s32.totalorder %s78, %s80
      %p87 = scmp.eq.s32.totalorder %s14, 3
      %p88 = por %p86, %p87
      %p89 = scmp.ne.s32.totalorder %s80, %s81
      %p90 = scmp.eq.s32.totalorder %s14, 0
      %p91 = por %p89, %p90
      %p92 = scmp.ne.s32.totalorder %s80, %s81
      %p93 = scmp.eq.s32.totalorder %s15, 3
      %p94 = por %p92, %p93
      %p96 = scmp.ne.s32.totalorder %s81, %s95
      %p97 = scmp.eq.s32.totalorder %s15, 0
      %p98 = por %p96, %p97
      %s99 = ssub.s32 %s16, %s28
      %s100 = ssub.s32 %s17, %s24
      %s101 = sor.u32 %s99, %s100
      %p102 = scmp.eq.s32.totalorder %s101, 0
      %s104 = sadd.s32 %s103, 1
      %s105 = scalar_select %p102, %s103, %s104
      %p108 = pneg %p102
      %p109 = scmp.eq.s32.totalorder %s9, 3
      %p110 = por %p108, %p109
      %p111 = scmp.ne.s32.totalorder %s103, %s106
      %p112 = scmp.eq.s32.totalorder %s9, 0
      %p113 = por %p111, %p112
      %p114 = scmp.ne.s32.totalorder %s103, %s106
      %p115 = scmp.eq.s32.totalorder %s14, 3
      %p116 = por %p114, %p115
      %p117 = scmp.ne.s32.totalorder %s106, %s107
      %p118 = scmp.eq.s32.totalorder %s14, 0
      %p119 = por %p117, %p118
      %p120 = scmp.ne.s32.totalorder %s106, %s107
      %p121 = scmp.eq.s32.totalorder %s15, 3
      %p122 = por %p120, %p121
      %p124 = scmp.ne.s32.totalorder %s107, %s123
      %p125 = scmp.eq.s32.totalorder %s15, 0
      %p126 = por %p124, %p125
      %p127 = scmp.le.s32.totalorder 1, %s9
      %p128 = scmp.lt.s32.totalorder %s9, 5
      %p129 = pnand %p127, %p128
      %p130 = pneg %p129
      // Predicated region
      $region9: #{model_forward.4} parent=5 // pred_check
        _
      $region10: #{model_forward.4} parent=5 // pred_check_branch
        %132 = sbr.rel (%p129) target = $region12
      $region11: #{model_forward.4} parent=5 // pred_region
        %s133 = ssub.s32 %s9, 1
        // Predicated region
        $region13: #{model_forward.4} parent=11 // pred_check
          %p134 = pneg %p70
        $region14: #{model_forward.4} parent=11 // pred_check_branch
          %136 = sbr.rel (%p134) target = $region16
        $region15: #{model_forward.4} parent=11 // pred_region
          _
        $region16: #{model_forward.4} parent=11 // pred_fallthru
          _
        // Predicated region
        $region17: #{model_forward.4} parent=11 // pred_check
          %p137 = pneg %p91
        $region18: #{model_forward.4} parent=11 // pred_check_branch
          %139 = sbr.rel (%p137) target = $region20
        $region19: #{model_forward.4} parent=11 // pred_region
          _
        $region20: #{model_forward.4} parent=11 // pred_fallthru
          _
      $region12: #{model_forward.4} parent=5 // pred_fallthru
        _
      %p140 = scmp.lt.s32.totalorder %s9, 4
      // Predicated region
      $region21: #{model_forward.4} parent=5 // pred_check
        %p141 = pneg %p140
      $region22: #{model_forward.4} parent=5 // pred_check_branch
        %143 = sbr.rel (%p141) target = $region24
      $region23: #{model_forward.4} parent=5 // pred_region
        // Predicated region
        $region25: #{model_forward.4} parent=23 // pred_check
          %p144 = pneg %p43
        $region26: #{model_forward.4} parent=23 // pred_check_branch
          %146 = sbr.rel (%p144) target = $region28
        $region27: #{model_forward.4} parent=23 // pred_region
          %s147 = sand.u32 %s33, 1
          %s148 = sand.u32 %s33, 1
          %s149 = smul.addr %s148, 576
          %s150 = scalar_lea.vmem [#allocation2], %s149
          %s151 = smul.addr %s16, 144
          %s152 = sadd.s32 %s17, %s151
          %s153 = smul.addr %s152, 8
          %s154 = scalar_lea.vmem %s0, %s153
          // Predicated region
          $region29: #{model_forward.4} parent=27 // pred_check
            _
          $region30: #{model_forward.4} parent=27 // pred_check_branch
            %156 = sbr.rel (0) target = $region32
          $region31: #{model_forward.4} parent=27 // pred_region
            // Predicated region
            $region33: #{model_forward.4} parent=31 // pred_check
              _
            $region34: #{model_forward.4} parent=31 // pred_check_branch
              %158 = sbr.rel (0) target = $region36
            $region35: #{model_forward.4} parent=31 // pred_region
              // Predicated region
              $region48: #{model_forward.4} parent=35 // pred_check
                _
              $region49: #{model_forward.4} parent=35 // pred_check_branch
                %315 = sbr.rel (0) target = $region51
              $region50: #{model_forward.4} parent=35 // pred_region
                loop: start=0, step=1, limit=1
                $region52: #{model_forward.4} parent=50 // loop_pre_header
                  _
                $region53: #{model_forward.4} parent=50 // loop_header
                  %s317 = sphi 0, %s321
                  %p318 = scmp.ge.s32.totalorder %s317, 1
                  %s322 = sphi %s154, %s154
                  %s323 = sphi %s150, %s150
                $region54: #{model_forward.4} parent=50 // loop_header_branch
                  %320 = sbr.rel (%p318) target = $region58
                $region55: #{model_forward.4} parent=50 // loop_body
                  %v324 = vld [vmem:[%s322] sm:$0xff]
                  %325 = vst [vmem:[%s323] sm:$0xff] %v324
                  %v326 = vld [vmem:[%s322 + $0x10] sm:$0xff]
                  %327 = vst [vmem:[%s323 + $0x8] sm:$0xff] %v326
                  %v328 = vld [vmem:[%s322 + $0x20] sm:$0xff]
                  %329 = vst [vmem:[%s323 + $0x10] sm:$0xff] %v328
                  %v330 = vld [vmem:[%s322 + $0x30] sm:$0xff]
                  %331 = vst [vmem:[%s323 + $0x18] sm:$0xff] %v330
                  %v332 = vld [vmem:[%s322 + $0x40] sm:$0xff]
                  %333 = vst [vmem:[%s323 + $0x20] sm:$0xff] %v332
                  %v334 = vld [vmem:[%s322 + $0x50] sm:$0xff]
                  %335 = vst [vmem:[%s323 + $0x28] sm:$0xff] %v334
                  %v336 = vld [vmem:[%s322 + $0x60] sm:$0xff]
                  %337 = vst [vmem:[%s323 + $0x30] sm:$0xff] %v336
                  %v338 = vld [vmem:[%s322 + $0x70] sm:$0xff]
                  %339 = vst [vmem:[%s323 + $0x38] sm:$0xff] %v338
                  %v340 = vld [vmem:[%s322 + $0x80] sm:$0xff]
                  %341 = vst [vmem:[%s323 + $0x40] sm:$0xff] %v340
                  %v342 = vld [vmem:[%s322 + $0x90] sm:$0xff]
                  %343 = vst [vmem:[%s323 + $0x48] sm:$0xff] %v342
                  %v344 = vld [vmem:[%s322 + $0xa0] sm:$0xff]
                  %345 = vst [vmem:[%s323 + $0x50] sm:$0xff] %v344
                  %v346 = vld [vmem:[%s322 + $0xb0] sm:$0xff]
                  %347 = vst [vmem:[%s323 + $0x58] sm:$0xff] %v346
                  %v348 = vld [vmem:[%s322 + $0xc0] sm:$0xff]
                  %349 = vst [vmem:[%s323 + $0x60] sm:$0xff] %v348
                  %v350 = vld [vmem:[%s322 + $0xd0] sm:$0xff]
                  %351 = vst [vmem:[%s323 + $0x68] sm:$0xff] %v350
                  %v352 = vld [vmem:[%s322 + $0xe0] sm:$0xff]
                  %353 = vst [vmem:[%s323 + $0x70] sm:$0xff] %v352
                  %v354 = vld [vmem:[%s322 + $0xf0] sm:$0xff]
                  %355 = vst [vmem:[%s323 + $0x78] sm:$0xff] %v354
                  %v356 = vld [vmem:[%s322 + $0x100] sm:$0xff]
                  %357 = vst [vmem:[%s323 + $0x80] sm:$0xff] %v356
                  %v358 = vld [vmem:[%s322 + $0x110] sm:$0xff]
                  %359 = vst [vmem:[%s323 + $0x88] sm:$0xff] %v358
                  %v360 = vld [vmem:[%s322 + $0x120] sm:$0xff]
                  %361 = vst [vmem:[%s323 + $0x90] sm:$0xff] %v360
                  %v362 = vld [vmem:[%s322 + $0x130] sm:$0xff]
                  %363 = vst [vmem:[%s323 + $0x98] sm:$0xff] %v362
                  %v364 = vld [vmem:[%s322 + $0x140] sm:$0xff]
                  %365 = vst [vmem:[%s323 + $0xa0] sm:$0xff] %v364
                  %v366 = vld [vmem:[%s322 + $0x150] sm:$0xff]
                  %367 = vst [vmem:[%s323 + $0xa8] sm:$0xff] %v366
                  %v368 = vld [vmem:[%s322 + $0x160] sm:$0xff]
                  %369 = vst [vmem:[%s323 + $0xb0] sm:$0xff] %v368
                  %v370 = vld [vmem:[%s322 + $0x170] sm:$0xff]
                  %371 = vst [vmem:[%s323 + $0xb8] sm:$0xff] %v370
                  %v372 = vld [vmem:[%s322 + $0x180] sm:$0xff]
                  %373 = vst [vmem:[%s323 + $0xc0] sm:$0xff] %v372
                  %v374 = vld [vmem:[%s322 + $0x190] sm:$0xff]
                  %375 = vst [vmem:[%s323 + $0xc8] sm:$0xff] %v374
                  %v376 = vld [vmem:[%s322 + $0x1a0] sm:$0xff]
                  %377 = vst [vmem:[%s323 + $0xd0] sm:$0xff] %v376
                  %v378 = vld [vmem:[%s322 + $0x1b0] sm:$0xff]
                  %379 = vst [vmem:[%s323 + $0xd8] sm:$0xff] %v378
                  %v380 = vld [vmem:[%s322 + $0x1c0] sm:$0xff]
                  %381 = vst [vmem:[%s323 + $0xe0] sm:$0xff] %v380
                  %v382 = vld [vmem:[%s322 + $0x1d0] sm:$0xff]
                  %383 = vst [vmem:[%s323 + $0xe8] sm:$0xff] %v382
                  %v384 = vld [vmem:[%s322 + $0x1e0] sm:$0xff]
                  %385 = vst [vmem:[%s323 + $0xf0] sm:$0xff] %v384
                  %v386 = vld [vmem:[%s322 + $0x1f0] sm:$0xff]
                  %387 = vst [vmem:[%s323 + $0xf8] sm:$0xff] %v386
                  %v388 = vld [vmem:[%s322 + $0x200] sm:$0xff]
                  %389 = vst [vmem:[%s323 + $0x100] sm:$0xff] %v388
                  %v390 = vld [vmem:[%s322 + $0x210] sm:$0xff]
                  %391 = vst [vmem:[%s323 + $0x108] sm:$0xff] %v390
                  %v392 = vld [vmem:[%s322 + $0x220] sm:$0xff]
                  %393 = vst [vmem:[%s323 + $0x110] sm:$0xff] %v392
                  %v394 = vld [vmem:[%s322 + $0x230] sm:$0xff]
                  %395 = vst [vmem:[%s323 + $0x118] sm:$0xff] %v394
                  %v396 = vld [vmem:[%s322 + $0x240] sm:$0xff]
                  %397 = vst [vmem:[%s323 + $0x120] sm:$0xff] %v396
                  %v398 = vld [vmem:[%s322 + $0x250] sm:$0xff]
                  %399 = vst [vmem:[%s323 + $0x128] sm:$0xff] %v398
                  %v400 = vld [vmem:[%s322 + $0x260] sm:$0xff]
                  %401 = vst [vmem:[%s323 + $0x130] sm:$0xff] %v400
                  %v402 = vld [vmem:[%s322 + $0x270] sm:$0xff]
                  %403 = vst [vmem:[%s323 + $0x138] sm:$0xff] %v402
                  %v404 = vld [vmem:[%s322 + $0x280] sm:$0xff]
                  %405 = vst [vmem:[%s323 + $0x140] sm:$0xff] %v404
                  %v406 = vld [vmem:[%s322 + $0x290] sm:$0xff]
                  %407 = vst [vmem:[%s323 + $0x148] sm:$0xff] %v406
                  %v408 = vld [vmem:[%s322 + $0x2a0] sm:$0xff]
                  %409 = vst [vmem:[%s323 + $0x150] sm:$0xff] %v408
                  %v410 = vld [vmem:[%s322 + $0x2b0] sm:$0xff]
                  %411 = vst [vmem:[%s323 + $0x158] sm:$0xff] %v410
                  %v412 = vld [vmem:[%s322 + $0x2c0] sm:$0xff]
                  %413 = vst [vmem:[%s323 + $0x160] sm:$0xff] %v412
                  %v414 = vld [vmem:[%s322 + $0x2d0] sm:$0xff]
                  %415 = vst [vmem:[%s323 + $0x168] sm:$0xff] %v414
                  %v416 = vld [vmem:[%s322 + $0x2e0] sm:$0xff]
                  %417 = vst [vmem:[%s323 + $0x170] sm:$0xff] %v416
                  %v418 = vld [vmem:[%s322 + $0x2f0] sm:$0xff]
                  %419 = vst [vmem:[%s323 + $0x178] sm:$0xff] %v418
                  %v420 = vld [vmem:[%s322 + $0x300] sm:$0xff]
                  %421 = vst [vmem:[%s323 + $0x180] sm:$0xff] %v420
                  %v422 = vld [vmem:[%s322 + $0x310] sm:$0xff]
                  %423 = vst [vmem:[%s323 + $0x188] sm:$0xff] %v422
                  %v424 = vld [vmem:[%s322 + $0x320] sm:$0xff]
                  %425 = vst [vmem:[%s323 + $0x190] sm:$0xff] %v424
                  %v426 = vld [vmem:[%s322 + $0x330] sm:$0xff]
                  %427 = vst [vmem:[%s323 + $0x198] sm:$0xff] %v426
                  %v428 = vld [vmem:[%s322 + $0x340] sm:$0xff]
                  %429 = vst [vmem:[%s323 + $0x1a0] sm:$0xff] %v428
                  %v430 = vld [vmem:[%s322 + $0x350] sm:$0xff]
                  %431 = vst [vmem:[%s323 + $0x1a8] sm:$0xff] %v430
                  %v432 = vld [vmem:[%s322 + $0x360] sm:$0xff]
                  %433 = vst [vmem:[%s323 + $0x1b0] sm:$0xff] %v432
                  %v434 = vld [vmem:[%s322 + $0x370] sm:$0xff]
                  %435 = vst [vmem:[%s323 + $0x1b8] sm:$0xff] %v434
                  %v436 = vld [vmem:[%s322 + $0x380] sm:$0xff]
                  %437 = vst [vmem:[%s323 + $0x1c0] sm:$0xff] %v436
                  %v438 = vld [vmem:[%s322 + $0x390] sm:$0xff]
                  %439 = vst [vmem:[%s323 + $0x1c8] sm:$0xff] %v438
                  %v440 = vld [vmem:[%s322 + $0x3a0] sm:$0xff]
                  %441 = vst [vmem:[%s323 + $0x1d0] sm:$0xff] %v440
                  %v442 = vld [vmem:[%s322 + $0x3b0] sm:$0xff]
                  %443 = vst [vmem:[%s323 + $0x1d8] sm:$0xff] %v442
                  %v444 = vld [vmem:[%s322 + $0x3c0] sm:$0xff]
                  %445 = vst [vmem:[%s323 + $0x1e0] sm:$0xff] %v444
                  %v446 = vld [vmem:[%s322 + $0x3d0] sm:$0xff]
                  %447 = vst [vmem:[%s323 + $0x1e8] sm:$0xff] %v446
                  %v448 = vld [vmem:[%s322 + $0x3e0] sm:$0xff]
                  %449 = vst [vmem:[%s323 + $0x1f0] sm:$0xff] %v448
                  %v450 = vld [vmem:[%s322 + $0x3f0] sm:$0xff]
                  %451 = vst [vmem:[%s323 + $0x1f8] sm:$0xff] %v450
                  %v452 = vld [vmem:[%s322 + $0x400] sm:$0xff]
                  %453 = vst [vmem:[%s323 + $0x200] sm:$0xff] %v452
                  %v454 = vld [vmem:[%s322 + $0x410] sm:$0xff]
                  %455 = vst [vmem:[%s323 + $0x208] sm:$0xff] %v454
                  %v456 = vld [vmem:[%s322 + $0x420] sm:$0xff]
                  %457 = vst [vmem:[%s323 + $0x210] sm:$0xff] %v456
                  %v458 = vld [vmem:[%s322 + $0x430] sm:$0xff]
                  %459 = vst [vmem:[%s323 + $0x218] sm:$0xff] %v458
                  %v460 = vld [vmem:[%s322 + $0x440] sm:$0xff]
                  %461 = vst [vmem:[%s323 + $0x220] sm:$0xff] %v460
                  %v462 = vld [vmem:[%s322 + $0x450] sm:$0xff]
                  %463 = vst [vmem:[%s323 + $0x228] sm:$0xff] %v462
                  %v464 = vld [vmem:[%s322 + $0x460] sm:$0xff]
                  %465 = vst [vmem:[%s323 + $0x230] sm:$0xff] %v464
                  %v466 = vld [vmem:[%s322 + $0x470] sm:$0xff]
                  %467 = vst [vmem:[%s323 + $0x238] sm:$0xff] %v466
                $region56: #{model_forward.4} parent=50 // loop_footer
                  %s321 = sadd.s32 1, %s317
                $region57: #{model_forward.4} parent=50 // loop_footer_branch
                  %316 = sbr.rel target = $region53
                $region58: #{model_forward.4} parent=50 // loop_exit
                  _
              $region51: #{model_forward.4} parent=35 // pred_fallthru
                _
              // Predicated region
              $region59: #{model_forward.4} parent=35 // pred_check
                _
              $region60: #{model_forward.4} parent=35 // pred_check_branch
                %469 = sbr.rel target = $region62
              $region61: #{model_forward.4} parent=35 // pred_region
                _
              $region62: #{model_forward.4} parent=35 // pred_fallthru
                _
            $region36: #{model_forward.4} parent=31 // pred_fallthru
              _
            // Predicated region
            $region37: #{model_forward.4} parent=31 // pred_check
              _
            $region38: #{model_forward.4} parent=31 // pred_check_branch
              %160 = sbr.rel target = $region40
            $region39: #{model_forward.4} parent=31 // pred_region
              loop: start=0, step=1, limit=1
              $region41: #{model_forward.4} parent=39 // loop_pre_header
                _
              $region42: #{model_forward.4} parent=39 // loop_header
                %s163 = sphi 0, %s167
                %p164 = scmp.ge.s32.totalorder %s163, 1
                %s168 = sphi %s154, %s154
                %s169 = sphi %s150, %s150
              $region43: #{model_forward.4} parent=39 // loop_header_branch
                %166 = sbr.rel (%p164) target = $region47
              $region44: #{model_forward.4} parent=39 // loop_body
                %v170 = vld [vmem:[%s168] sm:$0xff]
                %171 = vst [vmem:[%s169] sm:$0xff] %v170
                %v172 = vld [vmem:[%s168 + $0x10] sm:$0xff]
                %173 = vst [vmem:[%s169 + $0x8] sm:$0xff] %v172
                %v174 = vld [vmem:[%s168 + $0x20] sm:$0xff]
                %175 = vst [vmem:[%s169 + $0x10] sm:$0xff] %v174
                %v176 = vld [vmem:[%s168 + $0x30] sm:$0xff]
                %177 = vst [vmem:[%s169 + $0x18] sm:$0xff] %v176
                %v178 = vld [vmem:[%s168 + $0x40] sm:$0xff]
                %179 = vst [vmem:[%s169 + $0x20] sm:$0xff] %v178
                %v180 = vld [vmem:[%s168 + $0x50] sm:$0xff]
                %181 = vst [vmem:[%s169 + $0x28] sm:$0xff] %v180
                %v182 = vld [vmem:[%s168 + $0x60] sm:$0xff]
                %183 = vst [vmem:[%s169 + $0x30] sm:$0xff] %v182
                %v184 = vld [vmem:[%s168 + $0x70] sm:$0xff]
                %185 = vst [vmem:[%s169 + $0x38] sm:$0xff] %v184
                %v186 = vld [vmem:[%s168 + $0x80] sm:$0xff]
                %187 = vst [vmem:[%s169 + $0x40] sm:$0xff] %v186
                %v188 = vld [vmem:[%s168 + $0x90] sm:$0xff]
                %189 = vst [vmem:[%s169 + $0x48] sm:$0xff] %v188
                %v190 = vld [vmem:[%s168 + $0xa0] sm:$0xff]
                %191 = vst [vmem:[%s169 + $0x50] sm:$0xff] %v190
                %v192 = vld [vmem:[%s168 + $0xb0] sm:$0xff]
                %193 = vst [vmem:[%s169 + $0x58] sm:$0xff] %v192
                %v194 = vld [vmem:[%s168 + $0xc0] sm:$0xff]
                %195 = vst [vmem:[%s169 + $0x60] sm:$0xff] %v194
                %v196 = vld [vmem:[%s168 + $0xd0] sm:$0xff]
                %197 = vst [vmem:[%s169 + $0x68] sm:$0xff] %v196
                %v198 = vld [vmem:[%s168 + $0xe0] sm:$0xff]
                %199 = vst [vmem:[%s169 + $0x70] sm:$0xff] %v198
                %v200 = vld [vmem:[%s168 + $0xf0] sm:$0xff]
                %201 = vst [vmem:[%s169 + $0x78] sm:$0xff] %v200
                %v202 = vld [vmem:[%s168 + $0x100] sm:$0xff]
                %203 = vst [vmem:[%s169 + $0x80] sm:$0xff] %v202
                %v204 = vld [vmem:[%s168 + $0x110] sm:$0xff]
                %205 = vst [vmem:[%s169 + $0x88] sm:$0xff] %v204
                %v206 = vld [vmem:[%s168 + $0x120] sm:$0xff]
                %207 = vst [vmem:[%s169 + $0x90] sm:$0xff] %v206
                %v208 = vld [vmem:[%s168 + $0x130] sm:$0xff]
                %209 = vst [vmem:[%s169 + $0x98] sm:$0xff] %v208
                %v210 = vld [vmem:[%s168 + $0x140] sm:$0xff]
                %211 = vst [vmem:[%s169 + $0xa0] sm:$0xff] %v210
                %v212 = vld [vmem:[%s168 + $0x150] sm:$0xff]
                %213 = vst [vmem:[%s169 + $0xa8] sm:$0xff] %v212
                %v214 = vld [vmem:[%s168 + $0x160] sm:$0xff]
                %215 = vst [vmem:[%s169 + $0xb0] sm:$0xff] %v214
                %v216 = vld [vmem:[%s168 + $0x170] sm:$0xff]
                %217 = vst [vmem:[%s169 + $0xb8] sm:$0xff] %v216
                %v218 = vld [vmem:[%s168 + $0x180] sm:$0xff]
                %219 = vst [vmem:[%s169 + $0xc0] sm:$0xff] %v218
                %v220 = vld [vmem:[%s168 + $0x190] sm:$0xff]
                %221 = vst [vmem:[%s169 + $0xc8] sm:$0xff] %v220
                %v222 = vld [vmem:[%s168 + $0x1a0] sm:$0xff]
                %223 = vst [vmem:[%s169 + $0xd0] sm:$0xff] %v222
                %v224 = vld [vmem:[%s168 + $0x1b0] sm:$0xff]
                %225 = vst [vmem:[%s169 + $0xd8] sm:$0xff] %v224
                %v226 = vld [vmem:[%s168 + $0x1c0] sm:$0xff]
                %227 = vst [vmem:[%s169 + $0xe0] sm:$0xff] %v226
                %v228 = vld [vmem:[%s168 + $0x1d0] sm:$0xff]
                %229 = vst [vmem:[%s169 + $0xe8] sm:$0xff] %v228
                %v230 = vld [vmem:[%s168 + $0x1e0] sm:$0xff]
                %231 = vst [vmem:[%s169 + $0xf0] sm:$0xff] %v230
                %v232 = vld [vmem:[%s168 + $0x1f0] sm:$0xff]
                %233 = vst [vmem:[%s169 + $0xf8] sm:$0xff] %v232
                %v234 = vld [vmem:[%s168 + $0x200] sm:$0xff]
                %235 = vst [vmem:[%s169 + $0x100] sm:$0xff] %v234
                %v236 = vld [vmem:[%s168 + $0x210] sm:$0xff]
                %237 = vst [vmem:[%s169 + $0x108] sm:$0xff] %v236
                %v238 = vld [vmem:[%s168 + $0x220] sm:$0xff]
                %239 = vst [vmem:[%s169 + $0x110] sm:$0xff] %v238
                %v240 = vld [vmem:[%s168 + $0x230] sm:$0xff]
                %241 = vst [vmem:[%s169 + $0x118] sm:$0xff] %v240
                %v242 = vld [vmem:[%s168 + $0x240] sm:$0xff]
                %243 = vst [vmem:[%s169 + $0x120] sm:$0xff] %v242
                %v244 = vld [vmem:[%s168 + $0x250] sm:$0xff]
                %245 = vst [vmem:[%s169 + $0x128] sm:$0xff] %v244
                %v246 = vld [vmem:[%s168 + $0x260] sm:$0xff]
                %247 = vst [vmem:[%s169 + $0x130] sm:$0xff] %v246
                %v248 = vld [vmem:[%s168 + $0x270] sm:$0xff]
                %249 = vst [vmem:[%s169 + $0x138] sm:$0xff] %v248
                %v250 = vld [vmem:[%s168 + $0x280] sm:$0xff]
                %251 = vst [vmem:[%s169 + $0x140] sm:$0xff] %v250
                %v252 = vld [vmem:[%s168 + $0x290] sm:$0xff]
                %253 = vst [vmem:[%s169 + $0x148] sm:$0xff] %v252
                %v254 = vld [vmem:[%s168 + $0x2a0] sm:$0xff]
                %255 = vst [vmem:[%s169 + $0x150] sm:$0xff] %v254
                %v256 = vld [vmem:[%s168 + $0x2b0] sm:$0xff]
                %257 = vst [vmem:[%s169 + $0x158] sm:$0xff] %v256
                %v258 = vld [vmem:[%s168 + $0x2c0] sm:$0xff]
                %259 = vst [vmem:[%s169 + $0x160] sm:$0xff] %v258
                %v260 = vld [vmem:[%s168 + $0x2d0] sm:$0xff]
                %261 = vst [vmem:[%s169 + $0x168] sm:$0xff] %v260
                %v262 = vld [vmem:[%s168 + $0x2e0] sm:$0xff]
                %263 = vst [vmem:[%s169 + $0x170] sm:$0xff] %v262
                %v264 = vld [vmem:[%s168 + $0x2f0] sm:$0xff]
                %265 = vst [vmem:[%s169 + $0x178] sm:$0xff] %v264
                %v266 = vld [vmem:[%s168 + $0x300] sm:$0xff]
                %267 = vst [vmem:[%s169 + $0x180] sm:$0xff] %v266
                %v268 = vld [vmem:[%s168 + $0x310] sm:$0xff]
                %269 = vst [vmem:[%s169 + $0x188] sm:$0xff] %v268
                %v270 = vld [vmem:[%s168 + $0x320] sm:$0xff]
                %271 = vst [vmem:[%s169 + $0x190] sm:$0xff] %v270
                %v272 = vld [vmem:[%s168 + $0x330] sm:$0xff]
                %273 = vst [vmem:[%s169 + $0x198] sm:$0xff] %v272
                %v274 = vld [vmem:[%s168 + $0x340] sm:$0xff]
                %275 = vst [vmem:[%s169 + $0x1a0] sm:$0xff] %v274
                %v276 = vld [vmem:[%s168 + $0x350] sm:$0xff]
                %277 = vst [vmem:[%s169 + $0x1a8] sm:$0xff] %v276
                %v278 = vld [vmem:[%s168 + $0x360] sm:$0xff]
                %279 = vst [vmem:[%s169 + $0x1b0] sm:$0xff] %v278
                %v280 = vld [vmem:[%s168 + $0x370] sm:$0xff]
                %281 = vst [vmem:[%s169 + $0x1b8] sm:$0xff] %v280
                %v282 = vld [vmem:[%s168 + $0x380] sm:$0xff]
                %283 = vst [vmem:[%s169 + $0x1c0] sm:$0xff] %v282
                %v284 = vld [vmem:[%s168 + $0x390] sm:$0xff]
                %285 = vst [vmem:[%s169 + $0x1c8] sm:$0xff] %v284
                %v286 = vld [vmem:[%s168 + $0x3a0] sm:$0xff]
                %287 = vst [vmem:[%s169 + $0x1d0] sm:$0xff] %v286
                %v288 = vld [vmem:[%s168 + $0x3b0] sm:$0xff]
                %289 = vst [vmem:[%s169 + $0x1d8] sm:$0xff] %v288
                %v290 = vld [vmem:[%s168 + $0x3c0] sm:$0xff]
                %291 = vst [vmem:[%s169 + $0x1e0] sm:$0xff] %v290
                %v292 = vld [vmem:[%s168 + $0x3d0] sm:$0xff]
                %293 = vst [vmem:[%s169 + $0x1e8] sm:$0xff] %v292
                %v294 = vld [vmem:[%s168 + $0x3e0] sm:$0xff]
                %295 = vst [vmem:[%s169 + $0x1f0] sm:$0xff] %v294
                %v296 = vld [vmem:[%s168 + $0x3f0] sm:$0xff]
                %297 = vst [vmem:[%s169 + $0x1f8] sm:$0xff] %v296
                %v298 = vld [vmem:[%s168 + $0x400] sm:$0xff]
                %299 = vst [vmem:[%s169 + $0x200] sm:$0xff] %v298
                %v300 = vld [vmem:[%s168 + $0x410] sm:$0xff]
                %301 = vst [vmem:[%s169 + $0x208] sm:$0xff] %v300
                %v302 = vld [vmem:[%s168 + $0x420] sm:$0xff]
                %303 = vst [vmem:[%s169 + $0x210] sm:$0xff] %v302
                %v304 = vld [vmem:[%s168 + $0x430] sm:$0xff]
                %305 = vst [vmem:[%s169 + $0x218] sm:$0xff] %v304
                %v306 = vld [vmem:[%s168 + $0x440] sm:$0xff]
                %307 = vst [vmem:[%s169 + $0x220] sm:$0xff] %v306
                %v308 = vld [vmem:[%s168 + $0x450] sm:$0xff]
                %309 = vst [vmem:[%s169 + $0x228] sm:$0xff] %v308
                %v310 = vld [vmem:[%s168 + $0x460] sm:$0xff]
                %311 = vst [vmem:[%s169 + $0x230] sm:$0xff] %v310
                %v312 = vld [vmem:[%s168 + $0x470] sm:$0xff]
                %313 = vst [vmem:[%s169 + $0x238] sm:$0xff] %v312
              $region45: #{model_forward.4} parent=39 // loop_footer
                %s167 = sadd.s32 1, %s163
              $region46: #{model_forward.4} parent=39 // loop_footer_branch
                %162 = sbr.rel target = $region42
              $region47: #{model_forward.4} parent=39 // loop_exit
                _
            $region40: #{model_forward.4} parent=31 // pred_fallthru
              _
          $region32: #{model_forward.4} parent=27 // pred_fallthru
            _
          %470 = vnop
        $region28: #{model_forward.4} parent=23 // pred_fallthru
          _
      $region24: #{model_forward.4} parent=5 // pred_fallthru
        _
      %p471 = scmp.le.s32.totalorder 1, %s9
      %p472 = scmp.lt.s32.totalorder %s9, 5
      %p473 = pnand %p471, %p472
      %p474 = pneg %p473
      // Predicated region
      $region63: #{model_forward.4} parent=5 // pred_check
        _
      $region64: #{model_forward.4} parent=5 // pred_check_branch
        %476 = sbr.rel (%p473) target = $region66
      $region65: #{model_forward.4} parent=5 // pred_region
        %s477 = ssub.s32 %s9, 1
        %s478 = sand.u32 %s36, 1
        %s479 = sand.u32 %s36, 1
        %s480 = smul.addr %s479, 576
        %s481 = scalar_lea.vmem [#allocation2], %s480
        // Predicated region
        $region67: #{model_forward.4} parent=65 // pred_check
          %p482 = pneg %p49
        $region68: #{model_forward.4} parent=65 // pred_check_branch
          %484 = sbr.rel (%p482) target = $region70
        $region69: #{model_forward.4} parent=65 // pred_region
          _
        $region70: #{model_forward.4} parent=65 // pred_fallthru
          _
        %s485 = sand.u32 %s36, 1
        %s486 = sand.u32 %s36, 1
        %s487 = smul.addr %s486, 576
        %s488 = scalar_lea.vmem [#allocation2], %s487
        %p489 = pneg %p49
        %p490 = pneg %p46
        %p491 = pneg %p70
        %p492 = pneg %p67
        %p493 = pneg %p91
        %p494 = pneg %p88
        %p495 = pneg %p119
        %p496 = pneg %p116
        %s497 = sand.u32 %s106, 1
        %s498 = sand.u32 %s106, 1
        %s499 = smul.addr %s498, 32
        %s500 = scalar_lea.vmem [#allocation3], %s499
        %v501 = vld [vmem:[%s1] sm:$0xff]
        %v502 = vld [vmem:[%s1 + $0x8] sm:$0xff]
        %v503 = vld [vmem:[%s1 + $0x10] sm:$0xff]
        %v504 = vld [vmem:[%s1 + $0x18] sm:$0xff]
        %v505 = vld [vmem:[%s1 + $0x20] sm:$0xff]
        %v506 = vld [vmem:[%s1 + $0x28] sm:$0xff]
        %v507 = vld [vmem:[%s1 + $0x30] sm:$0xff]
        %v508 = vld [vmem:[%s1 + $0x38] sm:$0xff]
        %v509 = vld [vmem:[%s481] sm:$0xff]
        %v510 = vld [vmem:[%s481 + $0x8] sm:$0xff]
        %v511 = vld [vmem:[%s481 + $0x10] sm:$0xff]
        %v512 = vld [vmem:[%s481 + $0x18] sm:$0xff]
        %v513 = vld [vmem:[%s481 + $0x20] sm:$0xff]
        %v514 = vld [vmem:[%s481 + $0x28] sm:$0xff]
        %v515 = vld [vmem:[%s481 + $0x30] sm:$0xff]
        %v516 = vld [vmem:[%s481 + $0x38] sm:$0xff]
        %v517 = vld [vmem:[%s481 + $0x40] sm:$0xff]
        %v518 = vld [vmem:[%s481 + $0x48] sm:$0xff]
        %v519 = vld [vmem:[%s481 + $0x50] sm:$0xff]
        %v520 = vld [vmem:[%s481 + $0x58] sm:$0xff]
        %v521 = vld [vmem:[%s481 + $0x60] sm:$0xff]
        %v522 = vld [vmem:[%s481 + $0x68] sm:$0xff]
        %v523 = vld [vmem:[%s481 + $0x70] sm:$0xff]
        %v524 = vld [vmem:[%s481 + $0x78] sm:$0xff]
        %v525 = vld [vmem:[%s481 + $0x80] sm:$0xff]
        %v526 = vld [vmem:[%s481 + $0x88] sm:$0xff]
        %vm527 = vcmask 130048
        %v529 = vsel %vm527, %v502, 0
        %v532 = vsel %vm527, %v504, 0
        %v535 = vsel %vm527, %v506, 0
        %v538 = vsel %vm527, %v508, 0
        %540 = vmatprep.subr.mxu0 0.0
        %541 = vmatpush1.msra.mxu0 %v509
        %542 = vmatprep.subr.mxu0 0.0
        %543 = vmatpush1.msra.mxu0 %v510
        %544 = vmatprep.subr.mxu0 0.0
        %545 = vmatpush1.msra.mxu0 %v511
        %546 = vmatprep.subr.mxu0 0.0
        %547 = vmatpush1.msra.mxu0 %v512
        %548 = vmatprep.subr.mxu0 0.0
        %549 = vmatpush1.msra.mxu0 %v513
        %550 = vmatprep.subr.mxu0 0.0
        %551 = vmatpush1.msra.mxu0 %v514
        %552 = vmatprep.subr.mxu0 0.0
        %553 = vmatpush1.msra.mxu0 %v515
        %554 = vmatprep.subr.mxu0 0.0
        %555 = vmatpush1.msra.mxu0 %v516
        %556 = vmatprep.subr.mxu0 0.0
        %557 = vmatpush1.msra.mxu0 %v517
        %558 = vmatprep.subr.mxu0 0.0
        %559 = vmatpush1.msra.mxu0 %v518
        %560 = vmatprep.subr.mxu0 0.0
        %561 = vmatpush1.msra.mxu0 %v519
        %562 = vmatprep.subr.mxu0 0.0
        %563 = vmatpush1.msra.mxu0 %v520
        %564 = vmatprep.subr.mxu0 0.0
        %565 = vmatpush1.msra.mxu0 %v521
        %566 = vmatprep.subr.mxu0 0.0
        %567 = vmatpush1.msra.mxu0 %v522
        %568 = vmatprep.subr.mxu0 0.0
        %569 = vmatpush1.msra.mxu0 %v523
        %570 = vmatprep.subr.mxu0 0.0
        %571 = vmatpush1.msra.mxu0 %v524
        %572 = vmatprep.subr.mxu0 0.0
        %573 = vmatpush1.msra.mxu0 %v525
        %574 = vmatprep.subr.mxu0 0.0
        %575 = vmatpush1.msra.mxu0 %v526
        %576 = vmatprep.subr.mxu0 0.0
        %577 = vmatpush1.msra.mxu0 0.0
        %578 = vmatprep.subr.mxu0 0.0
        %579 = vmatpush1.msra.mxu0 0.0
        %580 = vmatprep.subr.mxu0 0.0
        %581 = vmatpush1.msra.mxu0 0.0
        %582 = vmatprep.subr.mxu0 0.0
        %583 = vmatpush1.msra.mxu0 0.0
        %584 = vmatprep.subr.mxu0 0.0
        %585 = vmatpush1.msra.mxu0 0.0
        %586 = vmatprep.subr.mxu0 0.0
        %587 = vmatpush1.msra.mxu0 0.0
        %588 = vmatprep.subr.mxu0 0.0
        %589 = vmatpush1.msra.mxu0 0.0
        %590 = vmatprep.subr.mxu0 0.0
        %591 = vmatpush1.msra.mxu0 0.0
        %592 = vmatprep.subr.mxu0 0.0
        %593 = vmatpush1.msra.mxu0 0.0
        %594 = vmatprep.subr.mxu0 0.0
        %595 = vmatpush1.msra.mxu0 0.0
        %596 = vmatprep.subr.mxu0 0.0
        %597 = vmatpush1.msra.mxu0 0.0
        %598 = vmatprep.subr.mxu0 0.0
        %599 = vmatpush1.msra.mxu0 0.0
        %600 = vmatprep.subr.mxu0 0.0
        %601 = vmatpush1.msra.mxu0 0.0
        %602 = vmatprep.subr.mxu0 0.0
        %603 = vmatpush1.msra.mxu0 0.0
        %604 = vmatprep.mubr.f32.mxu0 %v529
        %605 = vmatmul.mubr.f32.gmra.mrb[0].mxu0 %v501
        %v606 = vpop.f32.mrb[0].mxu0
        %v607 = vadd.f32 0.0, %v606
        %v608 = vpop.f32.mrb[0].mxu0
        %609 = vmatprep.mubr.f32.mxu0 %v532
        %610 = vmatmul.mubr.f32.gmra.mrb[0].mxu0 %v503
        %v611 = vpop.f32.mrb[0].mxu0
        %v612 = vadd.f32 0.0, %v611
        %v613 = vpop.f32.mrb[0].mxu0
        %614 = vmatprep.mubr.f32.mxu0 %v535
        %615 = vmatmul.mubr.f32.gmra.mrb[0].mxu0 %v505
        %v616 = vpop.f32.mrb[0].mxu0
        %v617 = vadd.f32 0.0, %v616
        %v618 = vpop.f32.mrb[0].mxu0
        %619 = vmatprep.mubr.f32.mxu0 %v538
        %620 = vmatmul.mubr.f32.gmra.mrb[0].mxu0 %v507
        %v621 = vpop.f32.mrb[0].mxu0
        %v622 = vadd.f32 0.0, %v621
        %v623 = vpop.f32.mrb[0].mxu0
        %624 = vdwg.mxu0
        %s625 = scalar_lea.vmem %s481, 144 [#allocation2]
        %v626 = vld [vmem:[%s625] sm:$0xff]
        %v627 = vld [vmem:[%s625 + $0x8] sm:$0xff]
        %v628 = vld [vmem:[%s625 + $0x10] sm:$0xff]
        %v629 = vld [vmem:[%s625 + $0x18] sm:$0xff]
        %v630 = vld [vmem:[%s625 + $0x20] sm:$0xff]
        %v631 = vld [vmem:[%s625 + $0x28] sm:$0xff]
        %v632 = vld [vmem:[%s625 + $0x30] sm:$0xff]
        %v633 = vld [vmem:[%s625 + $0x38] sm:$0xff]
        %v634 = vld [vmem:[%s625 + $0x40] sm:$0xff]
        %v635 = vld [vmem:[%s625 + $0x48] sm:$0xff]
        %v636 = vld [vmem:[%s625 + $0x50] sm:$0xff]
        %v637 = vld [vmem:[%s625 + $0x58] sm:$0xff]
        %v638 = vld [vmem:[%s625 + $0x60] sm:$0xff]
        %v639 = vld [vmem:[%s625 + $0x68] sm:$0xff]
        %v640 = vld [vmem:[%s625 + $0x70] sm:$0xff]
        %v641 = vld [vmem:[%s625 + $0x78] sm:$0xff]
        %v642 = vld [vmem:[%s625 + $0x80] sm:$0xff]
        %v643 = vld [vmem:[%s625 + $0x88] sm:$0xff]
        %644 = vmatprep.subr.mxu0 0.0
        %645 = vmatpush1.msra.mxu0 %v626
        %646 = vmatprep.subr.mxu0 0.0
        %647 = vmatpush1.msra.mxu0 %v627
        %648 = vmatprep.subr.mxu0 0.0
        %649 = vmatpush1.msra.mxu0 %v628
        %650 = vmatprep.subr.mxu0 0.0
        %651 = vmatpush1.msra.mxu0 %v629
        %652 = vmatprep.subr.mxu0 0.0
        %653 = vmatpush1.msra.mxu0 %v630
        %654 = vmatprep.subr.mxu0 0.0
        %655 = vmatpush1.msra.mxu0 %v631
        %656 = vmatprep.subr.mxu0 0.0
        %657 = vmatpush1.msra.mxu0 %v632
        %658 = vmatprep.subr.mxu0 0.0
        %659 = vmatpush1.msra.mxu0 %v633
        %660 = vmatprep.subr.mxu0 0.0
        %661 = vmatpush1.msra.mxu0 %v634
        %662 = vmatprep.subr.mxu0 0.0
        %663 = vmatpush1.msra.mxu0 %v635
        %664 = vmatprep.subr.mxu0 0.0
        %665 = vmatpush1.msra.mxu0 %v636
        %666 = vmatprep.subr.mxu0 0.0
        %667 = vmatpush1.msra.mxu0 %v637
        %668 = vmatprep.subr.mxu0 0.0
        %669 = vmatpush1.msra.mxu0 %v638
        %670 = vmatprep.subr.mxu0 0.0
        %671 = vmatpush1.msra.mxu0 %v639
        %672 = vmatprep.subr.mxu0 0.0
        %673 = vmatpush1.msra.mxu0 %v640
        %674 = vmatprep.subr.mxu0 0.0
        %675 = vmatpush1.msra.mxu0 %v641
        %676 = vmatprep.subr.mxu0 0.0
        %677 = vmatpush1.msra.mxu0 %v642
        %678 = vmatprep.subr.mxu0 0.0
        %679 = vmatpush1.msra.mxu0 %v643
        %680 = vmatprep.subr.mxu0 0.0
        %681 = vmatpush1.msra.mxu0 0.0
        %682 = vmatprep.subr.mxu0 0.0
        %683 = vmatpush1.msra.mxu0 0.0
        %684 = vmatprep.subr.mxu0 0.0
        %685 = vmatpush1.msra.mxu0 0.0
        %686 = vmatprep.subr.mxu0 0.0
        %687 = vmatpush1.msra.mxu0 0.0
        %688 = vmatprep.subr.mxu0 0.0
        %689 = vmatpush1.msra.mxu0 0.0
        %690 = vmatprep.subr.mxu0 0.0
        %691 = vmatpush1.msra.mxu0 0.0
        %692 = vmatprep.subr.mxu0 0.0
        %693 = vmatpush1.msra.mxu0 0.0
        %694 = vmatprep.subr.mxu0 0.0
        %695 = vmatpush1.msra.mxu0 0.0
        %696 = vmatprep.subr.mxu0 0.0
        %697 = vmatpush1.msra.mxu0 0.0
        %698 = vmatprep.subr.mxu0 0.0
        %699 = vmatpush1.msra.mxu0 0.0
        %700 = vmatprep.subr.mxu0 0.0
        %701 = vmatpush1.msra.mxu0 0.0
        %702 = vmatprep.subr.mxu0 0.0
        %703 = vmatpush1.msra.mxu0 0.0
        %704 = vmatprep.subr.mxu0 0.0
        %705 = vmatpush1.msra.mxu0 0.0
        %706 = vmatprep.subr.mxu0 0.0
        %707 = vmatpush1.msra.mxu0 0.0
        %708 = vmatprep.mubr.f32.mxu0 %v529
        %709 = vmatmul.mubr.f32.gmra.mrb[0].mxu0 %v501
        %v710 = vpop.f32.mrb[0].mxu0
        %v711 = vadd.f32 0.0, %v710
        %v712 = vpop.f32.mrb[0].mxu0
        %713 = vmatprep.mubr.f32.mxu0 %v532
        %714 = vmatmul.mubr.f32.gmra.mrb[0].mxu0 %v503
        %v715 = vpop.f32.mrb[0].mxu0
        %v716 = vadd.f32 0.0, %v715
        %v717 = vpop.f32.mrb[0].mxu0
        %718 = vmatprep.mubr.f32.mxu0 %v535
        %719 = vmatmul.mubr.f32.gmra.mrb[0].mxu0 %v505
        %v720 = vpop.f32.mrb[0].mxu0
        %v721 = vadd.f32 0.0, %v720
        %v722 = vpop.f32.mrb[0].mxu0
        %723 = vmatprep.mubr.f32.mxu0 %v538
        %724 = vmatmul.mubr.f32.gmra.mrb[0].mxu0 %v507
        %v725 = vpop.f32.mrb[0].mxu0
        %v726 = vadd.f32 0.0, %v725
        %v727 = vpop.f32.mrb[0].mxu0
        %728 = vdwg.mxu0
        %v729 = vmax.f32 %v607, %v711
        %v730 = vmax.f32 %v612, %v716
        %v731 = vmax.f32 %v617, %v721
        %v732 = vmax.f32 %v622, %v726
        %s733 = scalar_lea.vmem %s481, 288 [#allocation2]
        %v734 = vld [vmem:[%s733] sm:$0xff]
        %v735 = vld [vmem:[%s733 + $0x8] sm:$0xff]
        %v736 = vld [vmem:[%s733 + $0x10] sm:$0xff]
        %v737 = vld [vmem:[%s733 + $0x18] sm:$0xff]
        %v738 = vld [vmem:[%s733 + $0x20] sm:$0xff]
        %v739 = vld [vmem:[%s733 + $0x28] sm:$0xff]
        %v740 = vld [vmem:[%s733 + $0x30] sm:$0xff]
        %v741 = vld [vmem:[%s733 + $0x38] sm:$0xff]
        %v742 = vld [vmem:[%s733 + $0x40] sm:$0xff]
        %v743 = vld [vmem:[%s733 + $0x48] sm:$0xff]
        %v744 = vld [vmem:[%s733 + $0x50] sm:$0xff]
        %v745 = vld [vmem:[%s733 + $0x58] sm:$0xff]
        %v746 = vld [vmem:[%s733 + $0x60] sm:$0xff]
        %v747 = vld [vmem:[%s733 + $0x68] sm:$0xff]
        %v748 = vld [vmem:[%s733 + $0x70] sm:$0xff]
        %v749 = vld [vmem:[%s733 + $0x78] sm:$0xff]
        %v750 = vld [vmem:[%s733 + $0x80] sm:$0xff]
        %v751 = vld [vmem:[%s733 + $0x88] sm:$0xff]
        %752 = vmatprep.subr.mxu0 0.0
        %753 = vmatpush1.msra.mxu0 %v734
        %754 = vmatprep.subr.mxu0 0.0
        %755 = vmatpush1.msra.mxu0 %v735
        %756 = vmatprep.subr.mxu0 0.0
        %757 = vmatpush1.msra.mxu0 %v736
        %758 = vmatprep.subr.mxu0 0.0
        %759 = vmatpush1.msra.mxu0 %v737
        %760 = vmatprep.subr.mxu0 0.0
        %761 = vmatpush1.msra.mxu0 %v738
        %762 = vmatprep.subr.mxu0 0.0
        %763 = vmatpush1.msra.mxu0 %v739
        %764 = vmatprep.subr.mxu0 0.0
        %765 = vmatpush1.msra.mxu0 %v740
        %766 = vmatprep.subr.mxu0 0.0
        %767 = vmatpush1.msra.mxu0 %v741
        %768 = vmatprep.subr.mxu0 0.0
        %769 = vmatpush1.msra.mxu0 %v742
        %770 = vmatprep.subr.mxu0 0.0
        %771 = vmatpush1.msra.mxu0 %v743
        %772 = vmatprep.subr.mxu0 0.0
        %773 = vmatpush1.msra.mxu0 %v744
        %774 = vmatprep.subr.mxu0 0.0
        %775 = vmatpush1.msra.mxu0 %v745
        %776 = vmatprep.subr.mxu0 0.0
        %777 = vmatpush1.msra.mxu0 %v746
        %778 = vmatprep.subr.mxu0 0.0
        %779 = vmatpush1.msra.mxu0 %v747
        %780 = vmatprep.subr.mxu0 0.0
        %781 = vmatpush1.msra.mxu0 %v748
        %782 = vmatprep.subr.mxu0 0.0
        %783 = vmatpush1.msra.mxu0 %v749
        %784 = vmatprep.subr.mxu0 0.0
        %785 = vmatpush1.msra.mxu0 %v750
        %786 = vmatprep.subr.mxu0 0.0
        %787 = vmatpush1.msra.mxu0 %v751
        %788 = vmatprep.subr.mxu0 0.0
        %789 = vmatpush1.msra.mxu0 0.0
        %790 = vmatprep.subr.mxu0 0.0
        %791 = vmatpush1.msra.mxu0 0.0
        %792 = vmatprep.subr.mxu0 0.0
        %793 = vmatpush1.msra.mxu0 0.0
        %794 = vmatprep.subr.mxu0 0.0
        %795 = vmatpush1.msra.mxu0 0.0
        %796 = vmatprep.subr.mxu0 0.0
        %797 = vmatpush1.msra.mxu0 0.0
        %798 = vmatprep.subr.mxu0 0.0
        %799 = vmatpush1.msra.mxu0 0.0
        %800 = vmatprep.subr.mxu0 0.0
        %801 = vmatpush1.msra.mxu0 0.0
        %802 = vmatprep.subr.mxu0 0.0
        %803 = vmatpush1.msra.mxu0 0.0
        %804 = vmatprep.subr.mxu0 0.0
        %805 = vmatpush1.msra.mxu0 0.0
        %806 = vmatprep.subr.mxu0 0.0
        %807 = vmatpush1.msra.mxu0 0.0
        %808 = vmatprep.subr.mxu0 0.0
        %809 = vmatpush1.msra.mxu0 0.0
        %810 = vmatprep.subr.mxu0 0.0
        %811 = vmatpush1.msra.mxu0 0.0
        %812 = vmatprep.subr.mxu0 0.0
        %813 = vmatpush1.msra.mxu0 0.0
        %814 = vmatprep.subr.mxu0 0.0
        %815 = vmatpush1.msra.mxu0 0.0
        %816 = vmatprep.mubr.f32.mxu0 %v529
        %817 = vmatmul.mubr.f32.gmra.mrb[0].mxu0 %v501
        %v818 = vpop.f32.mrb[0].mxu0
        %v819 = vadd.f32 0.0, %v818
        %v820 = vpop.f32.mrb[0].mxu0
        %821 = vmatprep.mubr.f32.mxu0 %v532
        %822 = vmatmul.mubr.f32.gmra.mrb[0].mxu0 %v503
        %v823 = vpop.f32.mrb[0].mxu0
        %v824 = vadd.f32 0.0, %v823
        %v825 = vpop.f32.mrb[0].mxu0
        %826 = vmatprep.mubr.f32.mxu0 %v535
        %827 = vmatmul.mubr.f32.gmra.mrb[0].mxu0 %v505
        %v828 = vpop.f32.mrb[0].mxu0
        %v829 = vadd.f32 0.0, %v828
        %v830 = vpop.f32.mrb[0].mxu0
        %831 = vmatprep.mubr.f32.mxu0 %v538
        %832 = vmatmul.mubr.f32.gmra.mrb[0].mxu0 %v507
        %v833 = vpop.f32.mrb[0].mxu0
        %v834 = vadd.f32 0.0, %v833
        %v835 = vpop.f32.mrb[0].mxu0
        %836 = vdwg.mxu0
        %v837 = vmax.f32 %v729, %v819
        %v838 = vmax.f32 %v730, %v824
        %v839 = vmax.f32 %v731, %v829
        %v840 = vmax.f32 %v732, %v834
        %s841 = scalar_lea.vmem %s481, 432 [#allocation2]
        %v842 = vld [vmem:[%s841] sm:$0xff]
        %v843 = vld [vmem:[%s841 + $0x8] sm:$0xff]
        %v844 = vld [vmem:[%s841 + $0x10] sm:$0xff]
        %v845 = vld [vmem:[%s841 + $0x18] sm:$0xff]
        %v846 = vld [vmem:[%s841 + $0x20] sm:$0xff]
        %v847 = vld [vmem:[%s841 + $0x28] sm:$0xff]
        %v848 = vld [vmem:[%s841 + $0x30] sm:$0xff]
        %v849 = vld [vmem:[%s841 + $0x38] sm:$0xff]
        %v850 = vld [vmem:[%s841 + $0x40] sm:$0xff]
        %v851 = vld [vmem:[%s841 + $0x48] sm:$0xff]
        %v852 = vld [vmem:[%s841 + $0x50] sm:$0xff]
        %v853 = vld [vmem:[%s841 + $0x58] sm:$0xff]
        %v854 = vld [vmem:[%s841 + $0x60] sm:$0xff]
        %v855 = vld [vmem:[%s841 + $0x68] sm:$0xff]
        %v856 = vld [vmem:[%s841 + $0x70] sm:$0xff]
        %v857 = vld [vmem:[%s841 + $0x78] sm:$0xff]
        %v858 = vld [vmem:[%s841 + $0x80] sm:$0xff]
        %v859 = vld [vmem:[%s841 + $0x88] sm:$0xff]
        %860 = vmatprep.subr.mxu0 0.0
        %861 = vmatpush1.msra.mxu0 %v842
        %862 = vmatprep.subr.mxu0 0.0
        %863 = vmatpush1.msra.mxu0 %v843
        %864 = vmatprep.subr.mxu0 0.0
        %865 = vmatpush1.msra.mxu0 %v844
        %866 = vmatprep.subr.mxu0 0.0
        %867 = vmatpush1.msra.mxu0 %v845
        %868 = vmatprep.subr.mxu0 0.0
        %869 = vmatpush1.msra.mxu0 %v846
        %870 = vmatprep.subr.mxu0 0.0
        %871 = vmatpush1.msra.mxu0 %v847
        %872 = vmatprep.subr.mxu0 0.0
        %873 = vmatpush1.msra.mxu0 %v848
        %874 = vmatprep.subr.mxu0 0.0
        %875 = vmatpush1.msra.mxu0 %v849
        %876 = vmatprep.subr.mxu0 0.0
        %877 = vmatpush1.msra.mxu0 %v850
        %878 = vmatprep.subr.mxu0 0.0
        %879 = vmatpush1.msra.mxu0 %v851
        %880 = vmatprep.subr.mxu0 0.0
        %881 = vmatpush1.msra.mxu0 %v852
        %882 = vmatprep.subr.mxu0 0.0
        %883 = vmatpush1.msra.mxu0 %v853
        %884 = vmatprep.subr.mxu0 0.0
        %885 = vmatpush1.msra.mxu0 %v854
        %886 = vmatprep.subr.mxu0 0.0
        %887 = vmatpush1.msra.mxu0 %v855
        %888 = vmatprep.subr.mxu0 0.0
        %889 = vmatpush1.msra.mxu0 %v856
        %890 = vmatprep.subr.mxu0 0.0
        %891 = vmatpush1.msra.mxu0 %v857
        %892 = vmatprep.subr.mxu0 0.0
        %893 = vmatpush1.msra.mxu0 %v858
        %894 = vmatprep.subr.mxu0 0.0
        %895 = vmatpush1.msra.mxu0 %v859
        %896 = vmatprep.subr.mxu0 0.0
        %897 = vmatpush1.msra.mxu0 0.0
        %898 = vmatprep.subr.mxu0 0.0
        %899 = vmatpush1.msra.mxu0 0.0
        %900 = vmatprep.subr.mxu0 0.0
        %901 = vmatpush1.msra.mxu0 0.0
        %902 = vmatprep.subr.mxu0 0.0
        %903 = vmatpush1.msra.mxu0 0.0
        %904 = vmatprep.subr.mxu0 0.0
        %905 = vmatpush1.msra.mxu0 0.0
        %906 = vmatprep.subr.mxu0 0.0
        %907 = vmatpush1.msra.mxu0 0.0
        %908 = vmatprep.subr.mxu0 0.0
        %909 = vmatpush1.msra.mxu0 0.0
        %910 = vmatprep.subr.mxu0 0.0
        %911 = vmatpush1.msra.mxu0 0.0
        %912 = vmatprep.subr.mxu0 0.0
        %913 = vmatpush1.msra.mxu0 0.0
        %914 = vmatprep.subr.mxu0 0.0
        %915 = vmatpush1.msra.mxu0 0.0
        %916 = vmatprep.subr.mxu0 0.0
        %917 = vmatpush1.msra.mxu0 0.0
        %918 = vmatprep.subr.mxu0 0.0
        %919 = vmatpush1.msra.mxu0 0.0
        %920 = vmatprep.subr.mxu0 0.0
        %921 = vmatpush1.msra.mxu0 0.0
        %922 = vmatprep.subr.mxu0 0.0
        %923 = vmatpush1.msra.mxu0 0.0
        %924 = vmatprep.mubr.f32.mxu0 %v529
        %925 = vmatmul.mubr.f32.gmra.mrb[0].mxu0 %v501
        %v926 = vpop.f32.mrb[0].mxu0
        %v927 = vadd.f32 0.0, %v926
        %v928 = vpop.f32.mrb[0].mxu0
        %929 = vmatprep.mubr.f32.mxu0 %v532
        %930 = vmatmul.mubr.f32.gmra.mrb[0].mxu0 %v503
        %v931 = vpop.f32.mrb[0].mxu0
        %v932 = vadd.f32 0.0, %v931
        %v933 = vpop.f32.mrb[0].mxu0
        %934 = vmatprep.mubr.f32.mxu0 %v535
        %935 = vmatmul.mubr.f32.gmra.mrb[0].mxu0 %v505
        %v936 = vpop.f32.mrb[0].mxu0
        %v937 = vadd.f32 0.0, %v936
        %v938 = vpop.f32.mrb[0].mxu0
        %939 = vmatprep.mubr.f32.mxu0 %v538
        %940 = vmatmul.mubr.f32.gmra.mrb[0].mxu0 %v507
        %v941 = vpop.f32.mrb[0].mxu0
        %v942 = vadd.f32 0.0, %v941
        %v943 = vpop.f32.mrb[0].mxu0
        %944 = vdwg.mxu0
        %v945 = vmax.f32 %v837, %v927
        %v946 = vmax.f32 %v838, %v932
        %v947 = vmax.f32 %v839, %v937
        %v948 = vmax.f32 %v840, %v942
        %v949 = vld [vmem:[%s2] sm:$0xff]
        %v950 = vld [vmem:[%s2 + $0x8] sm:$0xff]
        %v951 = vld [vmem:[%s2 + $0x10] sm:$0xff]
        %v952 = vld [vmem:[%s2 + $0x18] sm:$0xff]
        %954 = vset.pattern.permute.xlu0 0
        %955 = vperm.xlu0 %954, %v949
        %v956 = vpop.permute.xlu0 %955
        %959 = vset.pattern.permute.xlu0 0
        %960 = vperm.xlu0 %959, %v950
        %v961 = vpop.permute.xlu0 %960
        %964 = vset.pattern.permute.xlu0 0
        %965 = vperm.xlu0 %964, %v951
        %v966 = vpop.permute.xlu0 %965
        %969 = vset.pattern.permute.xlu0 0
        %970 = vperm.xlu0 %969, %v952
        %v971 = vpop.permute.xlu0 %970
        %v973 = vadd.f32 %v945, %v956
        %v974 = vadd.f32 %v946, %v961
        %v975 = vadd.f32 %v947, %v966
        %v976 = vadd.f32 %v948, %v971
        %v977 = vmax.f32 %v973, 0.0
        %v978 = vmax.f32 %v974, 0.0
        %v979 = vmax.f32 %v975, 0.0
        %v980 = vmax.f32 %v976, 0.0
        %981 = vst [vmem:[%s500] sm:$0xff] %v977
        %982 = vst [vmem:[%s500 + $0x8] sm:$0xff] %v978
        %983 = vst [vmem:[%s500 + $0x10] sm:$0xff] %v979
        %984 = vst [vmem:[%s500 + $0x18] sm:$0xff] %v980
        %s985 = sand.u32 %s106, 1
        %s986 = sand.u32 %s106, 1
        %s987 = smul.addr %s986, 32
        %s988 = scalar_lea.vmem [#allocation3], %s987
        // Predicated region
        $region71: #{model_forward.4} parent=65 // pred_check
          %p989 = pneg %p116
        $region72: #{model_forward.4} parent=65 // pred_check_branch
          %991 = sbr.rel (%p989) target = $region74
        $region73: #{model_forward.4} parent=65 // pred_region
          %s992 = smul.addr %s18, 8
          %s993 = sadd.s32 %s19, %s992
          %s994 = smul.addr %s993, 8
          %s995 = scalar_lea.vmem %s3, %s994
          // Predicated region
          $region75: #{model_forward.4} parent=73 // pred_check
            _
          $region76: #{model_forward.4} parent=73 // pred_check_branch
            %997 = sbr.rel (0) target = $region78
          $region77: #{model_forward.4} parent=73 // pred_region
            // Predicated region
            $region79: #{model_forward.4} parent=77 // pred_check
              _
            $region80: #{model_forward.4} parent=77 // pred_check_branch
              %999 = sbr.rel (0) target = $region82
            $region81: #{model_forward.4} parent=77 // pred_region
              // Predicated region
              $region94: #{model_forward.4} parent=81 // pred_check
                _
              $region95: #{model_forward.4} parent=81 // pred_check_branch
                %1020 = sbr.rel (0) target = $region97
              $region96: #{model_forward.4} parent=81 // pred_region
                loop: start=0, step=1, limit=1
                $region98: #{model_forward.4} parent=96 // loop_pre_header
                  _
                $region99: #{model_forward.4} parent=96 // loop_header
                  %s1022 = sphi 0, %s1026
                  %p1023 = scmp.ge.s32.totalorder %s1022, 1
                  %s1027 = sphi %s988, %s988
                  %s1028 = sphi %s995, %s995
                $region100: #{model_forward.4} parent=96 // loop_header_branch
                  %1025 = sbr.rel (%p1023) target = $region104
                $region101: #{model_forward.4} parent=96 // loop_body
                  %v1029 = vld [vmem:[%s1027] sm:$0xff]
                  %1030 = vst [vmem:[%s1028] sm:$0xff] %v1029
                  %v1031 = vld [vmem:[%s1027 + $0x8] sm:$0xff]
                  %1032 = vst [vmem:[%s1028 + $0x10] sm:$0xff] %v1031
                  %v1033 = vld [vmem:[%s1027 + $0x10] sm:$0xff]
                  %1034 = vst [vmem:[%s1028 + $0x20] sm:$0xff] %v1033
                  %v1035 = vld [vmem:[%s1027 + $0x18] sm:$0xff]
                  %1036 = vst [vmem:[%s1028 + $0x30] sm:$0xff] %v1035
                $region102: #{model_forward.4} parent=96 // loop_footer
                  %s1026 = sadd.s32 1, %s1022
                $region103: #{model_forward.4} parent=96 // loop_footer_branch
                  %1021 = sbr.rel target = $region99
                $region104: #{model_forward.4} parent=96 // loop_exit
                  _
              $region97: #{model_forward.4} parent=81 // pred_fallthru
                _
              // Predicated region
              $region105: #{model_forward.4} parent=81 // pred_check
                _
              $region106: #{model_forward.4} parent=81 // pred_check_branch
                %1038 = sbr.rel target = $region108
              $region107: #{model_forward.4} parent=81 // pred_region
                _
              $region108: #{model_forward.4} parent=81 // pred_fallthru
                _
            $region82: #{model_forward.4} parent=77 // pred_fallthru
              _
            // Predicated region
            $region83: #{model_forward.4} parent=77 // pred_check
              _
            $region84: #{model_forward.4} parent=77 // pred_check_branch
              %1001 = sbr.rel target = $region86
            $region85: #{model_forward.4} parent=77 // pred_region
              loop: start=0, step=1, limit=1
              $region87: #{model_forward.4} parent=85 // loop_pre_header
                _
              $region88: #{model_forward.4} parent=85 // loop_header
                %s1004 = sphi 0, %s1008
                %p1005 = scmp.ge.s32.totalorder %s1004, 1
                %s1009 = sphi %s988, %s988
                %s1010 = sphi %s995, %s995
              $region89: #{model_forward.4} parent=85 // loop_header_branch
                %1007 = sbr.rel (%p1005) target = $region93
              $region90: #{model_forward.4} parent=85 // loop_body
                %v1011 = vld [vmem:[%s1009] sm:$0xff]
                %1012 = vst [vmem:[%s1010] sm:$0xff] %v1011
                %v1013 = vld [vmem:[%s1009 + $0x8] sm:$0xff]
                %1014 = vst [vmem:[%s1010 + $0x10] sm:$0xff] %v1013
                %v1015 = vld [vmem:[%s1009 + $0x10] sm:$0xff]
                %1016 = vst [vmem:[%s1010 + $0x20] sm:$0xff] %v1015
                %v1017 = vld [vmem:[%s1009 + $0x18] sm:$0xff]
                %1018 = vst [vmem:[%s1010 + $0x30] sm:$0xff] %v1017
              $region91: #{model_forward.4} parent=85 // loop_footer
                %s1008 = sadd.s32 1, %s1004
              $region92: #{model_forward.4} parent=85 // loop_footer_branch
                %1003 = sbr.rel target = $region88
              $region93: #{model_forward.4} parent=85 // loop_exit
                _
            $region86: #{model_forward.4} parent=77 // pred_fallthru
              _
          $region78: #{model_forward.4} parent=73 // pred_fallthru
            _
          %1039 = vnop
        $region74: #{model_forward.4} parent=65 // pred_fallthru
          _
      $region66: #{model_forward.4} parent=5 // pred_fallthru
        _
      %p1040 = scmp.le.s32.totalorder 2, %s9
      // Predicated region
      $region109: #{model_forward.4} parent=5 // pred_check
        %p1041 = pneg %p1040
      $region110: #{model_forward.4} parent=5 // pred_check_branch
        %1043 = sbr.rel (%p1041) target = $region112
      $region111: #{model_forward.4} parent=5 // pred_region
        %s1044 = ssub.s32 %s9, 2
        // Predicated region
        $region113: #{model_forward.4} parent=111 // pred_check
          %p1045 = pneg %p122
        $region114: #{model_forward.4} parent=111 // pred_check_branch
          %1047 = sbr.rel (%p1045) target = $region116
        $region115: #{model_forward.4} parent=111 // pred_region
          %s1048 = sand.u32 %s107, 1
          %s1049 = sand.u32 %s107, 1
          %s1050 = smul.addr %s1049, 32
          %s1051 = scalar_lea.vmem [#allocation3], %s1050
        $region116: #{model_forward.4} parent=111 // pred_fallthru
          _
      $region112: #{model_forward.4} parent=5 // pred_fallthru
        _
    $region6: #{model_forward.4} parent=1 // loop_footer
      %s13 = sadd.s32 1, %s9
    $region7: #{model_forward.4} parent=1 // loop_footer_branch
      %8 = sbr.rel target = $region3
    $region8: #{model_forward.4} parent=1 // loop_exit
      _

// kernel: model_forward.5
$region0: #{model_forward.5}
  #allocation0 [shape = 'u32[]', space=smem, size = 0x4, offset = 0x4, fixed_abs, tag = 'smem constant byte address 0x4 - core index']
  #allocation1 [shape = 'u32[144,128]{1,0:T(1,128)}', space=vmem, size = 0x12000, scoped, tag = 'internal scratch']
  #allocation2 [shape = 'f32[2,128]{1,0:T(2,128)}', space=vmem, size = 0x400, scoped, tag = 'scratch operand']
  %s0 = inlined_call_operand.vmem [shape: f32[2,8192], index: 0, kind: input, shape index: {}]
  %s1 = inlined_call_operand.vmem [shape: bf16[8192,128], index: 1, kind: input, shape index: {}]
  %s2 = inlined_call_operand.vmem [shape: f32[1,128], index: 2, kind: input, shape index: {}]
  %s3 = inlined_call_operand.vmem [shape: f32[128,2], index: 3, kind: input, shape index: {}]
  %s4 = inlined_call_operand.vmem [shape: f32[1,2], index: 4, kind: input, shape index: {}]
  %s5 = inlined_call_operand.hbm [shape: f32[2,2], index: 5, kind: output, shape index: {}]
  %s6 = sld [smem:[#allocation0]]
  $region61: #{model_forward.5} parent=0
    _
  %s8 = ssub.s32 1, %s6
  %s9 = scalar_select 0, %s8, %s6
  $region1: #{model_forward.5} parent=0
    #allocation3 [shape = 'u8[1024]{0}', space=vmem, size = 0x400, scoped, tag = 'output window, operand 0, single buffered']
    #allocation4 [shape = 's32[2]{0}', space=sflag, size = 0x8, scoped, tag = 'scoped memory for model_forward.5']
    %10 = vsyncpa [#allocation4], 0
    loop: start=0, step=1, limit=6
    $region2: #{model_forward.5} parent=1 // loop_pre_header
      _
    $region3: #{model_forward.5} parent=1 // loop_header
      %s12 = sphi 0, %s16
      %p13 = scmp.ge.s32.totalorder %s12, 6
      %s22 = sphi 0, %s24
      %s25 = sphi 0, %s22
      %s26 = sphi 0, %s25
      %s42 = sphi 0, %s26
      %s48 = sphi 0, %s50
      %s51 = sphi 0, %s48
      %s52 = sphi 0, %s51
      %s68 = sphi 0, %s52
      %s72 = sphi 0, %s72
      %s74 = sphi 0, %s72
      %s75 = sphi 0, %s74
      %s89 = sphi 0, %s75
      %s93 = sphi 0, %s93
      %s95 = sphi 0, %s93
      %s96 = sphi 0, %s95
      %s110 = sphi 0, %s96
      %s114 = sphi 0, %s114
      %s116 = sphi 0, %s114
      %s117 = sphi 0, %s116
      %s131 = sphi 0, %s117
      %s135 = sphi 0, %s135
      %s137 = sphi 0, %s135
      %s138 = sphi 0, %s137
      %s152 = sphi 0, %s138
    $region4: #{model_forward.5} parent=1 // loop_header_branch
      %15 = sbr.rel (%p13) target = $region8
    $region5: #{model_forward.5} parent=1 // loop_body
      %s17 = ssub.s32 %s12, 1
      %s18 = ssub.s32 %s12, 2
      %s19 = sadd.s32 %s12, 1
      %s20 = ssub.s32 %s12, %s19
      %p21 = scmp.eq.s32.totalorder %s20, 0
      %s23 = sadd.s32 %s22, 1
      %s24 = scalar_select %p21, %s22, %s23
      %p27 = pneg %p21
      %p28 = scmp.eq.s32.totalorder %s12, 3
      %p29 = por %p27, %p28
      %p30 = scmp.ne.s32.totalorder %s22, %s25
      %p31 = scmp.eq.s32.totalorder %s12, 0
      %p32 = por %p30, %p31
      %p33 = scmp.ne.s32.totalorder %s22, %s25
      %p34 = scmp.eq.s32.totalorder %s17, 3
      %p35 = por %p33, %p34
      %p36 = scmp.ne.s32.totalorder %s25, %s26
      %p37 = scmp.eq.s32.totalorder %s17, 0
      %p38 = por %p36, %p37
      %p39 = scmp.ne.s32.totalorder %s25, %s26
      %p40 = scmp.eq.s32.totalorder %s18, 3
      %p41 = por %p39, %p40
      %p43 = scmp.ne.s32.totalorder %s26, %s42
      %p44 = scmp.eq.s32.totalorder %s18, 0
      %p45 = por %p43, %p44
      %s46 = ssub.s32 %s12, %s19
      %p47 = scmp.eq.s32.totalorder %s46, 0
      %s49 = sadd.s32 %s48, 1
      %s50 = scalar_select %p47, %s48, %s49
      %p53 = pneg %p47
      %p54 = scmp.eq.s32.totalorder %s12, 3
      %p55 = por %p53, %p54
      %p56 = scmp.ne.s32.totalorder %s48, %s51
      %p57 = scmp.eq.s32.totalorder %s12, 0
      %p58 = por %p56, %p57
      %p59 = scmp.ne.s32.totalorder %s48, %s51
      %p60 = scmp.eq.s32.totalorder %s17, 3
      %p61 = por %p59, %p60
      %p62 = scmp.ne.s32.totalorder %s51, %s52
      %p63 = scmp.eq.s32.totalorder %s17, 0
      %p64 = por %p62, %p63
      %p65 = scmp.ne.s32.totalorder %s51, %s52
      %p66 = scmp.eq.s32.totalorder %s18, 3
      %p67 = por %p65, %p66
      %p69 = scmp.ne.s32.totalorder %s52, %s68
      %p70 = scmp.eq.s32.totalorder %s18, 0
      %p71 = por %p69, %p70
      %s73 = sadd.s32 %s72, 1
      %p76 = scmp.eq.s32.totalorder %s12, 3
      %p77 = scmp.ne.s32.totalorder %s72, %s74
      %p78 = scmp.eq.s32.totalorder %s12, 0
      %p79 = por %p77, %p78
      %p80 = scmp.ne.s32.totalorder %s72, %s74
      %p81 = scmp.eq.s32.totalorder %s17, 3
      %p82 = por %p80, %p81
      %p83 = scmp.ne.s32.totalorder %s74, %s75
      %p84 = scmp.eq.s32.totalorder %s17, 0
      %p85 = por %p83, %p84
      %p86 = scmp.ne.s32.totalorder %s74, %s75
      %p87 = scmp.eq.s32.totalorder %s18, 3
      %p88 = por %p86, %p87
      %p90 = scmp.ne.s32.totalorder %s75, %s89
      %p91 = scmp.eq.s32.totalorder %s18, 0
      %p92 = por %p90, %p91
      %s94 = sadd.s32 %s93, 1
      %p97 = scmp.eq.s32.totalorder %s12, 3
      %p98 = scmp.ne.s32.totalorder %s93, %s95
      %p99 = scmp.eq.s32.totalorder %s12, 0
      %p100 = por %p98, %p99
      %p101 = scmp.ne.s32.totalorder %s93, %s95
      %p102 = scmp.eq.s32.totalorder %s17, 3
      %p103 = por %p101, %p102
      %p104 = scmp.ne.s32.totalorder %s95, %s96
      %p105 = scmp.eq.s32.totalorder %s17, 0
      %p106 = por %p104, %p105
      %p107 = scmp.ne.s32.totalorder %s95, %s96
      %p108 = scmp.eq.s32.totalorder %s18, 3
      %p109 = por %p107, %p108
      %p111 = scmp.ne.s32.totalorder %s96, %s110
      %p112 = scmp.eq.s32.totalorder %s18, 0
      %p113 = por %p111, %p112
      %s115 = sadd.s32 %s114, 1
      %p118 = scmp.eq.s32.totalorder %s12, 3
      %p119 = scmp.ne.s32.totalorder %s114, %s116
      %p120 = scmp.eq.s32.totalorder %s12, 0
      %p121 = por %p119, %p120
      %p122 = scmp.ne.s32.totalorder %s114, %s116
      %p123 = scmp.eq.s32.totalorder %s17, 3
      %p124 = por %p122, %p123
      %p125 = scmp.ne.s32.totalorder %s116, %s117
      %p126 = scmp.eq.s32.totalorder %s17, 0
      %p127 = por %p125, %p126
      %p128 = scmp.ne.s32.totalorder %s116, %s117
      %p129 = scmp.eq.s32.totalorder %s18, 3
      %p130 = por %p128, %p129
      %p132 = scmp.ne.s32.totalorder %s117, %s131
      %p133 = scmp.eq.s32.totalorder %s18, 0
      %p134 = por %p132, %p133
      %s136 = sadd.s32 %s135, 1
      %p139 = scmp.eq.s32.totalorder %s12, 3
      %p140 = scmp.ne.s32.totalorder %s135, %s137
      %p141 = scmp.eq.s32.totalorder %s12, 0
      %p142 = por %p140, %p141
      %p143 = scmp.ne.s32.totalorder %s135, %s137
      %p144 = scmp.eq.s32.totalorder %s17, 3
      %p145 = por %p143, %p144
      %p146 = scmp.ne.s32.totalorder %s137, %s138
      %p147 = scmp.eq.s32.totalorder %s17, 0
      %p148 = por %p146, %p147
      %p149 = scmp.ne.s32.totalorder %s137, %s138
      %p150 = scmp.eq.s32.totalorder %s18, 3
      %p151 = por %p149, %p150
      %p153 = scmp.ne.s32.totalorder %s138, %s152
      %p154 = scmp.eq.s32.totalorder %s18, 0
      %p155 = por %p153, %p154
      %p156 = scmp.le.s32.totalorder 1, %s12
      %p157 = scmp.lt.s32.totalorder %s12, 5
      %p158 = pnand %p156, %p157
      %p159 = pneg %p158
      // Predicated region
      $region9: #{model_forward.5} parent=5 // pred_check
        _
      $region10: #{model_forward.5} parent=5 // pred_check_branch
        %161 = sbr.rel (%p158) target = $region12
      $region11: #{model_forward.5} parent=5 // pred_region
        %s162 = ssub.s32 %s12, 1
        // Predicated region
        $region13: #{model_forward.5} parent=11 // pred_check
          %p163 = pneg %p85
        $region14: #{model_forward.5} parent=11 // pred_check_branch
          %165 = sbr.rel (%p163) target = $region16
        $region15: #{model_forward.5} parent=11 // pred_region
          _
        $region16: #{model_forward.5} parent=11 // pred_fallthru
          _
        // Predicated region
        $region17: #{model_forward.5} parent=11 // pred_check
          %p166 = pneg %p106
        $region18: #{model_forward.5} parent=11 // pred_check_branch
          %168 = sbr.rel (%p166) target = $region20
        $region19: #{model_forward.5} parent=11 // pred_region
          _
        $region20: #{model_forward.5} parent=11 // pred_fallthru
          _
        // Predicated region
        $region21: #{model_forward.5} parent=11 // pred_check
          %p169 = pneg %p127
        $region22: #{model_forward.5} parent=11 // pred_check_branch
          %171 = sbr.rel (%p169) target = $region24
        $region23: #{model_forward.5} parent=11 // pred_region
          _
        $region24: #{model_forward.5} parent=11 // pred_fallthru
          _
      $region12: #{model_forward.5} parent=5 // pred_fallthru
        _
      %p172 = scmp.lt.s32.totalorder %s12, 4
      // Predicated region
      $region25: #{model_forward.5} parent=5 // pred_check
        %p173 = pneg %p172
      $region26: #{model_forward.5} parent=5 // pred_check_branch
        %175 = sbr.rel (%p173) target = $region28
      $region27: #{model_forward.5} parent=5 // pred_region
        // Predicated region
        $region29: #{model_forward.5} parent=27 // pred_check
          %p176 = pneg %p32
        $region30: #{model_forward.5} parent=27 // pred_check_branch
          %178 = sbr.rel (%p176) target = $region32
        $region31: #{model_forward.5} parent=27 // pred_region
          %s179 = smul.u32 16, %s12
          %p180 = scmp.lt.s32.totalorder %s179, 63
          %s181 = scalar_select %p180, %s179, 63
          %s182 = smul.addr %s181, 2
          %s183 = scalar_lea.vmem %s0, %s182
          %s184 = smul.u32 16, %s12
        $region32: #{model_forward.5} parent=27 // pred_fallthru
          _
        // Predicated region
        $region33: #{model_forward.5} parent=27 // pred_check
          %p185 = pneg %p58
        $region34: #{model_forward.5} parent=27 // pred_check_branch
          %187 = sbr.rel (%p185) target = $region36
        $region35: #{model_forward.5} parent=27 // pred_region
          %s188 = smul.u32 256, %s12
          %p189 = scmp.lt.s32.totalorder %s188, 1023
          %s190 = scalar_select %p189, %s188, 1023
          %s191 = smul.addr %s190, 4
          %s192 = scalar_lea.vmem %s1, %s191
          %s193 = smul.u32 256, %s12
        $region36: #{model_forward.5} parent=27 // pred_fallthru
          _
      $region28: #{model_forward.5} parent=5 // pred_fallthru
        _
      %p194 = scmp.le.s32.totalorder 1, %s12
      %p195 = scmp.lt.s32.totalorder %s12, 5
      %p196 = pnand %p194, %p195
      %p197 = pneg %p196
      // Predicated region
      $region37: #{model_forward.5} parent=5 // pred_check
        _
      $region38: #{model_forward.5} parent=5 // pred_check_branch
        %199 = sbr.rel (%p196) target = $region40
      $region39: #{model_forward.5} parent=5 // pred_region
        %s200 = ssub.s32 %s12, 1
        %s201 = smul.u32 16, %s17
        %p202 = scmp.lt.s32.totalorder %s201, 63
        %s203 = scalar_select %p202, %s201, 63
        %s204 = smul.addr %s203, 2
        %s205 = scalar_lea.vmem %s0, %s204
        %p206 = pneg %p38
        %p207 = pneg %p35
        %s208 = smul.u32 256, %s17
        %p209 = scmp.lt.s32.totalorder %s208, 1023
        %s210 = scalar_select %p209, %s208, 1023
        %s211 = smul.addr %s210, 4
        %s212 = scalar_lea.vmem %s1, %s211
        %p213 = pneg %p64
        %p214 = pneg %p61
        %p215 = pneg %p85
        %p216 = pneg %p82
        %p217 = pneg %p106
        %p218 = pneg %p103
        %p219 = pneg %p127
        %p220 = pneg %p124
        %p221 = pneg %p148
        %p222 = pneg %p145
        %s223 = smul.u32 16, %s17
        %p224 = scmp.lt.s32.totalorder %s223, 63
        %s225 = scalar_select %p224, %s223, 63
        %s226 = smul.addr %s225, 2
        %s227 = scalar_lea.vmem %s0, %s226
        %s228 = smul.u32 16, %s17
        %s229 = smul.u32 256, %s17
        %p230 = scmp.lt.s32.totalorder %s229, 1023
        %s231 = scalar_select %p230, %s229, 1023
        %s232 = smul.addr %s231, 4
        %s233 = scalar_lea.vmem %s1, %s232
        %s234 = smul.u32 256, %s17
        %p236 = scmp.eq.s32.totalorder %s17, 0
        // Predicated region
        $region41: #{model_forward.5} parent=39 // pred_check
          %p237 = pneg %p236
        $region42: #{model_forward.5} parent=39 // pred_check_branch
          %239 = sbr.rel (%p237) target = $region44
        $region43: #{model_forward.5} parent=39 // pred_region
          %240 = vst [vmem:[#allocation2] sm:$0x3] 0.0
        $region44: #{model_forward.5} parent=39 // pred_fallthru
          _
        %v241 = vld [vmem:[#allocation2] sm:$0x3]
        %v242 = vld [vmem:[%s227] sm:$0xff]
        %v243 = vld [vmem:[%s227 + $0x8] sm:$0xff]
        %v244 = vld [vmem:[%s227 + $0x10] sm:$0xff]
        %v245 = vld [vmem:[%s227 + $0x18] sm:$0xff]
        %v250 = vcombine.high %v242, %v242
        %v252 = vunpack.c.l.s4 1983009808
        %v253 = vunpack.c.0.s8 %v252
        %v254 = vlaneseq
        %v255 = vshrl.u32 %v254, 7
        %v256 = vsub.s32 %v253, %v255
        %v257 = vrot.slane %v242, %v256
        %v259 = vunpack.c.l.s4 1983009808
        %v260 = vunpack.c.0.s8 %v259
        %v261 = vlaneseq
        %v262 = vshrl.u32 %v261, 7
        %v263 = vsub.s32 %v260, %v262
        %v264 = vrot.slane %v250, %v263
        %v265 = vcombine.high %v257, %v257
        %v266 = vcombine.high %v264, %v264
        %v267 = vcombine.high %v243, %v243
        %v269 = vunpack.c.l.s4 1983009808
        %v270 = vunpack.c.0.s8 %v269
        %v271 = vlaneseq
        %v272 = vshrl.u32 %v271, 7
        %v273 = vsub.s32 %v270, %v272
        %v274 = vrot.slane %v243, %v273
        %v276 = vunpack.c.l.s4 1983009808
        %v277 = vunpack.c.0.s8 %v276
        %v278 = vlaneseq
        %v279 = vshrl.u32 %v278, 7
        %v280 = vsub.s32 %v277, %v279
        %v281 = vrot.slane %v267, %v280
        %v282 = vcombine.high %v274, %v274
        %v283 = vcombine.high %v281, %v281
        %v284 = vcombine.high %v244, %v244
        %v286 = vunpack.c.l.s4 1983009808
        %v287 = vunpack.c.0.s8 %v286
        %v288 = vlaneseq
        %v289 = vshrl.u32 %v288, 7
        %v290 = vsub.s32 %v287, %v289
        %v291 = vrot.slane %v244, %v290
        %v293 = vunpack.c.l.s4 1983009808
        %v294 = vunpack.c.0.s8 %v293
        %v295 = vlaneseq
        %v296 = vshrl.u32 %v295, 7
        %v297 = vsub.s32 %v294, %v296
        %v298 = vrot.slane %v284, %v297
        %v299 = vcombine.high %v291, %v291
        %v300 = vcombine.high %v298, %v298
        %v301 = vcombine.high %v245, %v245
        %v303 = vunpack.c.l.s4 1983009808
        %v304 = vunpack.c.0.s8 %v303
        %v305 = vlaneseq
        %v306 = vshrl.u32 %v305, 7
        %v307 = vsub.s32 %v304, %v306
        %v308 = vrot.slane %v245, %v307
        %v310 = vunpack.c.l.s4 1983009808
        %v311 = vunpack.c.0.s8 %v310
        %v312 = vlaneseq
        %v313 = vshrl.u32 %v312, 7
        %v314 = vsub.s32 %v311, %v313
        %v315 = vrot.slane %v301, %v314
        %v316 = vcombine.high %v308, %v308
        %v317 = vcombine.high %v315, %v315
        %v334 = vpack.c.bf16 %v257, %v257
        %v335 = vpack.c.bf16 %v265, %v265
        %v336 = vpack.c.bf16 %v264, %v264
        %v337 = vpack.c.bf16 %v266, %v266
        %v338 = vpack.c.bf16 %v274, %v274
        %v339 = vpack.c.bf16 %v282, %v282
        %v340 = vpack.c.bf16 %v281, %v281
        %v341 = vpack.c.bf16 %v283, %v283
        %v342 = vpack.c.bf16 %v291, %v291
        %v343 = vpack.c.bf16 %v299, %v299
        %v344 = vpack.c.bf16 %v298, %v298
        %v345 = vpack.c.bf16 %v300, %v300
        %v346 = vpack.c.bf16 %v308, %v308
        %v347 = vpack.c.bf16 %v316, %v316
        %v348 = vpack.c.bf16 %v315, %v315
        %v349 = vpack.c.bf16 %v317, %v317
        %v350 = vld [vmem:[%s233] sm:$0xf]
        %v351 = vld [vmem:[%s233 + $0x4] sm:$0xf]
        %v352 = vld [vmem:[%s233 + $0x8] sm:$0xf]
        %v353 = vld [vmem:[%s233 + $0xc] sm:$0xf]
        %v354 = vld [vmem:[%s233 + $0x10] sm:$0xf]
        %v355 = vld [vmem:[%s233 + $0x14] sm:$0xf]
        %v356 = vld [vmem:[%s233 + $0x18] sm:$0xf]
        %v357 = vld [vmem:[%s233 + $0x1c] sm:$0xf]
        %v358 = vld [vmem:[%s233 + $0x20] sm:$0xf]
        %v359 = vld [vmem:[%s233 + $0x24] sm:$0xf]
        %v360 = vld [vmem:[%s233 + $0x28] sm:$0xf]
        %v361 = vld [vmem:[%s233 + $0x2c] sm:$0xf]
        %v362 = vld [vmem:[%s233 + $0x30] sm:$0xf]
        %v363 = vld [vmem:[%s233 + $0x34] sm:$0xf]
        %v364 = vld [vmem:[%s233 + $0x38] sm:$0xf]
        %v365 = vld [vmem:[%s233 + $0x3c] sm:$0xf]
        %v366 = vld [vmem:[%s233 + $0x40] sm:$0xf]
        %v367 = vld [vmem:[%s233 + $0x44] sm:$0xf]
        %v368 = vld [vmem:[%s233 + $0x48] sm:$0xf]
        %v369 = vld [vmem:[%s233 + $0x4c] sm:$0xf]
        %v370 = vld [vmem:[%s233 + $0x50] sm:$0xf]
        %v371 = vld [vmem:[%s233 + $0x54] sm:$0xf]
        %v372 = vld [vmem:[%s233 + $0x58] sm:$0xf]
        %v373 = vld [vmem:[%s233 + $0x5c] sm:$0xf]
        %v374 = vld [vmem:[%s233 + $0x60] sm:$0xf]
        %v375 = vld [vmem:[%s233 + $0x64] sm:$0xf]
        %v376 = vld [vmem:[%s233 + $0x68] sm:$0xf]
        %v377 = vld [vmem:[%s233 + $0x6c] sm:$0xf]
        %v378 = vld [vmem:[%s233 + $0x70] sm:$0xf]
        %v379 = vld [vmem:[%s233 + $0x74] sm:$0xf]
        %v380 = vld [vmem:[%s233 + $0x78] sm:$0xf]
        %v381 = vld [vmem:[%s233 + $0x7c] sm:$0xf]
        %v382 = vld [vmem:[%s233 + $0x80] sm:$0xf]
        %v383 = vld [vmem:[%s233 + $0x84] sm:$0xf]
        %v384 = vld [vmem:[%s233 + $0x88] sm:$0xf]
        %v385 = vld [vmem:[%s233 + $0x8c] sm:$0xf]
        %v386 = vld [vmem:[%s233 + $0x90] sm:$0xf]
        %v387 = vld [vmem:[%s233 + $0x94] sm:$0xf]
        %v388 = vld [vmem:[%s233 + $0x98] sm:$0xf]
        %v389 = vld [vmem:[%s233 + $0x9c] sm:$0xf]
        %v390 = vld [vmem:[%s233 + $0xa0] sm:$0xf]
        %v391 = vld [vmem:[%s233 + $0xa4] sm:$0xf]
        %v392 = vld [vmem:[%s233 + $0xa8] sm:$0xf]
        %v393 = vld [vmem:[%s233 + $0xac] sm:$0xf]
        %v394 = vld [vmem:[%s233 + $0xb0] sm:$0xf]
        %v395 = vld [vmem:[%s233 + $0xb4] sm:$0xf]
        %v396 = vld [vmem:[%s233 + $0xb8] sm:$0xf]
        %v397 = vld [vmem:[%s233 + $0xbc] sm:$0xf]
        %v398 = vld [vmem:[%s233 + $0xc0] sm:$0xf]
        %v399 = vld [vmem:[%s233 + $0xc4] sm:$0xf]
        %v400 = vld [vmem:[%s233 + $0xc8] sm:$0xf]
        %v401 = vld [vmem:[%s233 + $0xcc] sm:$0xf]
        %v402 = vld [vmem:[%s233 + $0xd0] sm:$0xf]
        %v403 = vld [vmem:[%s233 + $0xd4] sm:$0xf]
        %v404 = vld [vmem:[%s233 + $0xd8] sm:$0xf]
        %v405 = vld [vmem:[%s233 + $0xdc] sm:$0xf]
        %v406 = vld [vmem:[%s233 + $0xe0] sm:$0xf]
        %v407 = vld [vmem:[%s233 + $0xe4] sm:$0xf]
        %v408 = vld [vmem:[%s233 + $0xe8] sm:$0xf]
        %v409 = vld [vmem:[%s233 + $0xec] sm:$0xf]
        %v410 = vld [vmem:[%s233 + $0xf0] sm:$0xf]
        %v411 = vld [vmem:[%s233 + $0xf4] sm:$0xf]
        %v412 = vld [vmem:[%s233 + $0xf8] sm:$0xf]
        %v413 = vld [vmem:[%s233 + $0xfc] sm:$0xf]
        %v414 = vld [vmem:[%s233 + $0x100] sm:$0xf]
        %v415 = vld [vmem:[%s233 + $0x104] sm:$0xf]
        %v416 = vld [vmem:[%s233 + $0x108] sm:$0xf]
        %v417 = vld [vmem:[%s233 + $0x10c] sm:$0xf]
        %v418 = vld [vmem:[%s233 + $0x110] sm:$0xf]
        %v419 = vld [vmem:[%s233 + $0x114] sm:$0xf]
        %v420 = vld [vmem:[%s233 + $0x118] sm:$0xf]
        %v421 = vld [vmem:[%s233 + $0x11c] sm:$0xf]
        %v422 = vld [vmem:[%s233 + $0x120] sm:$0xf]
        %v423 = vld [vmem:[%s233 + $0x124] sm:$0xf]
        %v424 = vld [vmem:[%s233 + $0x128] sm:$0xf]
        %v425 = vld [vmem:[%s233 + $0x12c] sm:$0xf]
        %v426 = vld [vmem:[%s233 + $0x130] sm:$0xf]
        %v427 = vld [vmem:[%s233 + $0x134] sm:$0xf]
        %v428 = vld [vmem:[%s233 + $0x138] sm:$0xf]
        %v429 = vld [vmem:[%s233 + $0x13c] sm:$0xf]
        %v430 = vld [vmem:[%s233 + $0x140] sm:$0xf]
        %v431 = vld [vmem:[%s233 + $0x144] sm:$0xf]
        %v432 = vld [vmem:[%s233 + $0x148] sm:$0xf]
        %v433 = vld [vmem:[%s233 + $0x14c] sm:$0xf]
        %v434 = vld [vmem:[%s233 + $0x150] sm:$0xf]
        %v435 = vld [vmem:[%s233 + $0x154] sm:$0xf]
        %v436 = vld [vmem:[%s233 + $0x158] sm:$0xf]
        %v437 = vld [vmem:[%s233 + $0x15c] sm:$0xf]
        %v438 = vld [vmem:[%s233 + $0x160] sm:$0xf]
        %v439 = vld [vmem:[%s233 + $0x164] sm:$0xf]
        %v440 = vld [vmem:[%s233 + $0x168] sm:$0xf]
        %v441 = vld [vmem:[%s233 + $0x16c] sm:$0xf]
        %v442 = vld [vmem:[%s233 + $0x170] sm:$0xf]
        %v443 = vld [vmem:[%s233 + $0x174] sm:$0xf]
        %v444 = vld [vmem:[%s233 + $0x178] sm:$0xf]
        %v445 = vld [vmem:[%s233 + $0x17c] sm:$0xf]
        %v446 = vld [vmem:[%s233 + $0x180] sm:$0xf]
        %v447 = vld [vmem:[%s233 + $0x184] sm:$0xf]
        %v448 = vld [vmem:[%s233 + $0x188] sm:$0xf]
        %v449 = vld [vmem:[%s233 + $0x18c] sm:$0xf]
        %v450 = vld [vmem:[%s233 + $0x190] sm:$0xf]
        %v451 = vld [vmem:[%s233 + $0x194] sm:$0xf]
        %v452 = vld [vmem:[%s233 + $0x198] sm:$0xf]
        %v453 = vld [vmem:[%s233 + $0x19c] sm:$0xf]
        %v454 = vld [vmem:[%s233 + $0x1a0] sm:$0xf]
        %v455 = vld [vmem:[%s233 + $0x1a4] sm:$0xf]
        %v456 = vld [vmem:[%s233 + $0x1a8] sm:$0xf]
        %v457 = vld [vmem:[%s233 + $0x1ac] sm:$0xf]
        %v458 = vld [vmem:[%s233 + $0x1b0] sm:$0xf]
        %v459 = vld [vmem:[%s233 + $0x1b4] sm:$0xf]
        %v460 = vld [vmem:[%s233 + $0x1b8] sm:$0xf]
        %v461 = vld [vmem:[%s233 + $0x1bc] sm:$0xf]
        %v462 = vld [vmem:[%s233 + $0x1c0] sm:$0xf]
        %v463 = vld [vmem:[%s233 + $0x1c4] sm:$0xf]
        %v464 = vld [vmem:[%s233 + $0x1c8] sm:$0xf]
        %v465 = vld [vmem:[%s233 + $0x1cc] sm:$0xf]
        %v466 = vld [vmem:[%s233 + $0x1d0] sm:$0xf]
        %v467 = vld [vmem:[%s233 + $0x1d4] sm:$0xf]
        %v468 = vld [vmem:[%s233 + $0x1d8] sm:$0xf]
        %v469 = vld [vmem:[%s233 + $0x1dc] sm:$0xf]
        %v470 = vld [vmem:[%s233 + $0x1e0] sm:$0xf]
        %v471 = vld [vmem:[%s233 + $0x1e4] sm:$0xf]
        %v472 = vld [vmem:[%s233 + $0x1e8] sm:$0xf]
        %v473 = vld [vmem:[%s233 + $0x1ec] sm:$0xf]
        %v474 = vld [vmem:[%s233 + $0x1f0] sm:$0xf]
        %v475 = vld [vmem:[%s233 + $0x1f4] sm:$0xf]
        %v476 = vld [vmem:[%s233 + $0x1f8] sm:$0xf]
        %v477 = vld [vmem:[%s233 + $0x1fc] sm:$0xf]
        %v478 = vld [vmem:[%s233 + $0x200] sm:$0xf]
        %v479 = vld [vmem:[%s233 + $0x204] sm:$0xf]
        %v480 = vld [vmem:[%s233 + $0x208] sm:$0xf]
        %v481 = vld [vmem:[%s233 + $0x20c] sm:$0xf]
        %v482 = vld [vmem:[%s233 + $0x210] sm:$0xf]
        %v483 = vld [vmem:[%s233 + $0x214] sm:$0xf]
        %v484 = vld [vmem:[%s233 + $0x218] sm:$0xf]
        %v485 = vld [vmem:[%s233 + $0x21c] sm:$0xf]
        %v486 = vld [vmem:[%s233 + $0x220] sm:$0xf]
        %v487 = vld [vmem:[%s233 + $0x224] sm:$0xf]
        %v488 = vld [vmem:[%s233 + $0x228] sm:$0xf]
        %v489 = vld [vmem:[%s233 + $0x22c] sm:$0xf]
        %v490 = vld [vmem:[%s233 + $0x230] sm:$0xf]
        %v491 = vld [vmem:[%s233 + $0x234] sm:$0xf]
        %v492 = vld [vmem:[%s233 + $0x238] sm:$0xf]
        %v493 = vld [vmem:[%s233 + $0x23c] sm:$0xf]
        %v494 = vld [vmem:[%s233 + $0x240] sm:$0xf]
        %v495 = vld [vmem:[%s233 + $0x244] sm:$0xf]
        %v496 = vld [vmem:[%s233 + $0x248] sm:$0xf]
        %v497 = vld [vmem:[%s233 + $0x24c] sm:$0xf]
        %v498 = vld [vmem:[%s233 + $0x250] sm:$0xf]
        %v499 = vld [vmem:[%s233 + $0x254] sm:$0xf]
        %v500 = vld [vmem:[%s233 + $0x258] sm:$0xf]
        %v501 = vld [vmem:[%s233 + $0x25c] sm:$0xf]
        %v502 = vld [vmem:[%s233 + $0x260] sm:$0xf]
        %v503 = vld [vmem:[%s233 + $0x264] sm:$0xf]
        %v504 = vld [vmem:[%s233 + $0x268] sm:$0xf]
        %v505 = vld [vmem:[%s233 + $0x26c] sm:$0xf]
        %v506 = vld [vmem:[%s233 + $0x270] sm:$0xf]
        %v507 = vld [vmem:[%s233 + $0x274] sm:$0xf]
        %v508 = vld [vmem:[%s233 + $0x278] sm:$0xf]
        %v509 = vld [vmem:[%s233 + $0x27c] sm:$0xf]
        %v510 = vld [vmem:[%s233 + $0x280] sm:$0xf]
        %v511 = vld [vmem:[%s233 + $0x284] sm:$0xf]
        %v512 = vld [vmem:[%s233 + $0x288] sm:$0xf]
        %v513 = vld [vmem:[%s233 + $0x28c] sm:$0xf]
        %v514 = vld [vmem:[%s233 + $0x290] sm:$0xf]
        %v515 = vld [vmem:[%s233 + $0x294] sm:$0xf]
        %v516 = vld [vmem:[%s233 + $0x298] sm:$0xf]
        %v517 = vld [vmem:[%s233 + $0x29c] sm:$0xf]
        %v518 = vld [vmem:[%s233 + $0x2a0] sm:$0xf]
        %v519 = vld [vmem:[%s233 + $0x2a4] sm:$0xf]
        %v520 = vld [vmem:[%s233 + $0x2a8] sm:$0xf]
        %v521 = vld [vmem:[%s233 + $0x2ac] sm:$0xf]
        %v522 = vld [vmem:[%s233 + $0x2b0] sm:$0xf]
        %v523 = vld [vmem:[%s233 + $0x2b4] sm:$0xf]
        %v524 = vld [vmem:[%s233 + $0x2b8] sm:$0xf]
        %v525 = vld [vmem:[%s233 + $0x2bc] sm:$0xf]
        %v526 = vld [vmem:[%s233 + $0x2c0] sm:$0xf]
        %v527 = vld [vmem:[%s233 + $0x2c4] sm:$0xf]
        %v528 = vld [vmem:[%s233 + $0x2c8] sm:$0xf]
        %v529 = vld [vmem:[%s233 + $0x2cc] sm:$0xf]
        %v530 = vld [vmem:[%s233 + $0x2d0] sm:$0xf]
        %v531 = vld [vmem:[%s233 + $0x2d4] sm:$0xf]
        %v532 = vld [vmem:[%s233 + $0x2d8] sm:$0xf]
        %v533 = vld [vmem:[%s233 + $0x2dc] sm:$0xf]
        %v534 = vld [vmem:[%s233 + $0x2e0] sm:$0xf]
        %v535 = vld [vmem:[%s233 + $0x2e4] sm:$0xf]
        %v536 = vld [vmem:[%s233 + $0x2e8] sm:$0xf]
        %v537 = vld [vmem:[%s233 + $0x2ec] sm:$0xf]
        %v538 = vld [vmem:[%s233 + $0x2f0] sm:$0xf]
        %v539 = vld [vmem:[%s233 + $0x2f4] sm:$0xf]
        %v540 = vld [vmem:[%s233 + $0x2f8] sm:$0xf]
        %v541 = vld [vmem:[%s233 + $0x2fc] sm:$0xf]
        %v542 = vld [vmem:[%s233 + $0x300] sm:$0xf]
        %v543 = vld [vmem:[%s233 + $0x304] sm:$0xf]
        %v544 = vld [vmem:[%s233 + $0x308] sm:$0xf]
        %v545 = vld [vmem:[%s233 + $0x30c] sm:$0xf]
        %v546 = vld [vmem:[%s233 + $0x310] sm:$0xf]
        %v547 = vld [vmem:[%s233 + $0x314] sm:$0xf]
        %v548 = vld [vmem:[%s233 + $0x318] sm:$0xf]
        %v549 = vld [vmem:[%s233 + $0x31c] sm:$0xf]
        %v550 = vld [vmem:[%s233 + $0x320] sm:$0xf]
        %v551 = vld [vmem:[%s233 + $0x324] sm:$0xf]
        %v552 = vld [vmem:[%s233 + $0x328] sm:$0xf]
        %v553 = vld [vmem:[%s233 + $0x32c] sm:$0xf]
        %v554 = vld [vmem:[%s233 + $0x330] sm:$0xf]
        %v555 = vld [vmem:[%s233 + $0x334] sm:$0xf]
        %v556 = vld [vmem:[%s233 + $0x338] sm:$0xf]
        %v557 = vld [vmem:[%s233 + $0x33c] sm:$0xf]
        %v558 = vld [vmem:[%s233 + $0x340] sm:$0xf]
        %v559 = vld [vmem:[%s233 + $0x344] sm:$0xf]
        %v560 = vld [vmem:[%s233 + $0x348] sm:$0xf]
        %v561 = vld [vmem:[%s233 + $0x34c] sm:$0xf]
        %v562 = vld [vmem:[%s233 + $0x350] sm:$0xf]
        %v563 = vld [vmem:[%s233 + $0x354] sm:$0xf]
        %v564 = vld [vmem:[%s233 + $0x358] sm:$0xf]
        %v565 = vld [vmem:[%s233 + $0x35c] sm:$0xf]
        %v566 = vld [vmem:[%s233 + $0x360] sm:$0xf]
        %v567 = vld [vmem:[%s233 + $0x364] sm:$0xf]
        %v568 = vld [vmem:[%s233 + $0x368] sm:$0xf]
        %v569 = vld [vmem:[%s233 + $0x36c] sm:$0xf]
        %v570 = vld [vmem:[%s233 + $0x370] sm:$0xf]
        %v571 = vld [vmem:[%s233 + $0x374] sm:$0xf]
        %v572 = vld [vmem:[%s233 + $0x378] sm:$0xf]
        %v573 = vld [vmem:[%s233 + $0x37c] sm:$0xf]
        %v574 = vld [vmem:[%s233 + $0x380] sm:$0xf]
        %v575 = vld [vmem:[%s233 + $0x384] sm:$0xf]
        %v576 = vld [vmem:[%s233 + $0x388] sm:$0xf]
        %v577 = vld [vmem:[%s233 + $0x38c] sm:$0xf]
        %v578 = vld [vmem:[%s233 + $0x390] sm:$0xf]
        %v579 = vld [vmem:[%s233 + $0x394] sm:$0xf]
        %v580 = vld [vmem:[%s233 + $0x398] sm:$0xf]
        %v581 = vld [vmem:[%s233 + $0x39c] sm:$0xf]
        %v582 = vld [vmem:[%s233 + $0x3a0] sm:$0xf]
        %v583 = vld [vmem:[%s233 + $0x3a4] sm:$0xf]
        %v584 = vld [vmem:[%s233 + $0x3a8] sm:$0xf]
        %v585 = vld [vmem:[%s233 + $0x3ac] sm:$0xf]
        %v586 = vld [vmem:[%s233 + $0x3b0] sm:$0xf]
        %v587 = vld [vmem:[%s233 + $0x3b4] sm:$0xf]
        %v588 = vld [vmem:[%s233 + $0x3b8] sm:$0xf]
        %v589 = vld [vmem:[%s233 + $0x3bc] sm:$0xf]
        %v590 = vld [vmem:[%s233 + $0x3c0] sm:$0xf]
        %v591 = vld [vmem:[%s233 + $0x3c4] sm:$0xf]
        %v592 = vld [vmem:[%s233 + $0x3c8] sm:$0xf]
        %v593 = vld [vmem:[%s233 + $0x3cc] sm:$0xf]
        %v594 = vld [vmem:[%s233 + $0x3d0] sm:$0xf]
        %v595 = vld [vmem:[%s233 + $0x3d4] sm:$0xf]
        %v596 = vld [vmem:[%s233 + $0x3d8] sm:$0xf]
        %v597 = vld [vmem:[%s233 + $0x3dc] sm:$0xf]
        %v598 = vld [vmem:[%s233 + $0x3e0] sm:$0xf]
        %v599 = vld [vmem:[%s233 + $0x3e4] sm:$0xf]
        %v600 = vld [vmem:[%s233 + $0x3e8] sm:$0xf]
        %v601 = vld [vmem:[%s233 + $0x3ec] sm:$0xf]
        %v602 = vld [vmem:[%s233 + $0x3f0] sm:$0xf]
        %v603 = vld [vmem:[%s233 + $0x3f4] sm:$0xf]
        %v604 = vld [vmem:[%s233 + $0x3f8] sm:$0xf]
        %v605 = vld [vmem:[%s233 + $0x3fc] sm:$0xf]
        %v862 = vunpack.c.l.b16 %v350
        %v863 = vunpack.c.l.b16 %v351
        %v864 = vunpack.c.l.b16 %v352
        %v865 = vunpack.c.l.b16 %v353
        %v866 = vunpack.c.l.b16 %v354
        %v867 = vunpack.c.l.b16 %v355
        %v868 = vunpack.c.l.b16 %v356
        %v869 = vunpack.c.l.b16 %v357
        %v870 = vunpack.c.l.b16 %v358
        %v871 = vunpack.c.l.b16 %v359
        %v872 = vunpack.c.l.b16 %v360
        %v873 = vunpack.c.l.b16 %v361
        %v874 = vunpack.c.l.b16 %v362
        %v875 = vunpack.c.l.b16 %v363
        %v876 = vunpack.c.l.b16 %v364
        %v877 = vunpack.c.l.b16 %v365
        %v878 = vunpack.c.l.b16 %v366
        %v879 = vunpack.c.l.b16 %v367
        %v880 = vunpack.c.l.b16 %v368
        %v881 = vunpack.c.l.b16 %v369
        %v882 = vunpack.c.l.b16 %v370
        %v883 = vunpack.c.l.b16 %v371
        %v884 = vunpack.c.l.b16 %v372
        %v885 = vunpack.c.l.b16 %v373
        %v886 = vunpack.c.l.b16 %v374
        %v887 = vunpack.c.l.b16 %v375
        %v888 = vunpack.c.l.b16 %v376
        %v889 = vunpack.c.l.b16 %v377
        %v890 = vunpack.c.l.b16 %v378
        %v891 = vunpack.c.l.b16 %v379
        %v892 = vunpack.c.l.b16 %v380
        %v893 = vunpack.c.l.b16 %v381
        %v894 = vunpack.c.l.b16 %v382
        %v895 = vunpack.c.l.b16 %v383
        %v896 = vunpack.c.l.b16 %v384
        %v897 = vunpack.c.l.b16 %v385
        %v898 = vunpack.c.l.b16 %v386
        %v899 = vunpack.c.l.b16 %v387
        %v900 = vunpack.c.l.b16 %v388
        %v901 = vunpack.c.l.b16 %v389
        %v902 = vunpack.c.l.b16 %v390
        %v903 = vunpack.c.l.b16 %v391
        %v904 = vunpack.c.l.b16 %v392
        %v905 = vunpack.c.l.b16 %v393
        %v906 = vunpack.c.l.b16 %v394
        %v907 = vunpack.c.l.b16 %v395
        %v908 = vunpack.c.l.b16 %v396
        %v909 = vunpack.c.l.b16 %v397
        %v910 = vunpack.c.l.b16 %v398
        %v911 = vunpack.c.l.b16 %v399
        %v912 = vunpack.c.l.b16 %v400
        %v913 = vunpack.c.l.b16 %v401
        %v914 = vunpack.c.l.b16 %v402
        %v915 = vunpack.c.l.b16 %v403
        %v916 = vunpack.c.l.b16 %v404
        %v917 = vunpack.c.l.b16 %v405
        %v918 = vunpack.c.l.b16 %v406
        %v919 = vunpack.c.l.b16 %v407
        %v920 = vunpack.c.l.b16 %v408
        %v921 = vunpack.c.l.b16 %v409
        %v922 = vunpack.c.l.b16 %v410
        %v923 = vunpack.c.l.b16 %v411
        %v924 = vunpack.c.l.b16 %v412
        %v925 = vunpack.c.l.b16 %v413
        %v926 = vunpack.c.l.b16 %v414
        %v927 = vunpack.c.l.b16 %v415
        %v928 = vunpack.c.l.b16 %v416
        %v929 = vunpack.c.l.b16 %v417
        %v930 = vunpack.c.l.b16 %v418
        %v931 = vunpack.c.l.b16 %v419
        %v932 = vunpack.c.l.b16 %v420
        %v933 = vunpack.c.l.b16 %v421
        %v934 = vunpack.c.l.b16 %v422
        %v935 = vunpack.c.l.b16 %v423
        %v936 = vunpack.c.l.b16 %v424
        %v937 = vunpack.c.l.b16 %v425
        %v938 = vunpack.c.l.b16 %v426
        %v939 = vunpack.c.l.b16 %v427
        %v940 = vunpack.c.l.b16 %v428
        %v941 = vunpack.c.l.b16 %v429
        %v942 = vunpack.c.l.b16 %v430
        %v943 = vunpack.c.l.b16 %v431
        %v944 = vunpack.c.l.b16 %v432
        %v945 = vunpack.c.l.b16 %v433
        %v946 = vunpack.c.l.b16 %v434
        %v947 = vunpack.c.l.b16 %v435
        %v948 = vunpack.c.l.b16 %v436
        %v949 = vunpack.c.l.b16 %v437
        %v950 = vunpack.c.l.b16 %v438
        %v951 = vunpack.c.l.b16 %v439
        %v952 = vunpack.c.l.b16 %v440
        %v953 = vunpack.c.l.b16 %v441
        %v954 = vunpack.c.l.b16 %v442
        %v955 = vunpack.c.l.b16 %v443
        %v956 = vunpack.c.l.b16 %v444
        %v957 = vunpack.c.l.b16 %v445
        %v958 = vunpack.c.l.b16 %v446
        %v959 = vunpack.c.l.b16 %v447
        %v960 = vunpack.c.l.b16 %v448
        %v961 = vunpack.c.l.b16 %v449
        %v962 = vunpack.c.l.b16 %v450
        %v963 = vunpack.c.l.b16 %v451
        %v964 = vunpack.c.l.b16 %v452
        %v965 = vunpack.c.l.b16 %v453
        %v966 = vunpack.c.l.b16 %v454
        %v967 = vunpack.c.l.b16 %v455
        %v968 = vunpack.c.l.b16 %v456
        %v969 = vunpack.c.l.b16 %v457
        %v970 = vunpack.c.l.b16 %v458
        %v971 = vunpack.c.l.b16 %v459
        %v972 = vunpack.c.l.b16 %v460
        %v973 = vunpack.c.l.b16 %v461
        %v974 = vunpack.c.l.b16 %v462
        %v975 = vunpack.c.l.b16 %v463
        %v976 = vunpack.c.l.b16 %v464
        %v977 = vunpack.c.l.b16 %v465
        %v978 = vunpack.c.l.b16 %v466
        %v979 = vunpack.c.l.b16 %v467
        %v980 = vunpack.c.l.b16 %v468
        %v981 = vunpack.c.l.b16 %v469
        %v982 = vunpack.c.l.b16 %v470
        %v983 = vunpack.c.l.b16 %v471
        %v984 = vunpack.c.l.b16 %v472
        %v985 = vunpack.c.l.b16 %v473
        %v986 = vunpack.c.l.b16 %v474
        %v987 = vunpack.c.l.b16 %v475
        %v988 = vunpack.c.l.b16 %v476
        %v989 = vunpack.c.l.b16 %v477
        %v990 = vunpack.c.l.b16 %v478
        %v991 = vunpack.c.l.b16 %v479
        %v992 = vunpack.c.l.b16 %v480
        %v993 = vunpack.c.l.b16 %v481
        %v994 = vunpack.c.l.b16 %v482
        %v995 = vunpack.c.l.b16 %v483
        %v996 = vunpack.c.l.b16 %v484
        %v997 = vunpack.c.l.b16 %v485
        %v998 = vunpack.c.l.b16 %v486
        %v999 = vunpack.c.l.b16 %v487
        %v1000 = vunpack.c.l.b16 %v488
        %v1001 = vunpack.c.l.b16 %v489
        %v1002 = vunpack.c.l.b16 %v490
        %v1003 = vunpack.c.l.b16 %v491
        %v1004 = vunpack.c.l.b16 %v492
        %v1005 = vunpack.c.l.b16 %v493
        %v1006 = vunpack.c.l.b16 %v494
        %v1007 = vunpack.c.l.b16 %v495
        %v1008 = vunpack.c.l.b16 %v496
        %v1009 = vunpack.c.l.b16 %v497
        %v1010 = vunpack.c.l.b16 %v498
        %v1011 = vunpack.c.l.b16 %v499
        %v1012 = vunpack.c.l.b16 %v500
        %v1013 = vunpack.c.l.b16 %v501
        %v1014 = vunpack.c.l.b16 %v502
        %v1015 = vunpack.c.l.b16 %v503
        %v1016 = vunpack.c.l.b16 %v504
        %v1017 = vunpack.c.l.b16 %v505
        %v1018 = vunpack.c.l.b16 %v506
        %v1019 = vunpack.c.l.b16 %v507
        %v1020 = vunpack.c.l.b16 %v508
        %v1021 = vunpack.c.l.b16 %v509
        %v1022 = vunpack.c.l.b16 %v510
        %v1023 = vunpack.c.l.b16 %v511
        %v1024 = vunpack.c.l.b16 %v512
        %v1025 = vunpack.c.l.b16 %v513
        %v1026 = vunpack.c.l.b16 %v514
        %v1027 = vunpack.c.l.b16 %v515
        %v1028 = vunpack.c.l.b16 %v516
        %v1029 = vunpack.c.l.b16 %v517
        %v1030 = vunpack.c.l.b16 %v518
        %v1031 = vunpack.c.l.b16 %v519
        %v1032 = vunpack.c.l.b16 %v520
        %v1033 = vunpack.c.l.b16 %v521
        %v1034 = vunpack.c.l.b16 %v522
        %v1035 = vunpack.c.l.b16 %v523
        %v1036 = vunpack.c.l.b16 %v524
        %v1037 = vunpack.c.l.b16 %v525
        %v1038 = vunpack.c.l.b16 %v526
        %v1039 = vunpack.c.l.b16 %v527
        %v1040 = vunpack.c.l.b16 %v528
        %v1041 = vunpack.c.l.b16 %v529
        %v1042 = vunpack.c.l.b16 %v530
        %v1043 = vunpack.c.l.b16 %v531
        %v1044 = vunpack.c.l.b16 %v532
        %v1045 = vunpack.c.l.b16 %v533
        %v1046 = vunpack.c.l.b16 %v534
        %v1047 = vunpack.c.l.b16 %v535
        %v1048 = vunpack.c.l.b16 %v536
        %v1049 = vunpack.c.l.b16 %v537
        %v1050 = vunpack.c.l.b16 %v538
        %v1051 = vunpack.c.l.b16 %v539
        %v1052 = vunpack.c.l.b16 %v540
        %v1053 = vunpack.c.l.b16 %v541
        %v1054 = vunpack.c.l.b16 %v542
        %v1055 = vunpack.c.l.b16 %v543
        %v1056 = vunpack.c.l.b16 %v544
        %v1057 = vunpack.c.l.b16 %v545
        %v1058 = vunpack.c.l.b16 %v546
        %v1059 = vunpack.c.l.b16 %v547
        %v1060 = vunpack.c.l.b16 %v548
        %v1061 = vunpack.c.l.b16 %v549
        %v1062 = vunpack.c.l.b16 %v550
        %v1063 = vunpack.c.l.b16 %v551
        %v1064 = vunpack.c.l.b16 %v552
        %v1065 = vunpack.c.l.b16 %v553
        %v1066 = vunpack.c.l.b16 %v554
        %v1067 = vunpack.c.l.b16 %v555
        %v1068 = vunpack.c.l.b16 %v556
        %v1069 = vunpack.c.l.b16 %v557
        %v1070 = vunpack.c.l.b16 %v558
        %v1071 = vunpack.c.l.b16 %v559
        %v1072 = vunpack.c.l.b16 %v560
        %v1073 = vunpack.c.l.b16 %v561
        %v1074 = vunpack.c.l.b16 %v562
        %v1075 = vunpack.c.l.b16 %v563
        %v1076 = vunpack.c.l.b16 %v564
        %v1077 = vunpack.c.l.b16 %v565
        %v1078 = vunpack.c.l.b16 %v566
        %v1079 = vunpack.c.l.b16 %v567
        %v1080 = vunpack.c.l.b16 %v568
        %v1081 = vunpack.c.l.b16 %v569
        %v1082 = vunpack.c.l.b16 %v570
        %v1083 = vunpack.c.l.b16 %v571
        %v1084 = vunpack.c.l.b16 %v572
        %v1085 = vunpack.c.l.b16 %v573
        %v1086 = vunpack.c.l.b16 %v574
        %v1087 = vunpack.c.l.b16 %v575
        %v1088 = vunpack.c.l.b16 %v576
        %v1089 = vunpack.c.l.b16 %v577
        %v1090 = vunpack.c.l.b16 %v578
        %v1091 = vunpack.c.l.b16 %v579
        %v1092 = vunpack.c.l.b16 %v580
        %v1093 = vunpack.c.l.b16 %v581
        %v1094 = vunpack.c.l.b16 %v582
        %v1095 = vunpack.c.l.b16 %v583
        %v1096 = vunpack.c.l.b16 %v584
        %v1097 = vunpack.c.l.b16 %v585
        %v1098 = vunpack.c.l.b16 %v586
        %v1099 = vunpack.c.l.b16 %v587
        %v1100 = vunpack.c.l.b16 %v588
        %v1101 = vunpack.c.l.b16 %v589
        %v1102 = vunpack.c.l.b16 %v590
        %v1103 = vunpack.c.l.b16 %v591
        %v1104 = vunpack.c.l.b16 %v592
        %v1105 = vunpack.c.l.b16 %v593
        %v1106 = vunpack.c.l.b16 %v594
        %v1107 = vunpack.c.l.b16 %v595
        %v1108 = vunpack.c.l.b16 %v596
        %v1109 = vunpack.c.l.b16 %v597
        %v1110 = vunpack.c.l.b16 %v598
        %v1111 = vunpack.c.l.b16 %v599
        %v1112 = vunpack.c.l.b16 %v600
        %v1113 = vunpack.c.l.b16 %v601
        %v1114 = vunpack.c.l.b16 %v602
        %v1115 = vunpack.c.l.b16 %v603
        %v1116 = vunpack.c.l.b16 %v604
        %v1117 = vunpack.c.l.b16 %v605
        %v1118 = vpack.c.b16 %v863, %v862
        %v1119 = vpack.c.b16 %v865, %v864
        %v1120 = vpack.c.b16 %v867, %v866
        %v1121 = vpack.c.b16 %v869, %v868
        %v1122 = vpack.c.b16 %v871, %v870
        %v1123 = vpack.c.b16 %v873, %v872
        %v1124 = vpack.c.b16 %v875, %v874
        %v1125 = vpack.c.b16 %v877, %v876
        %v1126 = vpack.c.b16 %v879, %v878
        %v1127 = vpack.c.b16 %v881, %v880
        %v1128 = vpack.c.b16 %v883, %v882
        %v1129 = vpack.c.b16 %v885, %v884
        %v1130 = vpack.c.b16 %v887, %v886
        %v1131 = vpack.c.b16 %v889, %v888
        %v1132 = vpack.c.b16 %v891, %v890
        %v1133 = vpack.c.b16 %v893, %v892
        %v1134 = vpack.c.b16 %v895, %v894
        %v1135 = vpack.c.b16 %v897, %v896
        %v1136 = vpack.c.b16 %v899, %v898
        %v1137 = vpack.c.b16 %v901, %v900
        %v1138 = vpack.c.b16 %v903, %v902
        %v1139 = vpack.c.b16 %v905, %v904
        %v1140 = vpack.c.b16 %v907, %v906
        %v1141 = vpack.c.b16 %v909, %v908
        %v1142 = vpack.c.b16 %v911, %v910
        %v1143 = vpack.c.b16 %v913, %v912
        %v1144 = vpack.c.b16 %v915, %v914
        %v1145 = vpack.c.b16 %v917, %v916
        %v1146 = vpack.c.b16 %v919, %v918
        %v1147 = vpack.c.b16 %v921, %v920
        %v1148 = vpack.c.b16 %v923, %v922
        %v1149 = vpack.c.b16 %v925, %v924
        %v1150 = vpack.c.b16 %v927, %v926
        %v1151 = vpack.c.b16 %v929, %v928
        %v1152 = vpack.c.b16 %v931, %v930
        %v1153 = vpack.c.b16 %v933, %v932
        %v1154 = vpack.c.b16 %v935, %v934
        %v1155 = vpack.c.b16 %v937, %v936
        %v1156 = vpack.c.b16 %v939, %v938
        %v1157 = vpack.c.b16 %v941, %v940
        %v1158 = vpack.c.b16 %v943, %v942
        %v1159 = vpack.c.b16 %v945, %v944
        %v1160 = vpack.c.b16 %v947, %v946
        %v1161 = vpack.c.b16 %v949, %v948
        %v1162 = vpack.c.b16 %v951, %v950
        %v1163 = vpack.c.b16 %v953, %v952
        %v1164 = vpack.c.b16 %v955, %v954
        %v1165 = vpack.c.b16 %v957, %v956
        %v1166 = vpack.c.b16 %v959, %v958
        %v1167 = vpack.c.b16 %v961, %v960
        %v1168 = vpack.c.b16 %v963, %v962
        %v1169 = vpack.c.b16 %v965, %v964
        %v1170 = vpack.c.b16 %v967, %v966
        %v1171 = vpack.c.b16 %v969, %v968
        %v1172 = vpack.c.b16 %v971, %v970
        %v1173 = vpack.c.b16 %v973, %v972
        %v1174 = vpack.c.b16 %v975, %v974
        %v1175 = vpack.c.b16 %v977, %v976
        %v1176 = vpack.c.b16 %v979, %v978
        %v1177 = vpack.c.b16 %v981, %v980
        %v1178 = vpack.c.b16 %v983, %v982
        %v1179 = vpack.c.b16 %v985, %v984
        %v1180 = vpack.c.b16 %v987, %v986
        %v1181 = vpack.c.b16 %v989, %v988
        %v1182 = vpack.c.b16 %v991, %v990
        %v1183 = vpack.c.b16 %v993, %v992
        %v1184 = vpack.c.b16 %v995, %v994
        %v1185 = vpack.c.b16 %v997, %v996
        %v1186 = vpack.c.b16 %v999, %v998
        %v1187 = vpack.c.b16 %v1001, %v1000
        %v1188 = vpack.c.b16 %v1003, %v1002
        %v1189 = vpack.c.b16 %v1005, %v1004
        %v1190 = vpack.c.b16 %v1007, %v1006
        %v1191 = vpack.c.b16 %v1009, %v1008
        %v1192 = vpack.c.b16 %v1011, %v1010
        %v1193 = vpack.c.b16 %v1013, %v1012
        %v1194 = vpack.c.b16 %v1015, %v1014
        %v1195 = vpack.c.b16 %v1017, %v1016
        %v1196 = vpack.c.b16 %v1019, %v1018
        %v1197 = vpack.c.b16 %v1021, %v1020
        %v1198 = vpack.c.b16 %v1023, %v1022
        %v1199 = vpack.c.b16 %v1025, %v1024
        %v1200 = vpack.c.b16 %v1027, %v1026
        %v1201 = vpack.c.b16 %v1029, %v1028
        %v1202 = vpack.c.b16 %v1031, %v1030
        %v1203 = vpack.c.b16 %v1033, %v1032
        %v1204 = vpack.c.b16 %v1035, %v1034
        %v1205 = vpack.c.b16 %v1037, %v1036
        %v1206 = vpack.c.b16 %v1039, %v1038
        %v1207 = vpack.c.b16 %v1041, %v1040
        %v1208 = vpack.c.b16 %v1043, %v1042
        %v1209 = vpack.c.b16 %v1045, %v1044
        %v1210 = vpack.c.b16 %v1047, %v1046
        %v1211 = vpack.c.b16 %v1049, %v1048
        %v1212 = vpack.c.b16 %v1051, %v1050
        %v1213 = vpack.c.b16 %v1053, %v1052
        %v1214 = vpack.c.b16 %v1055, %v1054
        %v1215 = vpack.c.b16 %v1057, %v1056
        %v1216 = vpack.c.b16 %v1059, %v1058
        %v1217 = vpack.c.b16 %v1061, %v1060
        %v1218 = vpack.c.b16 %v1063, %v1062
        %v1219 = vpack.c.b16 %v1065, %v1064
        %v1220 = vpack.c.b16 %v1067, %v1066
        %v1221 = vpack.c.b16 %v1069, %v1068
        %v1222 = vpack.c.b16 %v1071, %v1070
        %v1223 = vpack.c.b16 %v1073, %v1072
        %v1224 = vpack.c.b16 %v1075, %v1074
        %v1225 = vpack.c.b16 %v1077, %v1076
        %v1226 = vpack.c.b16 %v1079, %v1078
        %v1227 = vpack.c.b16 %v1081, %v1080
        %v1228 = vpack.c.b16 %v1083, %v1082
        %v1229 = vpack.c.b16 %v1085, %v1084
        %v1230 = vpack.c.b16 %v1087, %v1086
        %v1231 = vpack.c.b16 %v1089, %v1088
        %v1232 = vpack.c.b16 %v1091, %v1090
        %v1233 = vpack.c.b16 %v1093, %v1092
        %v1234 = vpack.c.b16 %v1095, %v1094
        %v1235 = vpack.c.b16 %v1097, %v1096
        %v1236 = vpack.c.b16 %v1099, %v1098
        %v1237 = vpack.c.b16 %v1101, %v1100
        %v1238 = vpack.c.b16 %v1103, %v1102
        %v1239 = vpack.c.b16 %v1105, %v1104
        %v1240 = vpack.c.b16 %v1107, %v1106
        %v1241 = vpack.c.b16 %v1109, %v1108
        %v1242 = vpack.c.b16 %v1111, %v1110
        %v1243 = vpack.c.b16 %v1113, %v1112
        %v1244 = vpack.c.b16 %v1115, %v1114
        %v1245 = vpack.c.b16 %v1117, %v1116
        %1374 = vmatprep.subr.bf16.mxu0 0
        %1375 = vmatpush1.bf16.msra.mxu0 %v1118
        %1376 = vmatprep.subr.bf16.mxu0 0
        %1377 = vmatpush1.bf16.msra.mxu0 %v1119
        %1378 = vmatprep.subr.bf16.mxu0 0
        %1379 = vmatpush1.bf16.msra.mxu0 %v1120
        %1380 = vmatprep.subr.bf16.mxu0 0
        %1381 = vmatpush1.bf16.msra.mxu0 %v1121
        %1382 = vmatprep.subr.bf16.mxu0 0
        %1383 = vmatpush1.bf16.msra.mxu0 %v1122
        %1384 = vmatprep.subr.bf16.mxu0 0
        %1385 = vmatpush1.bf16.msra.mxu0 %v1123
        %1386 = vmatprep.subr.bf16.mxu0 0
        %1387 = vmatpush1.bf16.msra.mxu0 %v1124
        %1388 = vmatprep.subr.bf16.mxu0 0
        %1389 = vmatpush1.bf16.msra.mxu0 %v1125
        %1390 = vmatprep.subr.bf16.mxu0 0
        %1391 = vmatpush1.bf16.msra.mxu0 %v1126
        %1392 = vmatprep.subr.bf16.mxu0 0
        %1393 = vmatpush1.bf16.msra.mxu0 %v1127
        %1394 = vmatprep.subr.bf16.mxu0 0
        %1395 = vmatpush1.bf16.msra.mxu0 %v1128
        %1396 = vmatprep.subr.bf16.mxu0 0
        %1397 = vmatpush1.bf16.msra.mxu0 %v1129
        %1398 = vmatprep.subr.bf16.mxu0 0
        %1399 = vmatpush1.bf16.msra.mxu0 %v1130
        %1400 = vmatprep.subr.bf16.mxu0 0
        %1401 = vmatpush1.bf16.msra.mxu0 %v1131
        %1402 = vmatprep.subr.bf16.mxu0 0
        %1403 = vmatpush1.bf16.msra.mxu0 %v1132
        %1404 = vmatprep.subr.bf16.mxu0 0
        %1405 = vmatpush1.bf16.msra.mxu0 %v1133
        %1406 = vmatprep.mubr.bf16.mxu0 %v335
        %1407 = vmatmul.mubr.bf16.gmra.mrb[0].mxu0 %v334
        %v1408 = vpop.f32.mrb[0].mxu0
        %v1409 = vadd.f32 0.0, %v1408
        %v1410 = vpop.f32.mrb[0].mxu0
        %v1411 = vpop.f32.mrb[0].mxu0
        %v1412 = vpop.f32.mrb[0].mxu0
        %1413 = vdwg.mxu0
        %1414 = vmatprep.subr.bf16.mxu0 0
        %1415 = vmatpush1.bf16.msra.mxu0 %v1134
        %1416 = vmatprep.subr.bf16.mxu0 0
        %1417 = vmatpush1.bf16.msra.mxu0 %v1135
        %1418 = vmatprep.subr.bf16.mxu0 0
        %1419 = vmatpush1.bf16.msra.mxu0 %v1136
        %1420 = vmatprep.subr.bf16.mxu0 0
        %1421 = vmatpush1.bf16.msra.mxu0 %v1137
        %1422 = vmatprep.subr.bf16.mxu0 0
        %1423 = vmatpush1.bf16.msra.mxu0 %v1138
        %1424 = vmatprep.subr.bf16.mxu0 0
        %1425 = vmatpush1.bf16.msra.mxu0 %v1139
        %1426 = vmatprep.subr.bf16.mxu0 0
        %1427 = vmatpush1.bf16.msra.mxu0 %v1140
        %1428 = vmatprep.subr.bf16.mxu0 0
        %1429 = vmatpush1.bf16.msra.mxu0 %v1141
        %1430 = vmatprep.subr.bf16.mxu0 0
        %1431 = vmatpush1.bf16.msra.mxu0 %v1142
        %1432 = vmatprep.subr.bf16.mxu0 0
        %1433 = vmatpush1.bf16.msra.mxu0 %v1143
        %1434 = vmatprep.subr.bf16.mxu0 0
        %1435 = vmatpush1.bf16.msra.mxu0 %v1144
        %1436 = vmatprep.subr.bf16.mxu0 0
        %1437 = vmatpush1.bf16.msra.mxu0 %v1145
        %1438 = vmatprep.subr.bf16.mxu0 0
        %1439 = vmatpush1.bf16.msra.mxu0 %v1146
        %1440 = vmatprep.subr.bf16.mxu0 0
        %1441 = vmatpush1.bf16.msra.mxu0 %v1147
        %1442 = vmatprep.subr.bf16.mxu0 0
        %1443 = vmatpush1.bf16.msra.mxu0 %v1148
        %1444 = vmatprep.subr.bf16.mxu0 0
        %1445 = vmatpush1.bf16.msra.mxu0 %v1149
        %1446 = vmatprep.mubr.bf16.mxu0 %v337
        %1447 = vmatmul.mubr.bf16.gmra.mrb[0].mxu0 %v336
        %v1448 = vpop.f32.mrb[0].mxu0
        %v1449 = vadd.f32 %v1409, %v1448
        %v1450 = vpop.f32.mrb[0].mxu0
        %v1451 = vpop.f32.mrb[0].mxu0
        %v1452 = vpop.f32.mrb[0].mxu0
        %1453 = vdwg.mxu0
        %1454 = vmatprep.subr.bf16.mxu0 0
        %1455 = vmatpush1.bf16.msra.mxu0 %v1150
        %1456 = vmatprep.subr.bf16.mxu0 0
        %1457 = vmatpush1.bf16.msra.mxu0 %v1151
        %1458 = vmatprep.subr.bf16.mxu0 0
        %1459 = vmatpush1.bf16.msra.mxu0 %v1152
        %1460 = vmatprep.subr.bf16.mxu0 0
        %1461 = vmatpush1.bf16.msra.mxu0 %v1153
        %1462 = vmatprep.subr.bf16.mxu0 0
        %1463 = vmatpush1.bf16.msra.mxu0 %v1154
        %1464 = vmatprep.subr.bf16.mxu0 0
        %1465 = vmatpush1.bf16.msra.mxu0 %v1155
        %1466 = vmatprep.subr.bf16.mxu0 0
        %1467 = vmatpush1.bf16.msra.mxu0 %v1156
        %1468 = vmatprep.subr.bf16.mxu0 0
        %1469 = vmatpush1.bf16.msra.mxu0 %v1157
        %1470 = vmatprep.subr.bf16.mxu0 0
        %1471 = vmatpush1.bf16.msra.mxu0 %v1158
        %1472 = vmatprep.subr.bf16.mxu0 0
        %1473 = vmatpush1.bf16.msra.mxu0 %v1159
        %1474 = vmatprep.subr.bf16.mxu0 0
        %1475 = vmatpush1.bf16.msra.mxu0 %v1160
        %1476 = vmatprep.subr.bf16.mxu0 0
        %1477 = vmatpush1.bf16.msra.mxu0 %v1161
        %1478 = vmatprep.subr.bf16.mxu0 0
        %1479 = vmatpush1.bf16.msra.mxu0 %v1162
        %1480 = vmatprep.subr.bf16.mxu0 0
        %1481 = vmatpush1.bf16.msra.mxu0 %v1163
        %1482 = vmatprep.subr.bf16.mxu0 0
        %1483 = vmatpush1.bf16.msra.mxu0 %v1164
        %1484 = vmatprep.subr.bf16.mxu0 0
        %1485 = vmatpush1.bf16.msra.mxu0 %v1165
        %1486 = vmatprep.mubr.bf16.mxu0 %v339
        %1487 = vmatmul.mubr.bf16.gmra.mrb[0].mxu0 %v338
        %v1488 = vpop.f32.mrb[0].mxu0
        %v1489 = vadd.f32 %v1449, %v1488
        %v1490 = vpop.f32.mrb[0].mxu0
        %v1491 = vpop.f32.mrb[0].mxu0
        %v1492 = vpop.f32.mrb[0].mxu0
        %1493 = vdwg.mxu0
        %1494 = vmatprep.subr.bf16.mxu0 0
        %1495 = vmatpush1.bf16.msra.mxu0 %v1166
        %1496 = vmatprep.subr.bf16.mxu0 0
        %1497 = vmatpush1.bf16.msra.mxu0 %v1167
        %1498 = vmatprep.subr.bf16.mxu0 0
        %1499 = vmatpush1.bf16.msra.mxu0 %v1168
        %1500 = vmatprep.subr.bf16.mxu0 0
        %1501 = vmatpush1.bf16.msra.mxu0 %v1169
        %1502 = vmatprep.subr.bf16.mxu0 0
        %1503 = vmatpush1.bf16.msra.mxu0 %v1170
        %1504 = vmatprep.subr.bf16.mxu0 0
        %1505 = vmatpush1.bf16.msra.mxu0 %v1171
        %1506 = vmatprep.subr.bf16.mxu0 0
        %1507 = vmatpush1.bf16.msra.mxu0 %v1172
        %1508 = vmatprep.subr.bf16.mxu0 0
        %1509 = vmatpush1.bf16.msra.mxu0 %v1173
        %1510 = vmatprep.subr.bf16.mxu0 0
        %1511 = vmatpush1.bf16.msra.mxu0 %v1174
        %1512 = vmatprep.subr.bf16.mxu0 0
        %1513 = vmatpush1.bf16.msra.mxu0 %v1175
        %1514 = vmatprep.subr.bf16.mxu0 0
        %1515 = vmatpush1.bf16.msra.mxu0 %v1176
        %1516 = vmatprep.subr.bf16.mxu0 0
        %1517 = vmatpush1.bf16.msra.mxu0 %v1177
        %1518 = vmatprep.subr.bf16.mxu0 0
        %1519 = vmatpush1.bf16.msra.mxu0 %v1178
        %1520 = vmatprep.subr.bf16.mxu0 0
        %1521 = vmatpush1.bf16.msra.mxu0 %v1179
        %1522 = vmatprep.subr.bf16.mxu0 0
        %1523 = vmatpush1.bf16.msra.mxu0 %v1180
        %1524 = vmatprep.subr.bf16.mxu0 0
        %1525 = vmatpush1.bf16.msra.mxu0 %v1181
        %1526 = vmatprep.mubr.bf16.mxu0 %v341
        %1527 = vmatmul.mubr.bf16.gmra.mrb[0].mxu0 %v340
        %v1528 = vpop.f32.mrb[0].mxu0
        %v1529 = vadd.f32 %v1489, %v1528
        %v1530 = vpop.f32.mrb[0].mxu0
        %v1531 = vpop.f32.mrb[0].mxu0
        %v1532 = vpop.f32.mrb[0].mxu0
        %1533 = vdwg.mxu0
        %1534 = vmatprep.subr.bf16.mxu0 0
        %1535 = vmatpush1.bf16.msra.mxu0 %v1182
        %1536 = vmatprep.subr.bf16.mxu0 0
        %1537 = vmatpush1.bf16.msra.mxu0 %v1183
        %1538 = vmatprep.subr.bf16.mxu0 0
        %1539 = vmatpush1.bf16.msra.mxu0 %v1184
        %1540 = vmatprep.subr.bf16.mxu0 0
        %1541 = vmatpush1.bf16.msra.mxu0 %v1185
        %1542 = vmatprep.subr.bf16.mxu0 0
        %1543 = vmatpush1.bf16.msra.mxu0 %v1186
        %1544 = vmatprep.subr.bf16.mxu0 0
        %1545 = vmatpush1.bf16.msra.mxu0 %v1187
        %1546 = vmatprep.subr.bf16.mxu0 0
        %1547 = vmatpush1.bf16.msra.mxu0 %v1188
        %1548 = vmatprep.subr.bf16.mxu0 0
        %1549 = vmatpush1.bf16.msra.mxu0 %v1189
        %1550 = vmatprep.subr.bf16.mxu0 0
        %1551 = vmatpush1.bf16.msra.mxu0 %v1190
        %1552 = vmatprep.subr.bf16.mxu0 0
        %1553 = vmatpush1.bf16.msra.mxu0 %v1191
        %1554 = vmatprep.subr.bf16.mxu0 0
        %1555 = vmatpush1.bf16.msra.mxu0 %v1192
        %1556 = vmatprep.subr.bf16.mxu0 0
        %1557 = vmatpush1.bf16.msra.mxu0 %v1193
        %1558 = vmatprep.subr.bf16.mxu0 0
        %1559 = vmatpush1.bf16.msra.mxu0 %v1194
        %1560 = vmatprep.subr.bf16.mxu0 0
        %1561 = vmatpush1.bf16.msra.mxu0 %v1195
        %1562 = vmatprep.subr.bf16.mxu0 0
        %1563 = vmatpush1.bf16.msra.mxu0 %v1196
        %1564 = vmatprep.subr.bf16.mxu0 0
        %1565 = vmatpush1.bf16.msra.mxu0 %v1197
        %1566 = vmatprep.mubr.bf16.mxu0 %v343
        %1567 = vmatmul.mubr.bf16.gmra.mrb[0].mxu0 %v342
        %v1568 = vpop.f32.mrb[0].mxu0
        %v1569 = vadd.f32 %v1529, %v1568
        %v1570 = vpop.f32.mrb[0].mxu0
        %v1571 = vpop.f32.mrb[0].mxu0
        %v1572 = vpop.f32.mrb[0].mxu0
        %1573 = vdwg.mxu0
        %1574 = vmatprep.subr.bf16.mxu0 0
        %1575 = vmatpush1.bf16.msra.mxu0 %v1198
        %1576 = vmatprep.subr.bf16.mxu0 0
        %1577 = vmatpush1.bf16.msra.mxu0 %v1199
        %1578 = vmatprep.subr.bf16.mxu0 0
        %1579 = vmatpush1.bf16.msra.mxu0 %v1200
        %1580 = vmatprep.subr.bf16.mxu0 0
        %1581 = vmatpush1.bf16.msra.mxu0 %v1201
        %1582 = vmatprep.subr.bf16.mxu0 0
        %1583 = vmatpush1.bf16.msra.mxu0 %v1202
        %1584 = vmatprep.subr.bf16.mxu0 0
        %1585 = vmatpush1.bf16.msra.mxu0 %v1203
        %1586 = vmatprep.subr.bf16.mxu0 0
        %1587 = vmatpush1.bf16.msra.mxu0 %v1204
        %1588 = vmatprep.subr.bf16.mxu0 0
        %1589 = vmatpush1.bf16.msra.mxu0 %v1205
        %1590 = vmatprep.subr.bf16.mxu0 0
        %1591 = vmatpush1.bf16.msra.mxu0 %v1206
        %1592 = vmatprep.subr.bf16.mxu0 0
        %1593 = vmatpush1.bf16.msra.mxu0 %v1207
        %1594 = vmatprep.subr.bf16.mxu0 0
        %1595 = vmatpush1.bf16.msra.mxu0 %v1208
        %1596 = vmatprep.subr.bf16.mxu0 0
        %1597 = vmatpush1.bf16.msra.mxu0 %v1209
        %1598 = vmatprep.subr.bf16.mxu0 0
        %1599 = vmatpush1.bf16.msra.mxu0 %v1210
        %1600 = vmatprep.subr.bf16.mxu0 0
        %1601 = vmatpush1.bf16.msra.mxu0 %v1211
        %1602 = vmatprep.subr.bf16.mxu0 0
        %1603 = vmatpush1.bf16.msra.mxu0 %v1212
        %1604 = vmatprep.subr.bf16.mxu0 0
        %1605 = vmatpush1.bf16.msra.mxu0 %v1213
        %1606 = vmatprep.mubr.bf16.mxu0 %v345
        %1607 = vmatmul.mubr.bf16.gmra.mrb[0].mxu0 %v344
        %v1608 = vpop.f32.mrb[0].mxu0
        %v1609 = vadd.f32 %v1569, %v1608
        %v1610 = vpop.f32.mrb[0].mxu0
        %v1611 = vpop.f32.mrb[0].mxu0
        %v1612 = vpop.f32.mrb[0].mxu0
        %1613 = vdwg.mxu0
        %1614 = vmatprep.subr.bf16.mxu0 0
        %1615 = vmatpush1.bf16.msra.mxu0 %v1214
        %1616 = vmatprep.subr.bf16.mxu0 0
        %1617 = vmatpush1.bf16.msra.mxu0 %v1215
        %1618 = vmatprep.subr.bf16.mxu0 0
        %1619 = vmatpush1.bf16.msra.mxu0 %v1216
        %1620 = vmatprep.subr.bf16.mxu0 0
        %1621 = vmatpush1.bf16.msra.mxu0 %v1217
        %1622 = vmatprep.subr.bf16.mxu0 0
        %1623 = vmatpush1.bf16.msra.mxu0 %v1218
        %1624 = vmatprep.subr.bf16.mxu0 0
        %1625 = vmatpush1.bf16.msra.mxu0 %v1219
        %1626 = vmatprep.subr.bf16.mxu0 0
        %1627 = vmatpush1.bf16.msra.mxu0 %v1220
        %1628 = vmatprep.subr.bf16.mxu0 0
        %1629 = vmatpush1.bf16.msra.mxu0 %v1221
        %1630 = vmatprep.subr.bf16.mxu0 0
        %1631 = vmatpush1.bf16.msra.mxu0 %v1222
        %1632 = vmatprep.subr.bf16.mxu0 0
        %1633 = vmatpush1.bf16.msra.mxu0 %v1223
        %1634 = vmatprep.subr.bf16.mxu0 0
        %1635 = vmatpush1.bf16.msra.mxu0 %v1224
        %1636 = vmatprep.subr.bf16.mxu0 0
        %1637 = vmatpush1.bf16.msra.mxu0 %v1225
        %1638 = vmatprep.subr.bf16.mxu0 0
        %1639 = vmatpush1.bf16.msra.mxu0 %v1226
        %1640 = vmatprep.subr.bf16.mxu0 0
        %1641 = vmatpush1.bf16.msra.mxu0 %v1227
        %1642 = vmatprep.subr.bf16.mxu0 0
        %1643 = vmatpush1.bf16.msra.mxu0 %v1228
        %1644 = vmatprep.subr.bf16.mxu0 0
        %1645 = vmatpush1.bf16.msra.mxu0 %v1229
        %1646 = vmatprep.mubr.bf16.mxu0 %v347
        %1647 = vmatmul.mubr.bf16.gmra.mrb[0].mxu0 %v346
        %v1648 = vpop.f32.mrb[0].mxu0
        %v1649 = vadd.f32 %v1609, %v1648
        %v1650 = vpop.f32.mrb[0].mxu0
        %v1651 = vpop.f32.mrb[0].mxu0
        %v1652 = vpop.f32.mrb[0].mxu0
        %1653 = vdwg.mxu0
        %1654 = vmatprep.subr.bf16.mxu0 0
        %1655 = vmatpush1.bf16.msra.mxu0 %v1230
        %1656 = vmatprep.subr.bf16.mxu0 0
        %1657 = vmatpush1.bf16.msra.mxu0 %v1231
        %1658 = vmatprep.subr.bf16.mxu0 0
        %1659 = vmatpush1.bf16.msra.mxu0 %v1232
        %1660 = vmatprep.subr.bf16.mxu0 0
        %1661 = vmatpush1.bf16.msra.mxu0 %v1233
        %1662 = vmatprep.subr.bf16.mxu0 0
        %1663 = vmatpush1.bf16.msra.mxu0 %v1234
        %1664 = vmatprep.subr.bf16.mxu0 0
        %1665 = vmatpush1.bf16.msra.mxu0 %v1235
        %1666 = vmatprep.subr.bf16.mxu0 0
        %1667 = vmatpush1.bf16.msra.mxu0 %v1236
        %1668 = vmatprep.subr.bf16.mxu0 0
        %1669 = vmatpush1.bf16.msra.mxu0 %v1237
        %1670 = vmatprep.subr.bf16.mxu0 0
        %1671 = vmatpush1.bf16.msra.mxu0 %v1238
        %1672 = vmatprep.subr.bf16.mxu0 0
        %1673 = vmatpush1.bf16.msra.mxu0 %v1239
        %1674 = vmatprep.subr.bf16.mxu0 0
        %1675 = vmatpush1.bf16.msra.mxu0 %v1240
        %1676 = vmatprep.subr.bf16.mxu0 0
        %1677 = vmatpush1.bf16.msra.mxu0 %v1241
        %1678 = vmatprep.subr.bf16.mxu0 0
        %1679 = vmatpush1.bf16.msra.mxu0 %v1242
        %1680 = vmatprep.subr.bf16.mxu0 0
        %1681 = vmatpush1.bf16.msra.mxu0 %v1243
        %1682 = vmatprep.subr.bf16.mxu0 0
        %1683 = vmatpush1.bf16.msra.mxu0 %v1244
        %1684 = vmatprep.subr.bf16.mxu0 0
        %1685 = vmatpush1.bf16.msra.mxu0 %v1245
        %1686 = vmatprep.mubr.bf16.mxu0 %v349
        %1687 = vmatmul.mubr.bf16.gmra.mrb[0].mxu0 %v348
        %v1688 = vpop.f32.mrb[0].mxu0
        %v1689 = vadd.f32 %v1649, %v1688
        %v1690 = vpop.f32.mrb[0].mxu0
        %v1691 = vpop.f32.mrb[0].mxu0
        %v1692 = vpop.f32.mrb[0].mxu0
        %1693 = vdwg.mxu0
        %v1694 = vadd.f32 %v241, %v1689
        %1695 = vst [vmem:[#allocation2] sm:$0x3] %v1694
        %p1696 = scmp.eq.s32.totalorder %s17, 3
        // Predicated region
        $region45: #{model_forward.5} parent=39 // pred_check
          %p1697 = pneg %p1696
        $region46: #{model_forward.5} parent=39 // pred_check_branch
          %1699 = sbr.rel (%p1697) target = $region48
        $region47: #{model_forward.5} parent=39 // pred_region
          %v1700 = vld [vmem:[#allocation2] sm:$0x3]
          %v1701 = vld [vmem:[%s2] sm:$0x1]
          %v1703 = vlaneseq
          %v1704 = vshrl.u32 %v1703, 7
          %v1705 = vsub.s32 0, %v1704
          %v1706 = vrot.slane %v1701, %v1705
          %v1708 = vadd.f32 %v1700, %v1706
          %v1709 = vmax.f32 %v1708, 0.0
          %v1710 = vld [vmem:[%s3] sm:$0xff]
          %v1711 = vld [vmem:[%s3 + $0x8] sm:$0xff]
          %v1712 = vld [vmem:[%s3 + $0x10] sm:$0xff]
          %v1713 = vld [vmem:[%s3 + $0x18] sm:$0xff]
          %v1714 = vld [vmem:[%s3 + $0x20] sm:$0xff]
          %v1715 = vld [vmem:[%s3 + $0x28] sm:$0xff]
          %v1716 = vld [vmem:[%s3 + $0x30] sm:$0xff]
          %v1717 = vld [vmem:[%s3 + $0x38] sm:$0xff]
          %v1718 = vld [vmem:[%s3 + $0x40] sm:$0xff]
          %v1719 = vld [vmem:[%s3 + $0x48] sm:$0xff]
          %v1720 = vld [vmem:[%s3 + $0x50] sm:$0xff]
          %v1721 = vld [vmem:[%s3 + $0x58] sm:$0xff]
          %v1722 = vld [vmem:[%s3 + $0x60] sm:$0xff]
          %v1723 = vld [vmem:[%s3 + $0x68] sm:$0xff]
          %v1724 = vld [vmem:[%s3 + $0x70] sm:$0xff]
          %v1725 = vld [vmem:[%s3 + $0x78] sm:$0xff]
          %v1726 = vld [vmem:[%s4] sm:$0x1]
          %v1728 = vlaneseq
          %v1729 = vshrl.u32 %v1728, 7
          %v1730 = vsub.s32 0, %v1729
          %v1731 = vrot.slane %v1726, %v1730
          %1733 = vmatprep.subr.mxu0 0.0
          %1734 = vmatpush1.msra.mxu0 %v1710
          %1735 = vmatprep.subr.mxu0 0.0
          %1736 = vmatpush1.msra.mxu0 %v1711
          %1737 = vmatprep.subr.mxu0 0.0
          %1738 = vmatpush1.msra.mxu0 %v1712
          %1739 = vmatprep.subr.mxu0 0.0
          %1740 = vmatpush1.msra.mxu0 %v1713
          %1741 = vmatprep.subr.mxu0 0.0
          %1742 = vmatpush1.msra.mxu0 %v1714
          %1743 = vmatprep.subr.mxu0 0.0
          %1744 = vmatpush1.msra.mxu0 %v1715
          %1745 = vmatprep.subr.mxu0 0.0
          %1746 = vmatpush1.msra.mxu0 %v1716
          %1747 = vmatprep.subr.mxu0 0.0
          %1748 = vmatpush1.msra.mxu0 %v1717
          %1749 = vmatprep.subr.mxu0 0.0
          %1750 = vmatpush1.msra.mxu0 %v1718
          %1751 = vmatprep.subr.mxu0 0.0
          %1752 = vmatpush1.msra.mxu0 %v1719
          %1753 = vmatprep.subr.mxu0 0.0
          %1754 = vmatpush1.msra.mxu0 %v1720
          %1755 = vmatprep.subr.mxu0 0.0
          %1756 = vmatpush1.msra.mxu0 %v1721
          %1757 = vmatprep.subr.mxu0 0.0
          %1758 = vmatpush1.msra.mxu0 %v1722
          %1759 = vmatprep.subr.mxu0 0.0
          %1760 = vmatpush1.msra.mxu0 %v1723
          %1761 = vmatprep.subr.mxu0 0.0
          %1762 = vmatpush1.msra.mxu0 %v1724
          %1763 = vmatprep.subr.mxu0 0.0
          %1764 = vmatpush1.msra.mxu0 %v1725
          %1765 = vmatprep.subr.mxu0 0.0
          %1766 = vmatpush1.msra.mxu0 0.0
          %1767 = vmatprep.subr.mxu0 0.0
          %1768 = vmatpush1.msra.mxu0 0.0
          %1769 = vmatprep.subr.mxu0 0.0
          %1770 = vmatpush1.msra.mxu0 0.0
          %1771 = vmatprep.subr.mxu0 0.0
          %1772 = vmatpush1.msra.mxu0 0.0
          %1773 = vmatprep.subr.mxu0 0.0
          %1774 = vmatpush1.msra.mxu0 0.0
          %1775 = vmatprep.subr.mxu0 0.0
          %1776 = vmatpush1.msra.mxu0 0.0
          %1777 = vmatprep.subr.mxu0 0.0
          %1778 = vmatpush1.msra.mxu0 0.0
          %1779 = vmatprep.subr.mxu0 0.0
          %1780 = vmatpush1.msra.mxu0 0.0
          %1781 = vmatprep.subr.mxu0 0.0
          %1782 = vmatpush1.msra.mxu0 0.0
          %1783 = vmatprep.subr.mxu0 0.0
          %1784 = vmatpush1.msra.mxu0 0.0
          %1785 = vmatprep.subr.mxu0 0.0
          %1786 = vmatpush1.msra.mxu0 0.0
          %1787 = vmatprep.subr.mxu0 0.0
          %1788 = vmatpush1.msra.mxu0 0.0
          %1789 = vmatprep.subr.mxu0 0.0
          %1790 = vmatpush1.msra.mxu0 0.0
          %1791 = vmatprep.subr.mxu0 0.0
          %1792 = vmatpush1.msra.mxu0 0.0
          %1793 = vmatprep.subr.mxu0 0.0
          %1794 = vmatpush1.msra.mxu0 0.0
          %1795 = vmatprep.subr.mxu0 0.0
          %1796 = vmatpush1.msra.mxu0 0.0
          %1797 = vmatprep.mubr.f32.mxu0 0.0
          %1798 = vmatmul.mubr.f32.gmra.mrb[0].mxu0 %v1709
          %v1799 = vpop.f32.mrb[0].mxu0
          %v1800 = vadd.f32 %v1731, %v1799
          %v1801 = vpop.f32.mrb[0].mxu0
          %1802 = vdwg.mxu0
          %vm1803 = vcmask 9216
          %1804 = vst.msk [vmem:[#allocation3] sm:$0x3] %vm1803, %v1800
        $region48: #{model_forward.5} parent=39 // pred_fallthru
          _
        // Predicated region
        $region49: #{model_forward.5} parent=39 // pred_check
          %p1805 = pneg %p145
        $region50: #{model_forward.5} parent=39 // pred_check_branch
          %1807 = sbr.rel (%p1805) target = $region52
        $region51: #{model_forward.5} parent=39 // pred_region
          %s1809 = ssub.s32 32, 32
          %1810 = vsyncadd [#allocation4], %s1809
          %s1812 = sshll.u32 [#allocation3], 4
          %s1813 = int_to_ptr.vmem [resolvable:$true] %s1812
          %1815 = dma.vmem_to_hbm [thread:$0]  %s1813, 32, %s5, [#allocation4]
        $region52: #{model_forward.5} parent=39 // pred_fallthru
          _
        // Predicated region
        $region53: #{model_forward.5} parent=39 // pred_check
          %p1816 = pneg %p145
        $region54: #{model_forward.5} parent=39 // pred_check_branch
          %1818 = sbr.rel (%p1816) target = $region56
        $region55: #{model_forward.5} parent=39 // pred_region
          %1819 = dma.done [#allocation4], 32
        $region56: #{model_forward.5} parent=39 // pred_fallthru
          _
      $region40: #{model_forward.5} parent=5 // pred_fallthru
        _
      %p1820 = scmp.le.s32.totalorder 2, %s12
      // Predicated region
      $region57: #{model_forward.5} parent=5 // pred_check
        %p1821 = pneg %p1820
      $region58: #{model_forward.5} parent=5 // pred_check_branch
        %1823 = sbr.rel (%p1821) target = $region60
      $region59: #{model_forward.5} parent=5 // pred_region
        %s1824 = ssub.s32 %s12, 2
      $region60: #{model_forward.5} parent=5 // pred_fallthru
        _
    $region6: #{model_forward.5} parent=1 // loop_footer
      %s16 = sadd.s32 1, %s12
    $region7: #{model_forward.5} parent=1 // loop_footer_branch
      %11 = sbr.rel target = $region3
    $region8: #{model_forward.5} parent=1 // loop_exit
      _
    %1825 = vsyncpa [#allocation4], 1
    %s1826 = scalar_lea.sflag [#allocation4], 1
    %1827 = vsyncpa %s1826, 1

</llo_original>
